<compile_context>
chip_gen: v7x
topology: tpu7x:2x2x1
jax: 0.10.0
libtpu: 0.0.40
codegen_flags: <defaults>
</compile_context>

<pallas_src>
import numpy as np

import jax
import jax.numpy as jnp
from jax.experimental import pallas as pl
from jax.experimental.pallas import tpu as pltpu

NUM_CLASSES = 36          # TODO(synk): stand-in for len(CharacterDataset.CHARSET)
_TB_CAP = 128             # batch tile cap; ~10-15 MB peak VMEM at 128 (f32).
                          # Can be raised to 256+ on v5e/v6e (128 MiB VMEM).
_MATMUL_DTYPE = jnp.float32  # set jnp.bfloat16 on v6e/v7x for MXU-native rate
                             # (epilogue stays f32; loosen the parity tolerance)


def _round_up(v, m):
    return (v + m - 1) // m * m


# ----------------------------------------------------------------------------
# The single fused kernel
# ----------------------------------------------------------------------------
def _fused_cnn_kernel(x_ref, t1_ref, b1_ref, t2_ref, b2_ref,
                      w1_ref, bf1_ref, w2_ref, bf2_ref, w3_ref, bf3_ref,
                      o_ref):
    # x_ref : (9*TB, 128)  rows = row-group k (of 4 image rows) major, batch
    #                      minor; lanes = row-parity p * 32 + width w.
    # t1_ref: (4, 2, 128, 256) conv1 weights [row-phase t, row-group off g,
    #                      (p,w), col-phase q * 128 + j*6 + c1]
    # t2_ref: (5, 128, 256) conv2 banded weights [kh, j*6+c1, e*128 + j2*16+c2]
    # w1_ref: (5, 128, 128) fc1 weights [pooled row i2, j2*16+c2, out (pad 128)]
    # w2/w3 : (128, 128)    fc2 / fc3 weights, zero padded
    TB = o_ref.shape[0]

    def mm(a, w):   # MXU matmul, f32 accumulation; operands cast to weight dtype
        return jnp.dot(a.astype(w.dtype), w, preferred_element_type=jnp.float32)

    xg = x_ref[...]                      # (9*TB, 128)
    X0 = xg[0:8 * TB, :]                 # row-groups 0..7 (rows i*TB + b)
    X1 = xg[TB:9 * TB, :]                # row-groups 1..8

    # ---------------- conv1 (2 matmuls per row phase t) ----------------------
    # acc_t[i*TB+b, q*128 + j*6+c1] = conv1 output at row 4i+t, col 2j+q, ch c1
    def conv1_phase(t):
        return mm(X0, t1_ref[t, 0]) + mm(X1, t1_ref[t, 1])   # (8*TB, 256)

    def pool_halves(acc):                # max over the two column phases
        return jnp.maximum(acc[:, :128], acc[:, 128:])

    b1 = b1_ref[...]                     # (1, 128)

    def pooled_pair(t0):                 # pool over rows {t0, t0+1} + bias + relu
        run = pool_halves(conv1_phase(t0))
        run = jnp.maximum(run, pool_halves(conv1_phase(t0 + 1)))
        return jnp.maximum(run + b1, 0.0)

    p1e = pooled_pair(0)                 # pooled rows 2i   -> (8*TB, 128)
    p1o = pooled_pair(2)                 # pooled rows 2i+1 -> (8*TB, 128)

    # ---------------- conv2 (banded matmuls over the 5 height taps) ----------
    # acc_d[i2*TB+b, e*128 + j2*16+c2] = conv2 output at row 2*i2+d, col 2*j2+e
    b2 = b2_ref[...]                     # (1, 128)

    def conv2_phase(d):
        acc = None
        for kh in range(5):
            m = d + kh
            src = p1e if (m % 2 == 0) else p1o
            lhs = src[(m // 2) * TB:(m // 2 + 5) * TB, :]     # (5*TB, 128)
            term = mm(lhs, t2_ref[kh])                        # (5*TB, 256)
            acc = term if acc is None else acc + term
        return acc

    run2 = pool_halves(conv2_phase(0))
    run2 = jnp.maximum(run2, pool_halves(conv2_phase(1)))
    p2 = jnp.maximum(run2 + b2, 0.0)     # (5*TB, 128): rows i2*TB+b

    # ---------------- fc1 -> relu -> fc2 -> relu -> fc3 -> log_softmax -------
    # TODO(synk): fc1 kept as 5 accumulated (TB,128)x(128,128) dots instead of
    # one K=640 dot to avoid an in-kernel row->lane relayout of p2.
    h = mm(p2[0:TB, :], w1_ref[0])
    for i2 in range(1, 5):
        h = h + mm(p2[i2 * TB:(i2 + 1) * TB, :], w1_ref[i2])
    h1 = jnp.maximum(h + bf1_ref[...], 0.0)                   # (TB, 128)
    h2 = jnp.maximum(mm(h1, w2_ref[...]) + bf2_ref[...], 0.0)  # (TB, 128)
    z = mm(h2, w3_ref[...]) + bf3_ref[...]                    # (TB, 128)

    # Padded logit lanes carry bias -1e30 -> exp underflows to 0, so the
    # log_softmax over 128 lanes is exact for the real NUM_CLASSES classes.
    zmax = jnp.max(z, axis=-1, keepdims=True)
    lse = jnp.log(jnp.sum(jnp.exp(z - zmax), axis=-1, keepdims=True))
    o_ref[...] = z - zmax - lse


# ----------------------------------------------------------------------------
# Weight packing (runs ONCE, outside the jitted forward)
# ----------------------------------------------------------------------------
def pack_params(params, matmul_dtype=_MATMUL_DTYPE):
    f32 = jnp.float32

    # --- conv1: per-kh banded matrices T1k[kh, w, q*128 + j*6 + c1] ----------
    M1 = np.zeros((2, 5, 32, 14), np.float32)
    for q in range(2):
        for kw in range(5):
            for j in range(14):
                M1[q, kw, 2 * j + q + kw, j] = 1.0
    w1c = jnp.asarray(params["w_conv1"], f32)[:, 0]                  # (6, 5, 5)
    T1k = jnp.einsum("qvwj,ckv->qkwjc", jnp.asarray(M1), w1c).reshape(2, 5, 32, 84)
    T1k = jnp.pad(T1k, ((0, 0), (0, 0), (0, 0), (0, 44)))            # 84 -> 128
    T1k = T1k.transpose(1, 2, 0, 3).reshape(5, 32, 256)              # fold q

    # group the 5 height taps by (row phase t, row-group offset g, row parity p)
    T1k_np = np.asarray(T1k)
    T1g = np.zeros((4, 2, 128, 256), np.float32)
    for t in range(4):
        for g in range(2):
            for p in range(4):
                kh = 4 * g + p - t
                if 0 <= kh < 5:
                    T1g[t, g, p * 32:(p + 1) * 32, :] = T1k_np[kh]
    T1g = jnp.asarray(T1g).astype(matmul_dtype)
    b1 = jnp.pad(jnp.tile(jnp.asarray(params["b_conv1"], f32), 14),
                 (0, 44)).reshape(1, 128)

    # --- conv2 banded: T2[kh, j*6+c1, e*128 + j2*16+c2] ----------------------
    M2 = np.zeros((2, 5, 14, 5), np.float32)
    for e in range(2):
        for kw in range(5):
            for j2 in range(5):
                M2[e, kw, 2 * j2 + e + kw, j2] = 1.0
    T2 = jnp.einsum("evjy,dckv->ekjcyd", jnp.asarray(M2),
                    jnp.asarray(params["w_conv2"], f32)).reshape(2, 5, 84, 80)
    T2 = jnp.pad(T2, ((0, 0), (0, 0), (0, 44), (0, 48)))             # -> 128/128
    T2 = T2.transpose(1, 2, 0, 3).reshape(5, 128, 256).astype(matmul_dtype)
    b2 = jnp.pad(jnp.tile(jnp.asarray(params["b_conv2"], f32), 5),
                 (0, 48)).reshape(1, 128)

    # --- fc1: permute rows from PyTorch NCHW flatten (c2,i2,j2) to (i2,(j2,c2))
    W1 = jnp.asarray(params["w_fc1"], f32).reshape(120, 16, 5, 5)
    W1 = W1.transpose(2, 3, 1, 0).reshape(5, 80, 120)                # (i2,(j2,c2),o)
    W1 = jnp.pad(W1, ((0, 0), (0, 48), (0, 8))).astype(matmul_dtype)  # (5,128,128)
    bf1 = jnp.pad(jnp.asarray(params["b_fc1"], f32), (0, 8)).reshape(1, 128)

    W2 = jnp.zeros((128, 128), f32).at[:120, :84].set(
        jnp.asarray(params["w_fc2"], f32).T).astype(matmul_dtype)
    bf2 = jnp.zeros((1, 128), f32).at[:, :84].set(jnp.asarray(params["b_fc2"], f32))
    W3 = jnp.zeros((128, 128), f32).at[:84, :NUM_CLASSES].set(
        jnp.asarray(params["w_fc3"], f32).T).astype(matmul_dtype)
    bf3 = jnp.full((1, 128), -1e30, f32).at[:, :NUM_CLASSES].set(
        jnp.asarray(params["b_fc3"], f32))

    return (T1g, b1, T2, b2, W1, bf1, W2, bf2, W3, bf3)


# ----------------------------------------------------------------------------
# Forward wrapper
# ----------------------------------------------------------------------------
@jax.jit
def cnn_forward(x, kweights):
    # x: (B, 1, 32, 32) float32, NCHW (PyTorch convention)
    B = x.shape[0]
    TB = min(_TB_CAP, _round_up(B, 8))        # clamp tile for small batches
    Bpad = _round_up(B, TB)
    nb = Bpad // TB

    # Pack input to (nb*9*TB, 128): per batch-tile, 9 row-groups of 4 image
    # rows; rows = row-group major / batch minor, lanes = parity*32 + width.
    xi = x[:, 0].astype(jnp.float32)
    xi = jnp.pad(xi, ((0, Bpad - B), (0, 4), (0, 0)))          # (Bpad, 36, 32)
    xp = xi.reshape(Bpad, 9, 128)                              # [b, k, p*32+w]
    xp = xp.reshape(nb, TB, 9, 128).transpose(0, 2, 1, 3)      # [blk, k, b, lane]
    xp = xp.reshape(nb * 9 * TB, 128).astype(kweights[0].dtype)

    grid_spec = pltpu.PrefetchScalarGridSpec(
        num_scalar_prefetch=0,
        grid=(nb,),
        in_specs=[
            pl.BlockSpec((9 * TB, 128), lambda i: (i, 0)),          # x
            pl.BlockSpec((4, 2, 128, 256), lambda i: (0, 0, 0, 0)),  # conv1 w
            pl.BlockSpec((1, 128), lambda i: (0, 0)),               # conv1 b
            pl.BlockSpec((5, 128, 256), lambda i: (0, 0, 0)),       # conv2 w
            pl.BlockSpec((1, 128), lambda i: (0, 0)),               # conv2 b
            pl.BlockSpec((5, 128, 128), lambda i: (0, 0, 0)),       # fc1 w
            pl.BlockSpec((1, 128), lambda i: (0, 0)),               # fc1 b
            pl.BlockSpec((128, 128), lambda i: (0, 0)),             # fc2 w
            pl.BlockSpec((1, 128), lambda i: (0, 0)),               # fc2 b
            pl.BlockSpec((128, 128), lambda i: (0, 0)),             # fc3 w
            pl.BlockSpec((1, 128), lambda i: (0, 0)),               # fc3 b
        ],
        out_specs=pl.BlockSpec((TB, 128), lambda i: (i, 0)),
    )

    out = pl.pallas_call(
        _fused_cnn_kernel,
        out_shape=jax.ShapeDtypeStruct((Bpad, 128), jnp.float32),
        grid_spec=grid_spec,
        compiler_params=pltpu.CompilerParams(
            dimension_semantics=("parallel",),
            vmem_limit_bytes=32 * 1024 * 1024),
    )(xp, *kweights)

    return out[:B, :NUM_CLASSES]


# ----------------------------------------------------------------------------
# Pure-JAX reference (for correctness) and parameter init
# ----------------------------------------------------------------------------
def reference_forward(x, params):
    dn = ("NCHW", "OIHW", "NCHW")
    y = jax.lax.conv_general_dilated(x, params["w_conv1"], (1, 1), "VALID",
                                     dimension_numbers=dn)
    y = y + params["b_conv1"][None, :, None, None]
    y = jax.lax.reduce_window(y, -jnp.inf, jax.lax.max,
                              (1, 1, 2, 2), (1, 1, 2, 2), "VALID")
    y = jnp.maximum(y, 0.0)
    y = jax.lax.conv_general_dilated(y, params["w_conv2"], (1, 1), "VALID",
                                     dimension_numbers=dn)
    y = y + params["b_conv2"][None, :, None, None]
    y = jax.lax.reduce_window(y, -jnp.inf, jax.lax.max,
                              (1, 1, 2, 2), (1, 1, 2, 2), "VALID")
    y = jnp.maximum(y, 0.0)
    y = y.reshape(x.shape[0], 16 * 5 * 5)
    y = jnp.maximum(y @ params["w_fc1"].T + params["b_fc1"], 0.0)
    y = jnp.maximum(y @ params["w_fc2"].T + params["b_fc2"], 0.0)
    z = y @ params["w_fc3"].T + params["b_fc3"]
    return jax.nn.log_softmax(z, axis=-1)


def init_params(key):
    # PyTorch-style U(-1/sqrt(fan_in), 1/sqrt(fan_in)) init, PyTorch layouts.
    ks = jax.random.split(key, 10)

    def u(k, shape, fan_in):
        bound = 1.0 / float(np.sqrt(fan_in))
        return jax.random.uniform(k, shape, jnp.float32, -bound, bound)

    return {
        "w_conv1": u(ks[0], (6, 1, 5, 5), 25),
        "b_conv1": u(ks[1], (6,), 25),
        "w_conv2": u(ks[2], (16, 6, 5, 5), 150),
        "b_conv2": u(ks[3], (16,), 150),
        "w_fc1":   u(ks[4], (120, 400), 400),
        "b_fc1":   u(ks[5], (120,), 400),
        "w_fc2":   u(ks[6], (84, 120), 120),
        "b_fc2":   u(ks[7], (84,), 120),
        "w_fc3":   u(ks[8], (NUM_CLASSES, 84), 84),
        "b_fc3":   u(ks[9], (NUM_CLASSES,), 84),
    }


if __name__ == "__main__":
    key = jax.random.PRNGKey(0)
    k_x, k_p = jax.random.split(key)
    x = jax.random.normal(k_x, (2, 1, 32, 32), dtype=jnp.float32)
    params = init_params(k_p)
    kweights = pack_params(params)            # packed once, outside the jit

    out = jax.block_until_ready(cnn_forward(x, kweights))

    assert out.shape == (2, NUM_CLASSES), out.shape
    # log_softmax sanity: exp(out) must sum to 1 per row
    row_sums = jnp.sum(jnp.exp(out), axis=-1)
    assert jnp.allclose(row_sums, 1.0, atol=1e-4), row_sums
    # numerical check against a pure-JAX reference of the PyTorch module
    ref = jax.block_until_ready(reference_forward(x, params))
    max_err = float(jnp.max(jnp.abs(out - ref)))
    tol = 1e-3 if _MATMUL_DTYPE == jnp.float32 else 5e-2
    assert max_err < tol, f"max abs error vs reference: {max_err}"

    print("KERNEL_OK")
</pallas_src>

<mosaic_0001>
module attributes {stable_mosaic.version = 11 : i64} {
  func.func @_fused_cnn_kernel(%arg0: i32, %arg1: memref<72x128xf32, #tpu.memory_space<vmem>>, %arg2: memref<4x2x128x256xf32, #tpu.memory_space<vmem>>, %arg3: memref<1x128xf32, #tpu.memory_space<vmem>>, %arg4: memref<5x128x256xf32, #tpu.memory_space<vmem>>, %arg5: memref<1x128xf32, #tpu.memory_space<vmem>>, %arg6: memref<5x128x128xf32, #tpu.memory_space<vmem>>, %arg7: memref<1x128xf32, #tpu.memory_space<vmem>>, %arg8: memref<128x128xf32, #tpu.memory_space<vmem>>, %arg9: memref<1x128xf32, #tpu.memory_space<vmem>>, %arg10: memref<128x128xf32, #tpu.memory_space<vmem>>, %arg11: memref<1x128xf32, #tpu.memory_space<vmem>>, %arg12: memref<8x128xf32, #tpu.memory_space<vmem>>) attributes {dimension_semantics = [#tpu.dimension_semantics<parallel>], iteration_bounds = array<i64: 1>, scalar_prefetch = 0 : i64, scratch_operands = 0 : i64, tpu.core_type = #tpu.core_type<tc>, window_params = [{transform_indices = @transform_0, window_bounds = array<i64: 72, 128>}, {pipeline_mode = #tpu.pipeline_mode<synchronous>, transform_indices = @transform_1, window_bounds = array<i64: 4, 2, 128, 256>}, {pipeline_mode = #tpu.pipeline_mode<synchronous>, transform_indices = @transform_2, window_bounds = array<i64: 1, 128>}, {pipeline_mode = #tpu.pipeline_mode<synchronous>, transform_indices = @transform_3, window_bounds = array<i64: 5, 128, 256>}, {pipeline_mode = #tpu.pipeline_mode<synchronous>, transform_indices = @transform_4, window_bounds = array<i64: 1, 128>}, {pipeline_mode = #tpu.pipeline_mode<synchronous>, transform_indices = @transform_5, window_bounds = array<i64: 5, 128, 128>}, {pipeline_mode = #tpu.pipeline_mode<synchronous>, transform_indices = @transform_6, window_bounds = array<i64: 1, 128>}, {pipeline_mode = #tpu.pipeline_mode<synchronous>, transform_indices = @transform_7, window_bounds = array<i64: 128, 128>}, {pipeline_mode = #tpu.pipeline_mode<synchronous>, transform_indices = @transform_8, window_bounds = array<i64: 1, 128>}, {pipeline_mode = #tpu.pipeline_mode<synchronous>, transform_indices = @transform_9, window_bounds = array<i64: 128, 128>}, {pipeline_mode = #tpu.pipeline_mode<synchronous>, transform_indices = @transform_10, window_bounds = array<i64: 1, 128>}, {transform_indices = @transform_11, window_bounds = array<i64: 8, 128>}]} {
    %c0 = arith.constant 0 : index
    %c0_0 = arith.constant 0 : index
    %0 = vector.load %arg1[%c0, %c0_0] : memref<72x128xf32, #tpu.memory_space<vmem>>, vector<72x128xf32>
    %1 = vector.extract_strided_slice %0 {offsets = [0, 0], sizes = [64, 128], strides = [1, 1]} : vector<72x128xf32> to vector<64x128xf32>
    %2 = vector.extract_strided_slice %0 {offsets = [8, 0], sizes = [64, 128], strides = [1, 1]} : vector<72x128xf32> to vector<64x128xf32>
    %c0_1 = arith.constant 0 : index
    %c0_2 = arith.constant 0 : index
    %3 = vector.load %arg3[%c0_1, %c0_2] : memref<1x128xf32, #tpu.memory_space<vmem>>, vector<1x128xf32>
    %c0_3 = arith.constant 0 : index
    %c0_4 = arith.constant 0 : index
    %c0_5 = arith.constant 0 : index
    %c0_6 = arith.constant 0 : index
    %4 = vector.load %arg2[%c0_3, %c0_4, %c0_5, %c0_6] : memref<4x2x128x256xf32, #tpu.memory_space<vmem>>, vector<1x1x128x256xf32>
    %5 = vector.shape_cast %4 : vector<1x1x128x256xf32> to vector<128x256xf32>
    %cst = arith.constant dense<0.000000e+00> : vector<64x256xf32>
    %6 = tpu.matmul %1, %5, %cst {dimension_numbers = #tpu.dot_dimension_numbers<[1], [0], [0], [1], [0, 0, 1, 1], [], []>} : vector<64x128xf32>, vector<128x256xf32>, vector<64x256xf32> -> vector<64x256xf32>
    %c0_7 = arith.constant 0 : index
    %c1 = arith.constant 1 : index
    %c0_8 = arith.constant 0 : index
    %c0_9 = arith.constant 0 : index
    %7 = vector.load %arg2[%c0_7, %c1, %c0_8, %c0_9] : memref<4x2x128x256xf32, #tpu.memory_space<vmem>>, vector<1x1x128x256xf32>
    %8 = vector.shape_cast %7 : vector<1x1x128x256xf32> to vector<128x256xf32>
    %cst_10 = arith.constant dense<0.000000e+00> : vector<64x256xf32>
    %9 = tpu.matmul %2, %8, %cst_10 {dimension_numbers = #tpu.dot_dimension_numbers<[1], [0], [0], [1], [0, 0, 1, 1], [], []>} : vector<64x128xf32>, vector<128x256xf32>, vector<64x256xf32> -> vector<64x256xf32>
    %10 = arith.addf %6, %9 : vector<64x256xf32>
    %11 = vector.extract_strided_slice %10 {offsets = [0, 0], sizes = [64, 128], strides = [1, 1]} : vector<64x256xf32> to vector<64x128xf32>
    %12 = vector.extract_strided_slice %10 {offsets = [0, 128], sizes = [64, 128], strides = [1, 1]} : vector<64x256xf32> to vector<64x128xf32>
    %13 = arith.maximumf %11, %12 : vector<64x128xf32>
    %c1_11 = arith.constant 1 : index
    %c0_12 = arith.constant 0 : index
    %c0_13 = arith.constant 0 : index
    %c0_14 = arith.constant 0 : index
    %14 = vector.load %arg2[%c1_11, %c0_12, %c0_13, %c0_14] : memref<4x2x128x256xf32, #tpu.memory_space<vmem>>, vector<1x1x128x256xf32>
    %15 = vector.shape_cast %14 : vector<1x1x128x256xf32> to vector<128x256xf32>
    %cst_15 = arith.constant dense<0.000000e+00> : vector<64x256xf32>
    %16 = tpu.matmul %1, %15, %cst_15 {dimension_numbers = #tpu.dot_dimension_numbers<[1], [0], [0], [1], [0, 0, 1, 1], [], []>} : vector<64x128xf32>, vector<128x256xf32>, vector<64x256xf32> -> vector<64x256xf32>
    %c1_16 = arith.constant 1 : index
    %c1_17 = arith.constant 1 : index
    %c0_18 = arith.constant 0 : index
    %c0_19 = arith.constant 0 : index
    %17 = vector.load %arg2[%c1_16, %c1_17, %c0_18, %c0_19] : memref<4x2x128x256xf32, #tpu.memory_space<vmem>>, vector<1x1x128x256xf32>
    %18 = vector.shape_cast %17 : vector<1x1x128x256xf32> to vector<128x256xf32>
    %cst_20 = arith.constant dense<0.000000e+00> : vector<64x256xf32>
    %19 = tpu.matmul %2, %18, %cst_20 {dimension_numbers = #tpu.dot_dimension_numbers<[1], [0], [0], [1], [0, 0, 1, 1], [], []>} : vector<64x128xf32>, vector<128x256xf32>, vector<64x256xf32> -> vector<64x256xf32>
    %20 = arith.addf %16, %19 : vector<64x256xf32>
    %21 = vector.extract_strided_slice %20 {offsets = [0, 0], sizes = [64, 128], strides = [1, 1]} : vector<64x256xf32> to vector<64x128xf32>
    %22 = vector.extract_strided_slice %20 {offsets = [0, 128], sizes = [64, 128], strides = [1, 1]} : vector<64x256xf32> to vector<64x128xf32>
    %23 = arith.maximumf %21, %22 : vector<64x128xf32>
    %24 = arith.maximumf %13, %23 : vector<64x128xf32>
    %25 = vector.broadcast %3 : vector<1x128xf32> to vector<64x128xf32>
    %26 = arith.addf %24, %25 : vector<64x128xf32>
    %cst_21 = arith.constant 0.000000e+00 : f32
    %27 = vector.broadcast %cst_21 : f32 to vector<64x128xf32>
    %28 = arith.maximumf %26, %27 : vector<64x128xf32>
    %c2 = arith.constant 2 : index
    %c0_22 = arith.constant 0 : index
    %c0_23 = arith.constant 0 : index
    %c0_24 = arith.constant 0 : index
    %29 = vector.load %arg2[%c2, %c0_22, %c0_23, %c0_24] : memref<4x2x128x256xf32, #tpu.memory_space<vmem>>, vector<1x1x128x256xf32>
    %30 = vector.shape_cast %29 : vector<1x1x128x256xf32> to vector<128x256xf32>
    %cst_25 = arith.constant dense<0.000000e+00> : vector<64x256xf32>
    %31 = tpu.matmul %1, %30, %cst_25 {dimension_numbers = #tpu.dot_dimension_numbers<[1], [0], [0], [1], [0, 0, 1, 1], [], []>} : vector<64x128xf32>, vector<128x256xf32>, vector<64x256xf32> -> vector<64x256xf32>
    %c2_26 = arith.constant 2 : index
    %c1_27 = arith.constant 1 : index
    %c0_28 = arith.constant 0 : index
    %c0_29 = arith.constant 0 : index
    %32 = vector.load %arg2[%c2_26, %c1_27, %c0_28, %c0_29] : memref<4x2x128x256xf32, #tpu.memory_space<vmem>>, vector<1x1x128x256xf32>
    %33 = vector.shape_cast %32 : vector<1x1x128x256xf32> to vector<128x256xf32>
    %cst_30 = arith.constant dense<0.000000e+00> : vector<64x256xf32>
    %34 = tpu.matmul %2, %33, %cst_30 {dimension_numbers = #tpu.dot_dimension_numbers<[1], [0], [0], [1], [0, 0, 1, 1], [], []>} : vector<64x128xf32>, vector<128x256xf32>, vector<64x256xf32> -> vector<64x256xf32>
    %35 = arith.addf %31, %34 : vector<64x256xf32>
    %36 = vector.extract_strided_slice %35 {offsets = [0, 0], sizes = [64, 128], strides = [1, 1]} : vector<64x256xf32> to vector<64x128xf32>
    %37 = vector.extract_strided_slice %35 {offsets = [0, 128], sizes = [64, 128], strides = [1, 1]} : vector<64x256xf32> to vector<64x128xf32>
    %38 = arith.maximumf %36, %37 : vector<64x128xf32>
    %c3 = arith.constant 3 : index
    %c0_31 = arith.constant 0 : index
    %c0_32 = arith.constant 0 : index
    %c0_33 = arith.constant 0 : index
    %39 = vector.load %arg2[%c3, %c0_31, %c0_32, %c0_33] : memref<4x2x128x256xf32, #tpu.memory_space<vmem>>, vector<1x1x128x256xf32>
    %40 = vector.shape_cast %39 : vector<1x1x128x256xf32> to vector<128x256xf32>
    %cst_34 = arith.constant dense<0.000000e+00> : vector<64x256xf32>
    %41 = tpu.matmul %1, %40, %cst_34 {dimension_numbers = #tpu.dot_dimension_numbers<[1], [0], [0], [1], [0, 0, 1, 1], [], []>} : vector<64x128xf32>, vector<128x256xf32>, vector<64x256xf32> -> vector<64x256xf32>
    %c3_35 = arith.constant 3 : index
    %c1_36 = arith.constant 1 : index
    %c0_37 = arith.constant 0 : index
    %c0_38 = arith.constant 0 : index
    %42 = vector.load %arg2[%c3_35, %c1_36, %c0_37, %c0_38] : memref<4x2x128x256xf32, #tpu.memory_space<vmem>>, vector<1x1x128x256xf32>
    %43 = vector.shape_cast %42 : vector<1x1x128x256xf32> to vector<128x256xf32>
    %cst_39 = arith.constant dense<0.000000e+00> : vector<64x256xf32>
    %44 = tpu.matmul %2, %43, %cst_39 {dimension_numbers = #tpu.dot_dimension_numbers<[1], [0], [0], [1], [0, 0, 1, 1], [], []>} : vector<64x128xf32>, vector<128x256xf32>, vector<64x256xf32> -> vector<64x256xf32>
    %45 = arith.addf %41, %44 : vector<64x256xf32>
    %46 = vector.extract_strided_slice %45 {offsets = [0, 0], sizes = [64, 128], strides = [1, 1]} : vector<64x256xf32> to vector<64x128xf32>
    %47 = vector.extract_strided_slice %45 {offsets = [0, 128], sizes = [64, 128], strides = [1, 1]} : vector<64x256xf32> to vector<64x128xf32>
    %48 = arith.maximumf %46, %47 : vector<64x128xf32>
    %49 = arith.maximumf %38, %48 : vector<64x128xf32>
    %50 = vector.broadcast %3 : vector<1x128xf32> to vector<64x128xf32>
    %51 = arith.addf %49, %50 : vector<64x128xf32>
    %cst_40 = arith.constant 0.000000e+00 : f32
    %52 = vector.broadcast %cst_40 : f32 to vector<64x128xf32>
    %53 = arith.maximumf %51, %52 : vector<64x128xf32>
    %c0_41 = arith.constant 0 : index
    %c0_42 = arith.constant 0 : index
    %54 = vector.load %arg5[%c0_41, %c0_42] : memref<1x128xf32, #tpu.memory_space<vmem>>, vector<1x128xf32>
    %55 = vector.extract_strided_slice %28 {offsets = [0, 0], sizes = [40, 128], strides = [1, 1]} : vector<64x128xf32> to vector<40x128xf32>
    %c0_43 = arith.constant 0 : index
    %c0_44 = arith.constant 0 : index
    %c0_45 = arith.constant 0 : index
    %56 = vector.load %arg4[%c0_43, %c0_44, %c0_45] : memref<5x128x256xf32, #tpu.memory_space<vmem>>, vector<1x128x256xf32>
    %57 = vector.shape_cast %56 : vector<1x128x256xf32> to vector<128x256xf32>
    %cst_46 = arith.constant dense<0.000000e+00> : vector<40x256xf32>
    %58 = tpu.matmul %55, %57, %cst_46 {dimension_numbers = #tpu.dot_dimension_numbers<[1], [0], [0], [1], [0, 0, 1, 1], [], []>} : vector<40x128xf32>, vector<128x256xf32>, vector<40x256xf32> -> vector<40x256xf32>
    %59 = vector.extract_strided_slice %53 {offsets = [0, 0], sizes = [40, 128], strides = [1, 1]} : vector<64x128xf32> to vector<40x128xf32>
    %c1_47 = arith.constant 1 : index
    %c0_48 = arith.constant 0 : index
    %c0_49 = arith.constant 0 : index
    %60 = vector.load %arg4[%c1_47, %c0_48, %c0_49] : memref<5x128x256xf32, #tpu.memory_space<vmem>>, vector<1x128x256xf32>
    %61 = vector.shape_cast %60 : vector<1x128x256xf32> to vector<128x256xf32>
    %cst_50 = arith.constant dense<0.000000e+00> : vector<40x256xf32>
    %62 = tpu.matmul %59, %61, %cst_50 {dimension_numbers = #tpu.dot_dimension_numbers<[1], [0], [0], [1], [0, 0, 1, 1], [], []>} : vector<40x128xf32>, vector<128x256xf32>, vector<40x256xf32> -> vector<40x256xf32>
    %63 = arith.addf %58, %62 : vector<40x256xf32>
    %64 = vector.extract_strided_slice %28 {offsets = [8, 0], sizes = [40, 128], strides = [1, 1]} : vector<64x128xf32> to vector<40x128xf32>
    %c2_51 = arith.constant 2 : index
    %c0_52 = arith.constant 0 : index
    %c0_53 = arith.constant 0 : index
    %65 = vector.load %arg4[%c2_51, %c0_52, %c0_53] : memref<5x128x256xf32, #tpu.memory_space<vmem>>, vector<1x128x256xf32>
    %66 = vector.shape_cast %65 : vector<1x128x256xf32> to vector<128x256xf32>
    %cst_54 = arith.constant dense<0.000000e+00> : vector<40x256xf32>
    %67 = tpu.matmul %64, %66, %cst_54 {dimension_numbers = #tpu.dot_dimension_numbers<[1], [0], [0], [1], [0, 0, 1, 1], [], []>} : vector<40x128xf32>, vector<128x256xf32>, vector<40x256xf32> -> vector<40x256xf32>
    %68 = arith.addf %63, %67 : vector<40x256xf32>
    %69 = vector.extract_strided_slice %53 {offsets = [8, 0], sizes = [40, 128], strides = [1, 1]} : vector<64x128xf32> to vector<40x128xf32>
    %c3_55 = arith.constant 3 : index
    %c0_56 = arith.constant 0 : index
    %c0_57 = arith.constant 0 : index
    %70 = vector.load %arg4[%c3_55, %c0_56, %c0_57] : memref<5x128x256xf32, #tpu.memory_space<vmem>>, vector<1x128x256xf32>
    %71 = vector.shape_cast %70 : vector<1x128x256xf32> to vector<128x256xf32>
    %cst_58 = arith.constant dense<0.000000e+00> : vector<40x256xf32>
    %72 = tpu.matmul %69, %71, %cst_58 {dimension_numbers = #tpu.dot_dimension_numbers<[1], [0], [0], [1], [0, 0, 1, 1], [], []>} : vector<40x128xf32>, vector<128x256xf32>, vector<40x256xf32> -> vector<40x256xf32>
    %73 = arith.addf %68, %72 : vector<40x256xf32>
    %74 = vector.extract_strided_slice %28 {offsets = [16, 0], sizes = [40, 128], strides = [1, 1]} : vector<64x128xf32> to vector<40x128xf32>
    %c4 = arith.constant 4 : index
    %c0_59 = arith.constant 0 : index
    %c0_60 = arith.constant 0 : index
    %75 = vector.load %arg4[%c4, %c0_59, %c0_60] : memref<5x128x256xf32, #tpu.memory_space<vmem>>, vector<1x128x256xf32>
    %76 = vector.shape_cast %75 : vector<1x128x256xf32> to vector<128x256xf32>
    %cst_61 = arith.constant dense<0.000000e+00> : vector<40x256xf32>
    %77 = tpu.matmul %74, %76, %cst_61 {dimension_numbers = #tpu.dot_dimension_numbers<[1], [0], [0], [1], [0, 0, 1, 1], [], []>} : vector<40x128xf32>, vector<128x256xf32>, vector<40x256xf32> -> vector<40x256xf32>
    %78 = arith.addf %73, %77 : vector<40x256xf32>
    %79 = vector.extract_strided_slice %78 {offsets = [0, 0], sizes = [40, 128], strides = [1, 1]} : vector<40x256xf32> to vector<40x128xf32>
    %80 = vector.extract_strided_slice %78 {offsets = [0, 128], sizes = [40, 128], strides = [1, 1]} : vector<40x256xf32> to vector<40x128xf32>
    %81 = arith.maximumf %79, %80 : vector<40x128xf32>
    %82 = vector.extract_strided_slice %53 {offsets = [0, 0], sizes = [40, 128], strides = [1, 1]} : vector<64x128xf32> to vector<40x128xf32>
    %c0_62 = arith.constant 0 : index
    %c0_63 = arith.constant 0 : index
    %c0_64 = arith.constant 0 : index
    %83 = vector.load %arg4[%c0_62, %c0_63, %c0_64] : memref<5x128x256xf32, #tpu.memory_space<vmem>>, vector<1x128x256xf32>
    %84 = vector.shape_cast %83 : vector<1x128x256xf32> to vector<128x256xf32>
    %cst_65 = arith.constant dense<0.000000e+00> : vector<40x256xf32>
    %85 = tpu.matmul %82, %84, %cst_65 {dimension_numbers = #tpu.dot_dimension_numbers<[1], [0], [0], [1], [0, 0, 1, 1], [], []>} : vector<40x128xf32>, vector<128x256xf32>, vector<40x256xf32> -> vector<40x256xf32>
    %86 = vector.extract_strided_slice %28 {offsets = [8, 0], sizes = [40, 128], strides = [1, 1]} : vector<64x128xf32> to vector<40x128xf32>
    %c1_66 = arith.constant 1 : index
    %c0_67 = arith.constant 0 : index
    %c0_68 = arith.constant 0 : index
    %87 = vector.load %arg4[%c1_66, %c0_67, %c0_68] : memref<5x128x256xf32, #tpu.memory_space<vmem>>, vector<1x128x256xf32>
    %88 = vector.shape_cast %87 : vector<1x128x256xf32> to vector<128x256xf32>
    %cst_69 = arith.constant dense<0.000000e+00> : vector<40x256xf32>
    %89 = tpu.matmul %86, %88, %cst_69 {dimension_numbers = #tpu.dot_dimension_numbers<[1], [0], [0], [1], [0, 0, 1, 1], [], []>} : vector<40x128xf32>, vector<128x256xf32>, vector<40x256xf32> -> vector<40x256xf32>
    %90 = arith.addf %85, %89 : vector<40x256xf32>
    %91 = vector.extract_strided_slice %53 {offsets = [8, 0], sizes = [40, 128], strides = [1, 1]} : vector<64x128xf32> to vector<40x128xf32>
    %c2_70 = arith.constant 2 : index
    %c0_71 = arith.constant 0 : index
    %c0_72 = arith.constant 0 : index
    %92 = vector.load %arg4[%c2_70, %c0_71, %c0_72] : memref<5x128x256xf32, #tpu.memory_space<vmem>>, vector<1x128x256xf32>
    %93 = vector.shape_cast %92 : vector<1x128x256xf32> to vector<128x256xf32>
    %cst_73 = arith.constant dense<0.000000e+00> : vector<40x256xf32>
    %94 = tpu.matmul %91, %93, %cst_73 {dimension_numbers = #tpu.dot_dimension_numbers<[1], [0], [0], [1], [0, 0, 1, 1], [], []>} : vector<40x128xf32>, vector<128x256xf32>, vector<40x256xf32> -> vector<40x256xf32>
    %95 = arith.addf %90, %94 : vector<40x256xf32>
    %96 = vector.extract_strided_slice %28 {offsets = [16, 0], sizes = [40, 128], strides = [1, 1]} : vector<64x128xf32> to vector<40x128xf32>
    %c3_74 = arith.constant 3 : index
    %c0_75 = arith.constant 0 : index
    %c0_76 = arith.constant 0 : index
    %97 = vector.load %arg4[%c3_74, %c0_75, %c0_76] : memref<5x128x256xf32, #tpu.memory_space<vmem>>, vector<1x128x256xf32>
    %98 = vector.shape_cast %97 : vector<1x128x256xf32> to vector<128x256xf32>
    %cst_77 = arith.constant dense<0.000000e+00> : vector<40x256xf32>
    %99 = tpu.matmul %96, %98, %cst_77 {dimension_numbers = #tpu.dot_dimension_numbers<[1], [0], [0], [1], [0, 0, 1, 1], [], []>} : vector<40x128xf32>, vector<128x256xf32>, vector<40x256xf32> -> vector<40x256xf32>
    %100 = arith.addf %95, %99 : vector<40x256xf32>
    %101 = vector.extract_strided_slice %53 {offsets = [16, 0], sizes = [40, 128], strides = [1, 1]} : vector<64x128xf32> to vector<40x128xf32>
    %c4_78 = arith.constant 4 : index
    %c0_79 = arith.constant 0 : index
    %c0_80 = arith.constant 0 : index
    %102 = vector.load %arg4[%c4_78, %c0_79, %c0_80] : memref<5x128x256xf32, #tpu.memory_space<vmem>>, vector<1x128x256xf32>
    %103 = vector.shape_cast %102 : vector<1x128x256xf32> to vector<128x256xf32>
    %cst_81 = arith.constant dense<0.000000e+00> : vector<40x256xf32>
    %104 = tpu.matmul %101, %103, %cst_81 {dimension_numbers = #tpu.dot_dimension_numbers<[1], [0], [0], [1], [0, 0, 1, 1], [], []>} : vector<40x128xf32>, vector<128x256xf32>, vector<40x256xf32> -> vector<40x256xf32>
    %105 = arith.addf %100, %104 : vector<40x256xf32>
    %106 = vector.extract_strided_slice %105 {offsets = [0, 0], sizes = [40, 128], strides = [1, 1]} : vector<40x256xf32> to vector<40x128xf32>
    %107 = vector.extract_strided_slice %105 {offsets = [0, 128], sizes = [40, 128], strides = [1, 1]} : vector<40x256xf32> to vector<40x128xf32>
    %108 = arith.maximumf %106, %107 : vector<40x128xf32>
    %109 = arith.maximumf %81, %108 : vector<40x128xf32>
    %110 = vector.broadcast %54 : vector<1x128xf32> to vector<40x128xf32>
    %111 = arith.addf %109, %110 : vector<40x128xf32>
    %cst_82 = arith.constant 0.000000e+00 : f32
    %112 = vector.broadcast %cst_82 : f32 to vector<40x128xf32>
    %113 = arith.maximumf %111, %112 : vector<40x128xf32>
    %114 = vector.extract_strided_slice %113 {offsets = [0, 0], sizes = [8, 128], strides = [1, 1]} : vector<40x128xf32> to vector<8x128xf32>
    %c0_83 = arith.constant 0 : index
    %c0_84 = arith.constant 0 : index
    %c0_85 = arith.constant 0 : index
    %115 = vector.load %arg6[%c0_83, %c0_84, %c0_85] : memref<5x128x128xf32, #tpu.memory_space<vmem>>, vector<1x128x128xf32>
    %116 = vector.shape_cast %115 : vector<1x128x128xf32> to vector<128x128xf32>
    %cst_86 = arith.constant dense<0.000000e+00> : vector<8x128xf32>
    %117 = tpu.matmul %114, %116, %cst_86 {dimension_numbers = #tpu.dot_dimension_numbers<[1], [0], [0], [1], [0, 0, 1, 1], [], []>} : vector<8x128xf32>, vector<128x128xf32>, vector<8x128xf32> -> vector<8x128xf32>
    %118 = vector.extract_strided_slice %113 {offsets = [8, 0], sizes = [8, 128], strides = [1, 1]} : vector<40x128xf32> to vector<8x128xf32>
    %c1_87 = arith.constant 1 : index
    %c0_88 = arith.constant 0 : index
    %c0_89 = arith.constant 0 : index
    %119 = vector.load %arg6[%c1_87, %c0_88, %c0_89] : memref<5x128x128xf32, #tpu.memory_space<vmem>>, vector<1x128x128xf32>
    %120 = vector.shape_cast %119 : vector<1x128x128xf32> to vector<128x128xf32>
    %cst_90 = arith.constant dense<0.000000e+00> : vector<8x128xf32>
    %121 = tpu.matmul %118, %120, %cst_90 {dimension_numbers = #tpu.dot_dimension_numbers<[1], [0], [0], [1], [0, 0, 1, 1], [], []>} : vector<8x128xf32>, vector<128x128xf32>, vector<8x128xf32> -> vector<8x128xf32>
    %122 = arith.addf %117, %121 : vector<8x128xf32>
    %123 = vector.extract_strided_slice %113 {offsets = [16, 0], sizes = [8, 128], strides = [1, 1]} : vector<40x128xf32> to vector<8x128xf32>
    %c2_91 = arith.constant 2 : index
    %c0_92 = arith.constant 0 : index
    %c0_93 = arith.constant 0 : index
    %124 = vector.load %arg6[%c2_91, %c0_92, %c0_93] : memref<5x128x128xf32, #tpu.memory_space<vmem>>, vector<1x128x128xf32>
    %125 = vector.shape_cast %124 : vector<1x128x128xf32> to vector<128x128xf32>
    %cst_94 = arith.constant dense<0.000000e+00> : vector<8x128xf32>
    %126 = tpu.matmul %123, %125, %cst_94 {dimension_numbers = #tpu.dot_dimension_numbers<[1], [0], [0], [1], [0, 0, 1, 1], [], []>} : vector<8x128xf32>, vector<128x128xf32>, vector<8x128xf32> -> vector<8x128xf32>
    %127 = arith.addf %122, %126 : vector<8x128xf32>
    %128 = vector.extract_strided_slice %113 {offsets = [24, 0], sizes = [8, 128], strides = [1, 1]} : vector<40x128xf32> to vector<8x128xf32>
    %c3_95 = arith.constant 3 : index
    %c0_96 = arith.constant 0 : index
    %c0_97 = arith.constant 0 : index
    %129 = vector.load %arg6[%c3_95, %c0_96, %c0_97] : memref<5x128x128xf32, #tpu.memory_space<vmem>>, vector<1x128x128xf32>
    %130 = vector.shape_cast %129 : vector<1x128x128xf32> to vector<128x128xf32>
    %cst_98 = arith.constant dense<0.000000e+00> : vector<8x128xf32>
    %131 = tpu.matmul %128, %130, %cst_98 {dimension_numbers = #tpu.dot_dimension_numbers<[1], [0], [0], [1], [0, 0, 1, 1], [], []>} : vector<8x128xf32>, vector<128x128xf32>, vector<8x128xf32> -> vector<8x128xf32>
    %132 = arith.addf %127, %131 : vector<8x128xf32>
    %133 = vector.extract_strided_slice %113 {offsets = [32, 0], sizes = [8, 128], strides = [1, 1]} : vector<40x128xf32> to vector<8x128xf32>
    %c4_99 = arith.constant 4 : index
    %c0_100 = arith.constant 0 : index
    %c0_101 = arith.constant 0 : index
    %134 = vector.load %arg6[%c4_99, %c0_100, %c0_101] : memref<5x128x128xf32, #tpu.memory_space<vmem>>, vector<1x128x128xf32>
    %135 = vector.shape_cast %134 : vector<1x128x128xf32> to vector<128x128xf32>
    %cst_102 = arith.constant dense<0.000000e+00> : vector<8x128xf32>
    %136 = tpu.matmul %133, %135, %cst_102 {dimension_numbers = #tpu.dot_dimension_numbers<[1], [0], [0], [1], [0, 0, 1, 1], [], []>} : vector<8x128xf32>, vector<128x128xf32>, vector<8x128xf32> -> vector<8x128xf32>
    %137 = arith.addf %132, %136 : vector<8x128xf32>
    %c0_103 = arith.constant 0 : index
    %c0_104 = arith.constant 0 : index
    %138 = vector.load %arg7[%c0_103, %c0_104] : memref<1x128xf32, #tpu.memory_space<vmem>>, vector<1x128xf32>
    %139 = vector.broadcast %138 : vector<1x128xf32> to vector<8x128xf32>
    %140 = arith.addf %137, %139 : vector<8x128xf32>
    %cst_105 = arith.constant 0.000000e+00 : f32
    %141 = vector.broadcast %cst_105 : f32 to vector<8x128xf32>
    %142 = arith.maximumf %140, %141 : vector<8x128xf32>
    %c0_106 = arith.constant 0 : index
    %c0_107 = arith.constant 0 : index
    %143 = vector.load %arg8[%c0_106, %c0_107] : memref<128x128xf32, #tpu.memory_space<vmem>>, vector<128x128xf32>
    %cst_108 = arith.constant dense<0.000000e+00> : vector<8x128xf32>
    %144 = tpu.matmul %142, %143, %cst_108 {dimension_numbers = #tpu.dot_dimension_numbers<[1], [0], [0], [1], [0, 0, 1, 1], [], []>} : vector<8x128xf32>, vector<128x128xf32>, vector<8x128xf32> -> vector<8x128xf32>
    %c0_109 = arith.constant 0 : index
    %c0_110 = arith.constant 0 : index
    %145 = vector.load %arg9[%c0_109, %c0_110] : memref<1x128xf32, #tpu.memory_space<vmem>>, vector<1x128xf32>
    %146 = vector.broadcast %145 : vector<1x128xf32> to vector<8x128xf32>
    %147 = arith.addf %144, %146 : vector<8x128xf32>
    %cst_111 = arith.constant 0.000000e+00 : f32
    %148 = vector.broadcast %cst_111 : f32 to vector<8x128xf32>
    %149 = arith.maximumf %147, %148 : vector<8x128xf32>
    %c0_112 = arith.constant 0 : index
    %c0_113 = arith.constant 0 : index
    %150 = vector.load %arg10[%c0_112, %c0_113] : memref<128x128xf32, #tpu.memory_space<vmem>>, vector<128x128xf32>
    %cst_114 = arith.constant dense<0.000000e+00> : vector<8x128xf32>
    %151 = tpu.matmul %149, %150, %cst_114 {dimension_numbers = #tpu.dot_dimension_numbers<[1], [0], [0], [1], [0, 0, 1, 1], [], []>} : vector<8x128xf32>, vector<128x128xf32>, vector<8x128xf32> -> vector<8x128xf32>
    %c0_115 = arith.constant 0 : index
    %c0_116 = arith.constant 0 : index
    %152 = vector.load %arg11[%c0_115, %c0_116] : memref<1x128xf32, #tpu.memory_space<vmem>>, vector<1x128xf32>
    %153 = vector.broadcast %152 : vector<1x128xf32> to vector<8x128xf32>
    %154 = arith.addf %151, %153 : vector<8x128xf32>
    %cst_117 = arith.constant dense<0xFF800000> : vector<8xf32>
    %155 = vector.multi_reduction <maximumf>, %154, %cst_117 [1] : vector<8x128xf32> to vector<8xf32>
    %156 = vector.shape_cast %155 : vector<8xf32> to vector<8x1xf32>
    %157 = vector.broadcast %156 : vector<8x1xf32> to vector<8x128xf32>
    %158 = arith.subf %154, %157 : vector<8x128xf32>
    %159 = math.exp %158 : vector<8x128xf32>
    %cst_118 = arith.constant dense<0.000000e+00> : vector<8xf32>
    %160 = vector.multi_reduction <add>, %159, %cst_118 [1] : vector<8x128xf32> to vector<8xf32>
    %161 = vector.shape_cast %160 : vector<8xf32> to vector<8x1xf32>
    %162 = math.log %161 : vector<8x1xf32>
    %163 = vector.broadcast %156 : vector<8x1xf32> to vector<8x128xf32>
    %164 = arith.subf %154, %163 : vector<8x128xf32>
    %165 = vector.broadcast %162 : vector<8x1xf32> to vector<8x128xf32>
    %166 = arith.subf %164, %165 : vector<8x128xf32>
    %c0_119 = arith.constant 0 : index
    %c0_120 = arith.constant 0 : index
    %167 = vector.load %arg12[%c0_119, %c0_120] : memref<8x128xf32, #tpu.memory_space<vmem>>, vector<8x128xf32>
    tpu.vector_store %arg12[%c0_119, %c0_120], %166 {strides = array<i32>} : memref<8x128xf32, #tpu.memory_space<vmem>>, vector<8x128xf32>,
    return
  }
  func.func @transform_0(%arg0: i32) -> (i32, i32) {
    %c0_i32 = arith.constant 0 : i32
    %c0_i32_0 = arith.constant 0 : i32
    return %arg0, %c0_i32 : i32, i32
  }
  func.func @transform_1(%arg0: i32) -> (i32, i32, i32, i32) {
    %c0_i32 = arith.constant 0 : i32
    %c0_i32_0 = arith.constant 0 : i32
    %c0_i32_1 = arith.constant 0 : i32
    %c0_i32_2 = arith.constant 0 : i32
    %c0_i32_3 = arith.constant 0 : i32
    return %c0_i32, %c0_i32_0, %c0_i32_1, %c0_i32_2 : i32, i32, i32, i32
  }
  func.func @transform_2(%arg0: i32) -> (i32, i32) {
    %c0_i32 = arith.constant 0 : i32
    %c0_i32_0 = arith.constant 0 : i32
    %c0_i32_1 = arith.constant 0 : i32
    return %c0_i32, %c0_i32_0 : i32, i32
  }
  func.func @transform_3(%arg0: i32) -> (i32, i32, i32) {
    %c0_i32 = arith.constant 0 : i32
    %c0_i32_0 = arith.constant 0 : i32
    %c0_i32_1 = arith.constant 0 : i32
    %c0_i32_2 = arith.constant 0 : i32
    return %c0_i32, %c0_i32_0, %c0_i32_1 : i32, i32, i32
  }
  func.func @transform_4(%arg0: i32) -> (i32, i32) {
    %c0_i32 = arith.constant 0 : i32
    %c0_i32_0 = arith.constant 0 : i32
    %c0_i32_1 = arith.constant 0 : i32
    return %c0_i32, %c0_i32_0 : i32, i32
  }
  func.func @transform_5(%arg0: i32) -> (i32, i32, i32) {
    %c0_i32 = arith.constant 0 : i32
    %c0_i32_0 = arith.constant 0 : i32
    %c0_i32_1 = arith.constant 0 : i32
    %c0_i32_2 = arith.constant 0 : i32
    return %c0_i32, %c0_i32_0, %c0_i32_1 : i32, i32, i32
  }
  func.func @transform_6(%arg0: i32) -> (i32, i32) {
    %c0_i32 = arith.constant 0 : i32
    %c0_i32_0 = arith.constant 0 : i32
    %c0_i32_1 = arith.constant 0 : i32
    return %c0_i32, %c0_i32_0 : i32, i32
  }
  func.func @transform_7(%arg0: i32) -> (i32, i32) {
    %c0_i32 = arith.constant 0 : i32
    %c0_i32_0 = arith.constant 0 : i32
    %c0_i32_1 = arith.constant 0 : i32
    return %c0_i32, %c0_i32_0 : i32, i32
  }
  func.func @transform_8(%arg0: i32) -> (i32, i32) {
    %c0_i32 = arith.constant 0 : i32
    %c0_i32_0 = arith.constant 0 : i32
    %c0_i32_1 = arith.constant 0 : i32
    return %c0_i32, %c0_i32_0 : i32, i32
  }
  func.func @transform_9(%arg0: i32) -> (i32, i32) {
    %c0_i32 = arith.constant 0 : i32
    %c0_i32_0 = arith.constant 0 : i32
    %c0_i32_1 = arith.constant 0 : i32
    return %c0_i32, %c0_i32_0 : i32, i32
  }
  func.func @transform_10(%arg0: i32) -> (i32, i32) {
    %c0_i32 = arith.constant 0 : i32
    %c0_i32_0 = arith.constant 0 : i32
    %c0_i32_1 = arith.constant 0 : i32
    return %c0_i32, %c0_i32_0 : i32, i32
  }
  func.func @transform_11(%arg0: i32) -> (i32, i32) {
    %c0_i32 = arith.constant 0 : i32
    %c0_i32_0 = arith.constant 0 : i32
    return %arg0, %c0_i32 : i32, i32
  }
}

</mosaic_0001>

<llo_original>
// kernel: cnn_forward.1
$region0: #{cnn_forward.1}
  #allocation0 [shape = 'u32[]', space=smem, size = 0x4, offset = 0x4, fixed_abs, tag = 'smem constant byte address 0x4 - core index']
  #allocation1 [shape = 'u32[144,128]{1,0:T(1,128)}', space=vmem, size = 0x12000, scoped, tag = 'internal scratch']
  %s0 = inlined_call_operand.vmem [shape: f32[72,128], index: 0, kind: input, shape index: {}]
  %s1 = inlined_call_operand.hbm [shape: f32[4,2,128,256], index: 1, kind: input, shape index: {}]
  %s2 = inlined_call_operand.vmem [shape: f32[1,128], index: 2, kind: input, shape index: {}]
  %s3 = inlined_call_operand.hbm [shape: f32[5,128,256], index: 3, kind: input, shape index: {}]
  %s4 = inlined_call_operand.vmem [shape: f32[1,128], index: 4, kind: input, shape index: {}]
  %s5 = inlined_call_operand.vmem [shape: f32[5,128,128], index: 5, kind: input, shape index: {}]
  %s6 = inlined_call_operand.vmem [shape: f32[1,128], index: 6, kind: input, shape index: {}]
  %s7 = inlined_call_operand.vmem [shape: f32[128,128], index: 7, kind: input, shape index: {}]
  %s8 = inlined_call_operand.vmem [shape: f32[1,128], index: 8, kind: input, shape index: {}]
  %s9 = inlined_call_operand.vmem [shape: f32[128,128], index: 9, kind: input, shape index: {}]
  %s10 = inlined_call_operand.vmem [shape: f32[1,128], index: 10, kind: input, shape index: {}]
  %s11 = inlined_call_operand.vmem [shape: f32[8,128], index: 11, kind: output, shape index: {}]
  %s12 = sld [smem:[#allocation0]]
  $region62: #{cnn_forward.1} parent=0
    _
  %s14 = ssub.s32 1, %s12
  %s15 = scalar_select 0, %s14, %s12
  $region1: #{cnn_forward.1} parent=0
    #allocation2 [shape = 'u8[1048576]{0}', space=vmem, size = 0x100000, scoped, tag = 'input window, operand 1, single buffered']
    #allocation3 [shape = 's32[1]{0}', space=sflag, size = 0x4, scoped, tag = 'scoped memory for cnn_forward.1']
    #allocation4 [shape = 'u8[655360]{0}', space=vmem, size = 0xa0000, scoped, tag = 'input window, operand 3, single buffered']
    #allocation5 [shape = 's32[1]{0}', space=sflag, size = 0x4, scoped, tag = 'scoped memory for cnn_forward.1']
    %16 = vsyncpa [#allocation3], 0
    %17 = vsyncpa [#allocation5], 0
    // Predicated region
    $region2: #{cnn_forward.1} parent=1 // pred_check
      _
    $region3: #{cnn_forward.1} parent=1 // pred_check_branch
      %19 = sbr.rel (0) target = $region5
    $region4: #{cnn_forward.1} parent=1 // pred_region
      _
    $region5: #{cnn_forward.1} parent=1 // pred_fallthru
      _
    // Predicated region
    $region6: #{cnn_forward.1} parent=1 // pred_check
      _
    $region7: #{cnn_forward.1} parent=1 // pred_check_branch
      %21 = sbr.rel (0) target = $region9
    $region8: #{cnn_forward.1} parent=1 // pred_region
      %s23 = ssub.s32 32768, 32768
      %24 = vsyncadd [#allocation3], %s23
      %s25 = sshll.u32 [#allocation2], 4
      %s26 = int_to_ptr.vmem [resolvable:$true] %s25
      %31 = dma.hbm_to_vmem [thread:$0]  %s1, 32768, %s26, [#allocation3], 256, 256, 16
    $region9: #{cnn_forward.1} parent=1 // pred_fallthru
      _
    // Predicated region
    $region10: #{cnn_forward.1} parent=1 // pred_check
      _
    $region11: #{cnn_forward.1} parent=1 // pred_check_branch
      %33 = sbr.rel (0) target = $region13
    $region12: #{cnn_forward.1} parent=1 // pred_region
      _
    $region13: #{cnn_forward.1} parent=1 // pred_fallthru
      _
    // Predicated region
    $region14: #{cnn_forward.1} parent=1 // pred_check
      _
    $region15: #{cnn_forward.1} parent=1 // pred_check_branch
      %35 = sbr.rel (0) target = $region17
    $region16: #{cnn_forward.1} parent=1 // pred_region
      %s37 = ssub.s32 20480, 20480
      %38 = vsyncadd [#allocation5], %s37
      %s39 = sshll.u32 [#allocation4], 4
      %s40 = int_to_ptr.vmem [resolvable:$true] %s39
      %45 = dma.hbm_to_vmem [thread:$0]  %s3, 20480, %s40, [#allocation5], 256, 256, 16
    $region17: #{cnn_forward.1} parent=1 // pred_fallthru
      _
    // Predicated region
    $region18: #{cnn_forward.1} parent=1 // pred_check
      _
    $region19: #{cnn_forward.1} parent=1 // pred_check_branch
      %47 = sbr.rel (0) target = $region21
    $region20: #{cnn_forward.1} parent=1 // pred_region
      _
    $region21: #{cnn_forward.1} parent=1 // pred_fallthru
      _
    // Predicated region
    $region22: #{cnn_forward.1} parent=1 // pred_check
      _
    $region23: #{cnn_forward.1} parent=1 // pred_check_branch
      %49 = sbr.rel (0) target = $region25
    $region24: #{cnn_forward.1} parent=1 // pred_region
      _
    $region25: #{cnn_forward.1} parent=1 // pred_fallthru
      _
    // Predicated region
    $region26: #{cnn_forward.1} parent=1 // pred_check
      _
    $region27: #{cnn_forward.1} parent=1 // pred_check_branch
      %51 = sbr.rel (0) target = $region29
    $region28: #{cnn_forward.1} parent=1 // pred_region
      _
    $region29: #{cnn_forward.1} parent=1 // pred_fallthru
      _
    // Predicated region
    $region30: #{cnn_forward.1} parent=1 // pred_check
      _
    $region31: #{cnn_forward.1} parent=1 // pred_check_branch
      %53 = sbr.rel (0) target = $region33
    $region32: #{cnn_forward.1} parent=1 // pred_region
      _
    $region33: #{cnn_forward.1} parent=1 // pred_fallthru
      _
    // Predicated region
    $region34: #{cnn_forward.1} parent=1 // pred_check
      _
    $region35: #{cnn_forward.1} parent=1 // pred_check_branch
      %55 = sbr.rel (0) target = $region37
    $region36: #{cnn_forward.1} parent=1 // pred_region
      _
    $region37: #{cnn_forward.1} parent=1 // pred_fallthru
      _
    // Predicated region
    $region38: #{cnn_forward.1} parent=1 // pred_check
      _
    $region39: #{cnn_forward.1} parent=1 // pred_check_branch
      %57 = sbr.rel (0) target = $region41
    $region40: #{cnn_forward.1} parent=1 // pred_region
      _
    $region41: #{cnn_forward.1} parent=1 // pred_fallthru
      _
    // Predicated region
    $region42: #{cnn_forward.1} parent=1 // pred_check
      _
    $region43: #{cnn_forward.1} parent=1 // pred_check_branch
      %59 = sbr.rel (0) target = $region45
    $region44: #{cnn_forward.1} parent=1 // pred_region
      _
    $region45: #{cnn_forward.1} parent=1 // pred_fallthru
      _
    // Predicated region
    $region46: #{cnn_forward.1} parent=1 // pred_check
      _
    $region47: #{cnn_forward.1} parent=1 // pred_check_branch
      %61 = sbr.rel (0) target = $region49
    $region48: #{cnn_forward.1} parent=1 // pred_region
      %62 = dma.done [#allocation3], 32768
    $region49: #{cnn_forward.1} parent=1 // pred_fallthru
      _
    // Predicated region
    $region50: #{cnn_forward.1} parent=1 // pred_check
      _
    $region51: #{cnn_forward.1} parent=1 // pred_check_branch
      %64 = sbr.rel (0) target = $region53
    $region52: #{cnn_forward.1} parent=1 // pred_region
      %65 = dma.done [#allocation5], 20480
    $region53: #{cnn_forward.1} parent=1 // pred_fallthru
      _
    %v66 = vld [vmem:[%s0] sm:$0xff]
    %v67 = vld [vmem:[%s0 + $0x8] sm:$0xff]
    %v68 = vld [vmem:[%s0 + $0x10] sm:$0xff]
    %v69 = vld [vmem:[%s0 + $0x18] sm:$0xff]
    %v70 = vld [vmem:[%s0 + $0x20] sm:$0xff]
    %v71 = vld [vmem:[%s0 + $0x28] sm:$0xff]
    %v72 = vld [vmem:[%s0 + $0x30] sm:$0xff]
    %v73 = vld [vmem:[%s0 + $0x38] sm:$0xff]
    %v74 = vld [vmem:[%s0 + $0x40] sm:$0xff]
    %v75 = vld [vmem:[%s2] sm:$0x1]
    %v76 = vld [vmem:[#allocation2] sm:$0xff]
    %v77 = vld [vmem:[#allocation2 + $0x8] sm:$0xff]
    %v78 = vld [vmem:[#allocation2 + $0x10] sm:$0xff]
    %v79 = vld [vmem:[#allocation2 + $0x18] sm:$0xff]
    %v80 = vld [vmem:[#allocation2 + $0x20] sm:$0xff]
    %v81 = vld [vmem:[#allocation2 + $0x28] sm:$0xff]
    %v82 = vld [vmem:[#allocation2 + $0x30] sm:$0xff]
    %v83 = vld [vmem:[#allocation2 + $0x38] sm:$0xff]
    %v84 = vld [vmem:[#allocation2 + $0x40] sm:$0xff]
    %v85 = vld [vmem:[#allocation2 + $0x48] sm:$0xff]
    %v86 = vld [vmem:[#allocation2 + $0x50] sm:$0xff]
    %v87 = vld [vmem:[#allocation2 + $0x58] sm:$0xff]
    %v88 = vld [vmem:[#allocation2 + $0x60] sm:$0xff]
    %v89 = vld [vmem:[#allocation2 + $0x68] sm:$0xff]
    %v90 = vld [vmem:[#allocation2 + $0x70] sm:$0xff]
    %v91 = vld [vmem:[#allocation2 + $0x78] sm:$0xff]
    %v92 = vld [vmem:[#allocation2 + $0x80] sm:$0xff]
    %v93 = vld [vmem:[#allocation2 + $0x88] sm:$0xff]
    %v94 = vld [vmem:[#allocation2 + $0x90] sm:$0xff]
    %v95 = vld [vmem:[#allocation2 + $0x98] sm:$0xff]
    %v96 = vld [vmem:[#allocation2 + $0xa0] sm:$0xff]
    %v97 = vld [vmem:[#allocation2 + $0xa8] sm:$0xff]
    %v98 = vld [vmem:[#allocation2 + $0xb0] sm:$0xff]
    %v99 = vld [vmem:[#allocation2 + $0xb8] sm:$0xff]
    %v100 = vld [vmem:[#allocation2 + $0xc0] sm:$0xff]
    %v101 = vld [vmem:[#allocation2 + $0xc8] sm:$0xff]
    %v102 = vld [vmem:[#allocation2 + $0xd0] sm:$0xff]
    %v103 = vld [vmem:[#allocation2 + $0xd8] sm:$0xff]
    %v104 = vld [vmem:[#allocation2 + $0xe0] sm:$0xff]
    %v105 = vld [vmem:[#allocation2 + $0xe8] sm:$0xff]
    %v106 = vld [vmem:[#allocation2 + $0xf0] sm:$0xff]
    %v107 = vld [vmem:[#allocation2 + $0xf8] sm:$0xff]
    %s108 = scalar_lea.vmem [#allocation2], 256
    %v109 = vld [vmem:[%s108] sm:$0xff]
    %v110 = vld [vmem:[%s108 + $0x8] sm:$0xff]
    %v111 = vld [vmem:[%s108 + $0x10] sm:$0xff]
    %v112 = vld [vmem:[%s108 + $0x18] sm:$0xff]
    %v113 = vld [vmem:[%s108 + $0x20] sm:$0xff]
    %v114 = vld [vmem:[%s108 + $0x28] sm:$0xff]
    %v115 = vld [vmem:[%s108 + $0x30] sm:$0xff]
    %v116 = vld [vmem:[%s108 + $0x38] sm:$0xff]
    %v117 = vld [vmem:[%s108 + $0x40] sm:$0xff]
    %v118 = vld [vmem:[%s108 + $0x48] sm:$0xff]
    %v119 = vld [vmem:[%s108 + $0x50] sm:$0xff]
    %v120 = vld [vmem:[%s108 + $0x58] sm:$0xff]
    %v121 = vld [vmem:[%s108 + $0x60] sm:$0xff]
    %v122 = vld [vmem:[%s108 + $0x68] sm:$0xff]
    %v123 = vld [vmem:[%s108 + $0x70] sm:$0xff]
    %v124 = vld [vmem:[%s108 + $0x78] sm:$0xff]
    %v125 = vld [vmem:[%s108 + $0x80] sm:$0xff]
    %v126 = vld [vmem:[%s108 + $0x88] sm:$0xff]
    %v127 = vld [vmem:[%s108 + $0x90] sm:$0xff]
    %v128 = vld [vmem:[%s108 + $0x98] sm:$0xff]
    %v129 = vld [vmem:[%s108 + $0xa0] sm:$0xff]
    %v130 = vld [vmem:[%s108 + $0xa8] sm:$0xff]
    %v131 = vld [vmem:[%s108 + $0xb0] sm:$0xff]
    %v132 = vld [vmem:[%s108 + $0xb8] sm:$0xff]
    %v133 = vld [vmem:[%s108 + $0xc0] sm:$0xff]
    %v134 = vld [vmem:[%s108 + $0xc8] sm:$0xff]
    %v135 = vld [vmem:[%s108 + $0xd0] sm:$0xff]
    %v136 = vld [vmem:[%s108 + $0xd8] sm:$0xff]
    %v137 = vld [vmem:[%s108 + $0xe0] sm:$0xff]
    %v138 = vld [vmem:[%s108 + $0xe8] sm:$0xff]
    %v139 = vld [vmem:[%s108 + $0xf0] sm:$0xff]
    %v140 = vld [vmem:[%s108 + $0xf8] sm:$0xff]
    %141 = vmatprep.subr.mxu0 %v110
    %142 = vmatpush1.msra.mxu0 %v109
    %143 = vmatprep.subr.mxu0 %v112
    %144 = vmatpush1.msra.mxu0 %v111
    %145 = vmatprep.subr.mxu0 %v114
    %146 = vmatpush1.msra.mxu0 %v113
    %147 = vmatprep.subr.mxu0 %v116
    %148 = vmatpush1.msra.mxu0 %v115
    %149 = vmatprep.subr.mxu0 %v118
    %150 = vmatpush1.msra.mxu0 %v117
    %151 = vmatprep.subr.mxu0 %v120
    %152 = vmatpush1.msra.mxu0 %v119
    %153 = vmatprep.subr.mxu0 %v122
    %154 = vmatpush1.msra.mxu0 %v121
    %155 = vmatprep.subr.mxu0 %v124
    %156 = vmatpush1.msra.mxu0 %v123
    %157 = vmatprep.subr.mxu0 %v126
    %158 = vmatpush1.msra.mxu0 %v125
    %159 = vmatprep.subr.mxu0 %v128
    %160 = vmatpush1.msra.mxu0 %v127
    %161 = vmatprep.subr.mxu0 %v130
    %162 = vmatpush1.msra.mxu0 %v129
    %163 = vmatprep.subr.mxu0 %v132
    %164 = vmatpush1.msra.mxu0 %v131
    %165 = vmatprep.subr.mxu0 %v134
    %166 = vmatpush1.msra.mxu0 %v133
    %167 = vmatprep.subr.mxu0 %v136
    %168 = vmatpush1.msra.mxu0 %v135
    %169 = vmatprep.subr.mxu0 %v138
    %170 = vmatpush1.msra.mxu0 %v137
    %171 = vmatprep.subr.mxu0 %v140
    %172 = vmatpush1.msra.mxu0 %v139
    %173 = vmatprep.subr.mxu0 0.0
    %174 = vmatpush1.msra.mxu0 0.0
    %175 = vmatprep.subr.mxu0 0.0
    %176 = vmatpush1.msra.mxu0 0.0
    %177 = vmatprep.subr.mxu0 0.0
    %178 = vmatpush1.msra.mxu0 0.0
    %179 = vmatprep.subr.mxu0 0.0
    %180 = vmatpush1.msra.mxu0 0.0
    %181 = vmatprep.subr.mxu0 0.0
    %182 = vmatpush1.msra.mxu0 0.0
    %183 = vmatprep.subr.mxu0 0.0
    %184 = vmatpush1.msra.mxu0 0.0
    %185 = vmatprep.subr.mxu0 0.0
    %186 = vmatpush1.msra.mxu0 0.0
    %187 = vmatprep.subr.mxu0 0.0
    %188 = vmatpush1.msra.mxu0 0.0
    %189 = vmatprep.subr.mxu0 0.0
    %190 = vmatpush1.msra.mxu0 0.0
    %191 = vmatprep.subr.mxu0 0.0
    %192 = vmatpush1.msra.mxu0 0.0
    %193 = vmatprep.subr.mxu0 0.0
    %194 = vmatpush1.msra.mxu0 0.0
    %195 = vmatprep.subr.mxu0 0.0
    %196 = vmatpush1.msra.mxu0 0.0
    %197 = vmatprep.subr.mxu0 0.0
    %198 = vmatpush1.msra.mxu0 0.0
    %199 = vmatprep.subr.mxu0 0.0
    %200 = vmatpush1.msra.mxu0 0.0
    %201 = vmatprep.subr.mxu0 0.0
    %202 = vmatpush1.msra.mxu0 0.0
    %203 = vmatprep.subr.mxu0 0.0
    %204 = vmatpush1.msra.mxu0 0.0
    %205 = vmatprep.mubr.f32.mxu0 0.0
    %206 = vmatmul.mubr.f32.gmra.mrb[0].mxu0 %v67
    %v207 = vpop.f32.mrb[0].mxu0
    %v208 = vadd.f32 0.0, %v207
    %v209 = vpop.f32.mrb[0].mxu0
    %v210 = vadd.f32 0.0, %v209
    %211 = vmatprep.mubr.f32.mxu0 0.0
    %212 = vmatmul.mubr.f32.gmra.mrb[0].mxu0 %v68
    %v213 = vpop.f32.mrb[0].mxu0
    %v214 = vadd.f32 0.0, %v213
    %v215 = vpop.f32.mrb[0].mxu0
    %v216 = vadd.f32 0.0, %v215
    %217 = vmatprep.mubr.f32.mxu0 0.0
    %218 = vmatmul.mubr.f32.gmra.mrb[0].mxu0 %v69
    %v219 = vpop.f32.mrb[0].mxu0
    %v220 = vadd.f32 0.0, %v219
    %v221 = vpop.f32.mrb[0].mxu0
    %v222 = vadd.f32 0.0, %v221
    %223 = vmatprep.mubr.f32.mxu0 0.0
    %224 = vmatmul.mubr.f32.gmra.mrb[0].mxu0 %v70
    %v225 = vpop.f32.mrb[0].mxu0
    %v226 = vadd.f32 0.0, %v225
    %v227 = vpop.f32.mrb[0].mxu0
    %v228 = vadd.f32 0.0, %v227
    %229 = vmatprep.mubr.f32.mxu0 0.0
    %230 = vmatmul.mubr.f32.gmra.mrb[0].mxu0 %v71
    %v231 = vpop.f32.mrb[0].mxu0
    %v232 = vadd.f32 0.0, %v231
    %v233 = vpop.f32.mrb[0].mxu0
    %v234 = vadd.f32 0.0, %v233
    %235 = vmatprep.mubr.f32.mxu0 0.0
    %236 = vmatmul.mubr.f32.gmra.mrb[0].mxu0 %v72
    %v237 = vpop.f32.mrb[0].mxu0
    %v238 = vadd.f32 0.0, %v237
    %v239 = vpop.f32.mrb[0].mxu0
    %v240 = vadd.f32 0.0, %v239
    %241 = vmatprep.mubr.f32.mxu0 0.0
    %242 = vmatmul.mubr.f32.gmra.mrb[0].mxu0 %v73
    %v243 = vpop.f32.mrb[0].mxu0
    %v244 = vadd.f32 0.0, %v243
    %v245 = vpop.f32.mrb[0].mxu0
    %v246 = vadd.f32 0.0, %v245
    %247 = vmatprep.mubr.f32.mxu0 0.0
    %248 = vmatmul.mubr.f32.gmra.mrb[0].mxu0 %v74
    %v249 = vpop.f32.mrb[0].mxu0
    %v250 = vpop.f32.mrb[0].mxu0
    %251 = vdwg.mxu0
    %252 = vmatprep.subr.mxu0 %v77
    %253 = vmatpush1.msra.mxu0 %v76
    %254 = vmatprep.subr.mxu0 %v79
    %255 = vmatpush1.msra.mxu0 %v78
    %256 = vmatprep.subr.mxu0 %v81
    %257 = vmatpush1.msra.mxu0 %v80
    %258 = vmatprep.subr.mxu0 %v83
    %259 = vmatpush1.msra.mxu0 %v82
    %260 = vmatprep.subr.mxu0 %v85
    %261 = vmatpush1.msra.mxu0 %v84
    %262 = vmatprep.subr.mxu0 %v87
    %263 = vmatpush1.msra.mxu0 %v86
    %264 = vmatprep.subr.mxu0 %v89
    %265 = vmatpush1.msra.mxu0 %v88
    %266 = vmatprep.subr.mxu0 %v91
    %267 = vmatpush1.msra.mxu0 %v90
    %268 = vmatprep.subr.mxu0 %v93
    %269 = vmatpush1.msra.mxu0 %v92
    %270 = vmatprep.subr.mxu0 %v95
    %271 = vmatpush1.msra.mxu0 %v94
    %272 = vmatprep.subr.mxu0 %v97
    %273 = vmatpush1.msra.mxu0 %v96
    %274 = vmatprep.subr.mxu0 %v99
    %275 = vmatpush1.msra.mxu0 %v98
    %276 = vmatprep.subr.mxu0 %v101
    %277 = vmatpush1.msra.mxu0 %v100
    %278 = vmatprep.subr.mxu0 %v103
    %279 = vmatpush1.msra.mxu0 %v102
    %280 = vmatprep.subr.mxu0 %v105
    %281 = vmatpush1.msra.mxu0 %v104
    %282 = vmatprep.subr.mxu0 %v107
    %283 = vmatpush1.msra.mxu0 %v106
    %284 = vmatprep.subr.mxu0 0.0
    %285 = vmatpush1.msra.mxu0 0.0
    %286 = vmatprep.subr.mxu0 0.0
    %287 = vmatpush1.msra.mxu0 0.0
    %288 = vmatprep.subr.mxu0 0.0
    %289 = vmatpush1.msra.mxu0 0.0
    %290 = vmatprep.subr.mxu0 0.0
    %291 = vmatpush1.msra.mxu0 0.0
    %292 = vmatprep.subr.mxu0 0.0
    %293 = vmatpush1.msra.mxu0 0.0
    %294 = vmatprep.subr.mxu0 0.0
    %295 = vmatpush1.msra.mxu0 0.0
    %296 = vmatprep.subr.mxu0 0.0
    %297 = vmatpush1.msra.mxu0 0.0
    %298 = vmatprep.subr.mxu0 0.0
    %299 = vmatpush1.msra.mxu0 0.0
    %300 = vmatprep.subr.mxu0 0.0
    %301 = vmatpush1.msra.mxu0 0.0
    %302 = vmatprep.subr.mxu0 0.0
    %303 = vmatpush1.msra.mxu0 0.0
    %304 = vmatprep.subr.mxu0 0.0
    %305 = vmatpush1.msra.mxu0 0.0
    %306 = vmatprep.subr.mxu0 0.0
    %307 = vmatpush1.msra.mxu0 0.0
    %308 = vmatprep.subr.mxu0 0.0
    %309 = vmatpush1.msra.mxu0 0.0
    %310 = vmatprep.subr.mxu0 0.0
    %311 = vmatpush1.msra.mxu0 0.0
    %312 = vmatprep.subr.mxu0 0.0
    %313 = vmatpush1.msra.mxu0 0.0
    %314 = vmatprep.subr.mxu0 0.0
    %315 = vmatpush1.msra.mxu0 0.0
    %316 = vmatprep.mubr.f32.mxu0 0.0
    %317 = vmatmul.mubr.f32.gmra.mrb[0].mxu0 %v66
    %v318 = vpop.f32.mrb[0].mxu0
    %v319 = vadd.f32 %v208, %v318
    %v320 = vpop.f32.mrb[0].mxu0
    %v321 = vadd.f32 %v210, %v320
    %322 = vmatprep.mubr.f32.mxu0 0.0
    %323 = vmatmul.mubr.f32.gmra.mrb[0].mxu0 %v67
    %v324 = vpop.f32.mrb[0].mxu0
    %v325 = vadd.f32 %v214, %v324
    %v326 = vpop.f32.mrb[0].mxu0
    %v327 = vadd.f32 %v216, %v326
    %328 = vmatprep.mubr.f32.mxu0 0.0
    %329 = vmatmul.mubr.f32.gmra.mrb[0].mxu0 %v68
    %v330 = vpop.f32.mrb[0].mxu0
    %v331 = vadd.f32 %v220, %v330
    %v332 = vpop.f32.mrb[0].mxu0
    %v333 = vadd.f32 %v222, %v332
    %334 = vmatprep.mubr.f32.mxu0 0.0
    %335 = vmatmul.mubr.f32.gmra.mrb[0].mxu0 %v69
    %v336 = vpop.f32.mrb[0].mxu0
    %v337 = vadd.f32 %v226, %v336
    %v338 = vpop.f32.mrb[0].mxu0
    %v339 = vadd.f32 %v228, %v338
    %340 = vmatprep.mubr.f32.mxu0 0.0
    %341 = vmatmul.mubr.f32.gmra.mrb[0].mxu0 %v70
    %v342 = vpop.f32.mrb[0].mxu0
    %v343 = vadd.f32 %v232, %v342
    %v344 = vpop.f32.mrb[0].mxu0
    %v345 = vadd.f32 %v234, %v344
    %346 = vmatprep.mubr.f32.mxu0 0.0
    %347 = vmatmul.mubr.f32.gmra.mrb[0].mxu0 %v71
    %v348 = vpop.f32.mrb[0].mxu0
    %v349 = vadd.f32 %v238, %v348
    %v350 = vpop.f32.mrb[0].mxu0
    %v351 = vadd.f32 %v240, %v350
    %352 = vmatprep.mubr.f32.mxu0 0.0
    %353 = vmatmul.mubr.f32.gmra.mrb[0].mxu0 %v72
    %v354 = vpop.f32.mrb[0].mxu0
    %v355 = vadd.f32 %v244, %v354
    %v356 = vpop.f32.mrb[0].mxu0
    %v357 = vadd.f32 %v246, %v356
    %358 = vmatprep.mubr.f32.mxu0 0.0
    %359 = vmatmul.mubr.f32.gmra.mrb[0].mxu0 %v73
    %v360 = vpop.f32.mrb[0].mxu0
    %v361 = vpop.f32.mrb[0].mxu0
    %362 = vdwg.mxu0
    %v363 = vmax.f32 %v319, %v321
    %v364 = vmax.f32 %v325, %v327
    %v365 = vmax.f32 %v331, %v333
    %v366 = vmax.f32 %v337, %v339
    %v367 = vmax.f32 %v343, %v345
    %v368 = vmax.f32 %v349, %v351
    %v369 = vmax.f32 %v355, %v357
    %s370 = scalar_lea.vmem [#allocation2], 512
    %v371 = vld [vmem:[%s370] sm:$0xff]
    %v372 = vld [vmem:[%s370 + $0x8] sm:$0xff]
    %v373 = vld [vmem:[%s370 + $0x10] sm:$0xff]
    %v374 = vld [vmem:[%s370 + $0x18] sm:$0xff]
    %v375 = vld [vmem:[%s370 + $0x20] sm:$0xff]
    %v376 = vld [vmem:[%s370 + $0x28] sm:$0xff]
    %v377 = vld [vmem:[%s370 + $0x30] sm:$0xff]
    %v378 = vld [vmem:[%s370 + $0x38] sm:$0xff]
    %v379 = vld [vmem:[%s370 + $0x40] sm:$0xff]
    %v380 = vld [vmem:[%s370 + $0x48] sm:$0xff]
    %v381 = vld [vmem:[%s370 + $0x50] sm:$0xff]
    %v382 = vld [vmem:[%s370 + $0x58] sm:$0xff]
    %v383 = vld [vmem:[%s370 + $0x60] sm:$0xff]
    %v384 = vld [vmem:[%s370 + $0x68] sm:$0xff]
    %v385 = vld [vmem:[%s370 + $0x70] sm:$0xff]
    %v386 = vld [vmem:[%s370 + $0x78] sm:$0xff]
    %v387 = vld [vmem:[%s370 + $0x80] sm:$0xff]
    %v388 = vld [vmem:[%s370 + $0x88] sm:$0xff]
    %v389 = vld [vmem:[%s370 + $0x90] sm:$0xff]
    %v390 = vld [vmem:[%s370 + $0x98] sm:$0xff]
    %v391 = vld [vmem:[%s370 + $0xa0] sm:$0xff]
    %v392 = vld [vmem:[%s370 + $0xa8] sm:$0xff]
    %v393 = vld [vmem:[%s370 + $0xb0] sm:$0xff]
    %v394 = vld [vmem:[%s370 + $0xb8] sm:$0xff]
    %v395 = vld [vmem:[%s370 + $0xc0] sm:$0xff]
    %v396 = vld [vmem:[%s370 + $0xc8] sm:$0xff]
    %v397 = vld [vmem:[%s370 + $0xd0] sm:$0xff]
    %v398 = vld [vmem:[%s370 + $0xd8] sm:$0xff]
    %v399 = vld [vmem:[%s370 + $0xe0] sm:$0xff]
    %v400 = vld [vmem:[%s370 + $0xe8] sm:$0xff]
    %v401 = vld [vmem:[%s370 + $0xf0] sm:$0xff]
    %v402 = vld [vmem:[%s370 + $0xf8] sm:$0xff]
    %s403 = scalar_lea.vmem [#allocation2], 768
    %v404 = vld [vmem:[%s403] sm:$0xff]
    %v405 = vld [vmem:[%s403 + $0x8] sm:$0xff]
    %v406 = vld [vmem:[%s403 + $0x10] sm:$0xff]
    %v407 = vld [vmem:[%s403 + $0x18] sm:$0xff]
    %v408 = vld [vmem:[%s403 + $0x20] sm:$0xff]
    %v409 = vld [vmem:[%s403 + $0x28] sm:$0xff]
    %v410 = vld [vmem:[%s403 + $0x30] sm:$0xff]
    %v411 = vld [vmem:[%s403 + $0x38] sm:$0xff]
    %v412 = vld [vmem:[%s403 + $0x40] sm:$0xff]
    %v413 = vld [vmem:[%s403 + $0x48] sm:$0xff]
    %v414 = vld [vmem:[%s403 + $0x50] sm:$0xff]
    %v415 = vld [vmem:[%s403 + $0x58] sm:$0xff]
    %v416 = vld [vmem:[%s403 + $0x60] sm:$0xff]
    %v417 = vld [vmem:[%s403 + $0x68] sm:$0xff]
    %v418 = vld [vmem:[%s403 + $0x70] sm:$0xff]
    %v419 = vld [vmem:[%s403 + $0x78] sm:$0xff]
    %v420 = vld [vmem:[%s403 + $0x80] sm:$0xff]
    %v421 = vld [vmem:[%s403 + $0x88] sm:$0xff]
    %v422 = vld [vmem:[%s403 + $0x90] sm:$0xff]
    %v423 = vld [vmem:[%s403 + $0x98] sm:$0xff]
    %v424 = vld [vmem:[%s403 + $0xa0] sm:$0xff]
    %v425 = vld [vmem:[%s403 + $0xa8] sm:$0xff]
    %v426 = vld [vmem:[%s403 + $0xb0] sm:$0xff]
    %v427 = vld [vmem:[%s403 + $0xb8] sm:$0xff]
    %v428 = vld [vmem:[%s403 + $0xc0] sm:$0xff]
    %v429 = vld [vmem:[%s403 + $0xc8] sm:$0xff]
    %v430 = vld [vmem:[%s403 + $0xd0] sm:$0xff]
    %v431 = vld [vmem:[%s403 + $0xd8] sm:$0xff]
    %v432 = vld [vmem:[%s403 + $0xe0] sm:$0xff]
    %v433 = vld [vmem:[%s403 + $0xe8] sm:$0xff]
    %v434 = vld [vmem:[%s403 + $0xf0] sm:$0xff]
    %v435 = vld [vmem:[%s403 + $0xf8] sm:$0xff]
    %436 = vmatprep.subr.mxu0 %v405
    %437 = vmatpush1.msra.mxu0 %v404
    %438 = vmatprep.subr.mxu0 %v407
    %439 = vmatpush1.msra.mxu0 %v406
    %440 = vmatprep.subr.mxu0 %v409
    %441 = vmatpush1.msra.mxu0 %v408
    %442 = vmatprep.subr.mxu0 %v411
    %443 = vmatpush1.msra.mxu0 %v410
    %444 = vmatprep.subr.mxu0 %v413
    %445 = vmatpush1.msra.mxu0 %v412
    %446 = vmatprep.subr.mxu0 %v415
    %447 = vmatpush1.msra.mxu0 %v414
    %448 = vmatprep.subr.mxu0 %v417
    %449 = vmatpush1.msra.mxu0 %v416
    %450 = vmatprep.subr.mxu0 %v419
    %451 = vmatpush1.msra.mxu0 %v418
    %452 = vmatprep.subr.mxu0 %v421
    %453 = vmatpush1.msra.mxu0 %v420
    %454 = vmatprep.subr.mxu0 %v423
    %455 = vmatpush1.msra.mxu0 %v422
    %456 = vmatprep.subr.mxu0 %v425
    %457 = vmatpush1.msra.mxu0 %v424
    %458 = vmatprep.subr.mxu0 %v427
    %459 = vmatpush1.msra.mxu0 %v426
    %460 = vmatprep.subr.mxu0 %v429
    %461 = vmatpush1.msra.mxu0 %v428
    %462 = vmatprep.subr.mxu0 %v431
    %463 = vmatpush1.msra.mxu0 %v430
    %464 = vmatprep.subr.mxu0 %v433
    %465 = vmatpush1.msra.mxu0 %v432
    %466 = vmatprep.subr.mxu0 %v435
    %467 = vmatpush1.msra.mxu0 %v434
    %468 = vmatprep.subr.mxu0 0.0
    %469 = vmatpush1.msra.mxu0 0.0
    %470 = vmatprep.subr.mxu0 0.0
    %471 = vmatpush1.msra.mxu0 0.0
    %472 = vmatprep.subr.mxu0 0.0
    %473 = vmatpush1.msra.mxu0 0.0
    %474 = vmatprep.subr.mxu0 0.0
    %475 = vmatpush1.msra.mxu0 0.0
    %476 = vmatprep.subr.mxu0 0.0
    %477 = vmatpush1.msra.mxu0 0.0
    %478 = vmatprep.subr.mxu0 0.0
    %479 = vmatpush1.msra.mxu0 0.0
    %480 = vmatprep.subr.mxu0 0.0
    %481 = vmatpush1.msra.mxu0 0.0
    %482 = vmatprep.subr.mxu0 0.0
    %483 = vmatpush1.msra.mxu0 0.0
    %484 = vmatprep.subr.mxu0 0.0
    %485 = vmatpush1.msra.mxu0 0.0
    %486 = vmatprep.subr.mxu0 0.0
    %487 = vmatpush1.msra.mxu0 0.0
    %488 = vmatprep.subr.mxu0 0.0
    %489 = vmatpush1.msra.mxu0 0.0
    %490 = vmatprep.subr.mxu0 0.0
    %491 = vmatpush1.msra.mxu0 0.0
    %492 = vmatprep.subr.mxu0 0.0
    %493 = vmatpush1.msra.mxu0 0.0
    %494 = vmatprep.subr.mxu0 0.0
    %495 = vmatpush1.msra.mxu0 0.0
    %496 = vmatprep.subr.mxu0 0.0
    %497 = vmatpush1.msra.mxu0 0.0
    %498 = vmatprep.subr.mxu0 0.0
    %499 = vmatpush1.msra.mxu0 0.0
    %500 = vmatprep.mubr.f32.mxu0 0.0
    %501 = vmatmul.mubr.f32.gmra.mrb[0].mxu0 %v67
    %v502 = vpop.f32.mrb[0].mxu0
    %v503 = vadd.f32 0.0, %v502
    %v504 = vpop.f32.mrb[0].mxu0
    %v505 = vadd.f32 0.0, %v504
    %506 = vmatprep.mubr.f32.mxu0 0.0
    %507 = vmatmul.mubr.f32.gmra.mrb[0].mxu0 %v68
    %v508 = vpop.f32.mrb[0].mxu0
    %v509 = vadd.f32 0.0, %v508
    %v510 = vpop.f32.mrb[0].mxu0
    %v511 = vadd.f32 0.0, %v510
    %512 = vmatprep.mubr.f32.mxu0 0.0
    %513 = vmatmul.mubr.f32.gmra.mrb[0].mxu0 %v69
    %v514 = vpop.f32.mrb[0].mxu0
    %v515 = vadd.f32 0.0, %v514
    %v516 = vpop.f32.mrb[0].mxu0
    %v517 = vadd.f32 0.0, %v516
    %518 = vmatprep.mubr.f32.mxu0 0.0
    %519 = vmatmul.mubr.f32.gmra.mrb[0].mxu0 %v70
    %v520 = vpop.f32.mrb[0].mxu0
    %v521 = vadd.f32 0.0, %v520
    %v522 = vpop.f32.mrb[0].mxu0
    %v523 = vadd.f32 0.0, %v522
    %524 = vmatprep.mubr.f32.mxu0 0.0
    %525 = vmatmul.mubr.f32.gmra.mrb[0].mxu0 %v71
    %v526 = vpop.f32.mrb[0].mxu0
    %v527 = vadd.f32 0.0, %v526
    %v528 = vpop.f32.mrb[0].mxu0
    %v529 = vadd.f32 0.0, %v528
    %530 = vmatprep.mubr.f32.mxu0 0.0
    %531 = vmatmul.mubr.f32.gmra.mrb[0].mxu0 %v72
    %v532 = vpop.f32.mrb[0].mxu0
    %v533 = vadd.f32 0.0, %v532
    %v534 = vpop.f32.mrb[0].mxu0
    %v535 = vadd.f32 0.0, %v534
    %536 = vmatprep.mubr.f32.mxu0 0.0
    %537 = vmatmul.mubr.f32.gmra.mrb[0].mxu0 %v73
    %v538 = vpop.f32.mrb[0].mxu0
    %v539 = vadd.f32 0.0, %v538
    %v540 = vpop.f32.mrb[0].mxu0
    %v541 = vadd.f32 0.0, %v540
    %542 = vmatprep.mubr.f32.mxu0 0.0
    %543 = vmatmul.mubr.f32.gmra.mrb[0].mxu0 %v74
    %v544 = vpop.f32.mrb[0].mxu0
    %v545 = vpop.f32.mrb[0].mxu0
    %546 = vdwg.mxu0
    %547 = vmatprep.subr.mxu0 %v372
    %548 = vmatpush1.msra.mxu0 %v371
    %549 = vmatprep.subr.mxu0 %v374
    %550 = vmatpush1.msra.mxu0 %v373
    %551 = vmatprep.subr.mxu0 %v376
    %552 = vmatpush1.msra.mxu0 %v375
    %553 = vmatprep.subr.mxu0 %v378
    %554 = vmatpush1.msra.mxu0 %v377
    %555 = vmatprep.subr.mxu0 %v380
    %556 = vmatpush1.msra.mxu0 %v379
    %557 = vmatprep.subr.mxu0 %v382
    %558 = vmatpush1.msra.mxu0 %v381
    %559 = vmatprep.subr.mxu0 %v384
    %560 = vmatpush1.msra.mxu0 %v383
    %561 = vmatprep.subr.mxu0 %v386
    %562 = vmatpush1.msra.mxu0 %v385
    %563 = vmatprep.subr.mxu0 %v388
    %564 = vmatpush1.msra.mxu0 %v387
    %565 = vmatprep.subr.mxu0 %v390
    %566 = vmatpush1.msra.mxu0 %v389
    %567 = vmatprep.subr.mxu0 %v392
    %568 = vmatpush1.msra.mxu0 %v391
    %569 = vmatprep.subr.mxu0 %v394
    %570 = vmatpush1.msra.mxu0 %v393
    %571 = vmatprep.subr.mxu0 %v396
    %572 = vmatpush1.msra.mxu0 %v395
    %573 = vmatprep.subr.mxu0 %v398
    %574 = vmatpush1.msra.mxu0 %v397
    %575 = vmatprep.subr.mxu0 %v400
    %576 = vmatpush1.msra.mxu0 %v399
    %577 = vmatprep.subr.mxu0 %v402
    %578 = vmatpush1.msra.mxu0 %v401
    %579 = vmatprep.subr.mxu0 0.0
    %580 = vmatpush1.msra.mxu0 0.0
    %581 = vmatprep.subr.mxu0 0.0
    %582 = vmatpush1.msra.mxu0 0.0
    %583 = vmatprep.subr.mxu0 0.0
    %584 = vmatpush1.msra.mxu0 0.0
    %585 = vmatprep.subr.mxu0 0.0
    %586 = vmatpush1.msra.mxu0 0.0
    %587 = vmatprep.subr.mxu0 0.0
    %588 = vmatpush1.msra.mxu0 0.0
    %589 = vmatprep.subr.mxu0 0.0
    %590 = vmatpush1.msra.mxu0 0.0
    %591 = vmatprep.subr.mxu0 0.0
    %592 = vmatpush1.msra.mxu0 0.0
    %593 = vmatprep.subr.mxu0 0.0
    %594 = vmatpush1.msra.mxu0 0.0
    %595 = vmatprep.subr.mxu0 0.0
    %596 = vmatpush1.msra.mxu0 0.0
    %597 = vmatprep.subr.mxu0 0.0
    %598 = vmatpush1.msra.mxu0 0.0
    %599 = vmatprep.subr.mxu0 0.0
    %600 = vmatpush1.msra.mxu0 0.0
    %601 = vmatprep.subr.mxu0 0.0
    %602 = vmatpush1.msra.mxu0 0.0
    %603 = vmatprep.subr.mxu0 0.0
    %604 = vmatpush1.msra.mxu0 0.0
    %605 = vmatprep.subr.mxu0 0.0
    %606 = vmatpush1.msra.mxu0 0.0
    %607 = vmatprep.subr.mxu0 0.0
    %608 = vmatpush1.msra.mxu0 0.0
    %609 = vmatprep.subr.mxu0 0.0
    %610 = vmatpush1.msra.mxu0 0.0
    %611 = vmatprep.mubr.f32.mxu0 0.0
    %612 = vmatmul.mubr.f32.gmra.mrb[0].mxu0 %v66
    %v613 = vpop.f32.mrb[0].mxu0
    %v614 = vadd.f32 %v503, %v613
    %v615 = vpop.f32.mrb[0].mxu0
    %v616 = vadd.f32 %v505, %v615
    %617 = vmatprep.mubr.f32.mxu0 0.0
    %618 = vmatmul.mubr.f32.gmra.mrb[0].mxu0 %v67
    %v619 = vpop.f32.mrb[0].mxu0
    %v620 = vadd.f32 %v509, %v619
    %v621 = vpop.f32.mrb[0].mxu0
    %v622 = vadd.f32 %v511, %v621
    %623 = vmatprep.mubr.f32.mxu0 0.0
    %624 = vmatmul.mubr.f32.gmra.mrb[0].mxu0 %v68
    %v625 = vpop.f32.mrb[0].mxu0
    %v626 = vadd.f32 %v515, %v625
    %v627 = vpop.f32.mrb[0].mxu0
    %v628 = vadd.f32 %v517, %v627
    %629 = vmatprep.mubr.f32.mxu0 0.0
    %630 = vmatmul.mubr.f32.gmra.mrb[0].mxu0 %v69
    %v631 = vpop.f32.mrb[0].mxu0
    %v632 = vadd.f32 %v521, %v631
    %v633 = vpop.f32.mrb[0].mxu0
    %v634 = vadd.f32 %v523, %v633
    %635 = vmatprep.mubr.f32.mxu0 0.0
    %636 = vmatmul.mubr.f32.gmra.mrb[0].mxu0 %v70
    %v637 = vpop.f32.mrb[0].mxu0
    %v638 = vadd.f32 %v527, %v637
    %v639 = vpop.f32.mrb[0].mxu0
    %v640 = vadd.f32 %v529, %v639
    %641 = vmatprep.mubr.f32.mxu0 0.0
    %642 = vmatmul.mubr.f32.gmra.mrb[0].mxu0 %v71
    %v643 = vpop.f32.mrb[0].mxu0
    %v644 = vadd.f32 %v533, %v643
    %v645 = vpop.f32.mrb[0].mxu0
    %v646 = vadd.f32 %v535, %v645
    %647 = vmatprep.mubr.f32.mxu0 0.0
    %648 = vmatmul.mubr.f32.gmra.mrb[0].mxu0 %v72
    %v649 = vpop.f32.mrb[0].mxu0
    %v650 = vadd.f32 %v539, %v649
    %v651 = vpop.f32.mrb[0].mxu0
    %v652 = vadd.f32 %v541, %v651
    %653 = vmatprep.mubr.f32.mxu0 0.0
    %654 = vmatmul.mubr.f32.gmra.mrb[0].mxu0 %v73
    %v655 = vpop.f32.mrb[0].mxu0
    %v656 = vpop.f32.mrb[0].mxu0
    %657 = vdwg.mxu0
    %v658 = vmax.f32 %v614, %v616
    %v659 = vmax.f32 %v620, %v622
    %v660 = vmax.f32 %v626, %v628
    %v661 = vmax.f32 %v632, %v634
    %v662 = vmax.f32 %v638, %v640
    %v663 = vmax.f32 %v644, %v646
    %v664 = vmax.f32 %v650, %v652
    %v665 = vmax.f32 %v363, %v658
    %v666 = vmax.f32 %v364, %v659
    %v667 = vmax.f32 %v365, %v660
    %v668 = vmax.f32 %v366, %v661
    %v669 = vmax.f32 %v367, %v662
    %v670 = vmax.f32 %v368, %v663
    %v671 = vmax.f32 %v369, %v664
    %v673 = vlaneseq
    %v674 = vshrl.u32 %v673, 7
    %v675 = vsub.s32 0, %v674
    %v676 = vrot.slane %v75, %v675
    %v678 = vadd.f32 %v665, %v676
    %v679 = vadd.f32 %v666, %v676
    %v680 = vadd.f32 %v667, %v676
    %v681 = vadd.f32 %v668, %v676
    %v682 = vadd.f32 %v669, %v676
    %v683 = vadd.f32 %v670, %v676
    %v684 = vadd.f32 %v671, %v676
    %v685 = vmax.f32 %v678, 0.0
    %v686 = vmax.f32 %v679, 0.0
    %v687 = vmax.f32 %v680, 0.0
    %v688 = vmax.f32 %v681, 0.0
    %v689 = vmax.f32 %v682, 0.0
    %v690 = vmax.f32 %v683, 0.0
    %v691 = vmax.f32 %v684, 0.0
    %s692 = scalar_lea.vmem [#allocation2], 1024
    %v693 = vld [vmem:[%s692] sm:$0xff]
    %v694 = vld [vmem:[%s692 + $0x8] sm:$0xff]
    %v695 = vld [vmem:[%s692 + $0x10] sm:$0xff]
    %v696 = vld [vmem:[%s692 + $0x18] sm:$0xff]
    %v697 = vld [vmem:[%s692 + $0x20] sm:$0xff]
    %v698 = vld [vmem:[%s692 + $0x28] sm:$0xff]
    %v699 = vld [vmem:[%s692 + $0x30] sm:$0xff]
    %v700 = vld [vmem:[%s692 + $0x38] sm:$0xff]
    %v701 = vld [vmem:[%s692 + $0x40] sm:$0xff]
    %v702 = vld [vmem:[%s692 + $0x48] sm:$0xff]
    %v703 = vld [vmem:[%s692 + $0x50] sm:$0xff]
    %v704 = vld [vmem:[%s692 + $0x58] sm:$0xff]
    %v705 = vld [vmem:[%s692 + $0x60] sm:$0xff]
    %v706 = vld [vmem:[%s692 + $0x68] sm:$0xff]
    %v707 = vld [vmem:[%s692 + $0x70] sm:$0xff]
    %v708 = vld [vmem:[%s692 + $0x78] sm:$0xff]
    %v709 = vld [vmem:[%s692 + $0x80] sm:$0xff]
    %v710 = vld [vmem:[%s692 + $0x88] sm:$0xff]
    %v711 = vld [vmem:[%s692 + $0x90] sm:$0xff]
    %v712 = vld [vmem:[%s692 + $0x98] sm:$0xff]
    %v713 = vld [vmem:[%s692 + $0xa0] sm:$0xff]
    %v714 = vld [vmem:[%s692 + $0xa8] sm:$0xff]
    %v715 = vld [vmem:[%s692 + $0xb0] sm:$0xff]
    %v716 = vld [vmem:[%s692 + $0xb8] sm:$0xff]
    %v717 = vld [vmem:[%s692 + $0xc0] sm:$0xff]
    %v718 = vld [vmem:[%s692 + $0xc8] sm:$0xff]
    %v719 = vld [vmem:[%s692 + $0xd0] sm:$0xff]
    %v720 = vld [vmem:[%s692 + $0xd8] sm:$0xff]
    %v721 = vld [vmem:[%s692 + $0xe0] sm:$0xff]
    %v722 = vld [vmem:[%s692 + $0xe8] sm:$0xff]
    %v723 = vld [vmem:[%s692 + $0xf0] sm:$0xff]
    %v724 = vld [vmem:[%s692 + $0xf8] sm:$0xff]
    %s725 = scalar_lea.vmem [#allocation2], 1280
    %v726 = vld [vmem:[%s725] sm:$0xff]
    %v727 = vld [vmem:[%s725 + $0x8] sm:$0xff]
    %v728 = vld [vmem:[%s725 + $0x10] sm:$0xff]
    %v729 = vld [vmem:[%s725 + $0x18] sm:$0xff]
    %v730 = vld [vmem:[%s725 + $0x20] sm:$0xff]
    %v731 = vld [vmem:[%s725 + $0x28] sm:$0xff]
    %v732 = vld [vmem:[%s725 + $0x30] sm:$0xff]
    %v733 = vld [vmem:[%s725 + $0x38] sm:$0xff]
    %v734 = vld [vmem:[%s725 + $0x40] sm:$0xff]
    %v735 = vld [vmem:[%s725 + $0x48] sm:$0xff]
    %v736 = vld [vmem:[%s725 + $0x50] sm:$0xff]
    %v737 = vld [vmem:[%s725 + $0x58] sm:$0xff]
    %v738 = vld [vmem:[%s725 + $0x60] sm:$0xff]
    %v739 = vld [vmem:[%s725 + $0x68] sm:$0xff]
    %v740 = vld [vmem:[%s725 + $0x70] sm:$0xff]
    %v741 = vld [vmem:[%s725 + $0x78] sm:$0xff]
    %v742 = vld [vmem:[%s725 + $0x80] sm:$0xff]
    %v743 = vld [vmem:[%s725 + $0x88] sm:$0xff]
    %v744 = vld [vmem:[%s725 + $0x90] sm:$0xff]
    %v745 = vld [vmem:[%s725 + $0x98] sm:$0xff]
    %v746 = vld [vmem:[%s725 + $0xa0] sm:$0xff]
    %v747 = vld [vmem:[%s725 + $0xa8] sm:$0xff]
    %v748 = vld [vmem:[%s725 + $0xb0] sm:$0xff]
    %v749 = vld [vmem:[%s725 + $0xb8] sm:$0xff]
    %v750 = vld [vmem:[%s725 + $0xc0] sm:$0xff]
    %v751 = vld [vmem:[%s725 + $0xc8] sm:$0xff]
    %v752 = vld [vmem:[%s725 + $0xd0] sm:$0xff]
    %v753 = vld [vmem:[%s725 + $0xd8] sm:$0xff]
    %v754 = vld [vmem:[%s725 + $0xe0] sm:$0xff]
    %v755 = vld [vmem:[%s725 + $0xe8] sm:$0xff]
    %v756 = vld [vmem:[%s725 + $0xf0] sm:$0xff]
    %v757 = vld [vmem:[%s725 + $0xf8] sm:$0xff]
    %758 = vmatprep.subr.mxu0 %v727
    %759 = vmatpush1.msra.mxu0 %v726
    %760 = vmatprep.subr.mxu0 %v729
    %761 = vmatpush1.msra.mxu0 %v728
    %762 = vmatprep.subr.mxu0 %v731
    %763 = vmatpush1.msra.mxu0 %v730
    %764 = vmatprep.subr.mxu0 %v733
    %765 = vmatpush1.msra.mxu0 %v732
    %766 = vmatprep.subr.mxu0 %v735
    %767 = vmatpush1.msra.mxu0 %v734
    %768 = vmatprep.subr.mxu0 %v737
    %769 = vmatpush1.msra.mxu0 %v736
    %770 = vmatprep.subr.mxu0 %v739
    %771 = vmatpush1.msra.mxu0 %v738
    %772 = vmatprep.subr.mxu0 %v741
    %773 = vmatpush1.msra.mxu0 %v740
    %774 = vmatprep.subr.mxu0 %v743
    %775 = vmatpush1.msra.mxu0 %v742
    %776 = vmatprep.subr.mxu0 %v745
    %777 = vmatpush1.msra.mxu0 %v744
    %778 = vmatprep.subr.mxu0 %v747
    %779 = vmatpush1.msra.mxu0 %v746
    %780 = vmatprep.subr.mxu0 %v749
    %781 = vmatpush1.msra.mxu0 %v748
    %782 = vmatprep.subr.mxu0 %v751
    %783 = vmatpush1.msra.mxu0 %v750
    %784 = vmatprep.subr.mxu0 %v753
    %785 = vmatpush1.msra.mxu0 %v752
    %786 = vmatprep.subr.mxu0 %v755
    %787 = vmatpush1.msra.mxu0 %v754
    %788 = vmatprep.subr.mxu0 %v757
    %789 = vmatpush1.msra.mxu0 %v756
    %790 = vmatprep.subr.mxu0 0.0
    %791 = vmatpush1.msra.mxu0 0.0
    %792 = vmatprep.subr.mxu0 0.0
    %793 = vmatpush1.msra.mxu0 0.0
    %794 = vmatprep.subr.mxu0 0.0
    %795 = vmatpush1.msra.mxu0 0.0
    %796 = vmatprep.subr.mxu0 0.0
    %797 = vmatpush1.msra.mxu0 0.0
    %798 = vmatprep.subr.mxu0 0.0
    %799 = vmatpush1.msra.mxu0 0.0
    %800 = vmatprep.subr.mxu0 0.0
    %801 = vmatpush1.msra.mxu0 0.0
    %802 = vmatprep.subr.mxu0 0.0
    %803 = vmatpush1.msra.mxu0 0.0
    %804 = vmatprep.subr.mxu0 0.0
    %805 = vmatpush1.msra.mxu0 0.0
    %806 = vmatprep.subr.mxu0 0.0
    %807 = vmatpush1.msra.mxu0 0.0
    %808 = vmatprep.subr.mxu0 0.0
    %809 = vmatpush1.msra.mxu0 0.0
    %810 = vmatprep.subr.mxu0 0.0
    %811 = vmatpush1.msra.mxu0 0.0
    %812 = vmatprep.subr.mxu0 0.0
    %813 = vmatpush1.msra.mxu0 0.0
    %814 = vmatprep.subr.mxu0 0.0
    %815 = vmatpush1.msra.mxu0 0.0
    %816 = vmatprep.subr.mxu0 0.0
    %817 = vmatpush1.msra.mxu0 0.0
    %818 = vmatprep.subr.mxu0 0.0
    %819 = vmatpush1.msra.mxu0 0.0
    %820 = vmatprep.subr.mxu0 0.0
    %821 = vmatpush1.msra.mxu0 0.0
    %822 = vmatprep.mubr.f32.mxu0 0.0
    %823 = vmatmul.mubr.f32.gmra.mrb[0].mxu0 %v67
    %v824 = vpop.f32.mrb[0].mxu0
    %v825 = vadd.f32 0.0, %v824
    %v826 = vpop.f32.mrb[0].mxu0
    %v827 = vadd.f32 0.0, %v826
    %828 = vmatprep.mubr.f32.mxu0 0.0
    %829 = vmatmul.mubr.f32.gmra.mrb[0].mxu0 %v68
    %v830 = vpop.f32.mrb[0].mxu0
    %v831 = vadd.f32 0.0, %v830
    %v832 = vpop.f32.mrb[0].mxu0
    %v833 = vadd.f32 0.0, %v832
    %834 = vmatprep.mubr.f32.mxu0 0.0
    %835 = vmatmul.mubr.f32.gmra.mrb[0].mxu0 %v69
    %v836 = vpop.f32.mrb[0].mxu0
    %v837 = vadd.f32 0.0, %v836
    %v838 = vpop.f32.mrb[0].mxu0
    %v839 = vadd.f32 0.0, %v838
    %840 = vmatprep.mubr.f32.mxu0 0.0
    %841 = vmatmul.mubr.f32.gmra.mrb[0].mxu0 %v70
    %v842 = vpop.f32.mrb[0].mxu0
    %v843 = vadd.f32 0.0, %v842
    %v844 = vpop.f32.mrb[0].mxu0
    %v845 = vadd.f32 0.0, %v844
    %846 = vmatprep.mubr.f32.mxu0 0.0
    %847 = vmatmul.mubr.f32.gmra.mrb[0].mxu0 %v71
    %v848 = vpop.f32.mrb[0].mxu0
    %v849 = vadd.f32 0.0, %v848
    %v850 = vpop.f32.mrb[0].mxu0
    %v851 = vadd.f32 0.0, %v850
    %852 = vmatprep.mubr.f32.mxu0 0.0
    %853 = vmatmul.mubr.f32.gmra.mrb[0].mxu0 %v72
    %v854 = vpop.f32.mrb[0].mxu0
    %v855 = vadd.f32 0.0, %v854
    %v856 = vpop.f32.mrb[0].mxu0
    %v857 = vadd.f32 0.0, %v856
    %858 = vmatprep.mubr.f32.mxu0 0.0
    %859 = vmatmul.mubr.f32.gmra.mrb[0].mxu0 %v73
    %v860 = vpop.f32.mrb[0].mxu0
    %v861 = vadd.f32 0.0, %v860
    %v862 = vpop.f32.mrb[0].mxu0
    %v863 = vadd.f32 0.0, %v862
    %864 = vmatprep.mubr.f32.mxu0 0.0
    %865 = vmatmul.mubr.f32.gmra.mrb[0].mxu0 %v74
    %v866 = vpop.f32.mrb[0].mxu0
    %v867 = vpop.f32.mrb[0].mxu0
    %868 = vdwg.mxu0
    %869 = vmatprep.subr.mxu0 %v694
    %870 = vmatpush1.msra.mxu0 %v693
    %871 = vmatprep.subr.mxu0 %v696
    %872 = vmatpush1.msra.mxu0 %v695
    %873 = vmatprep.subr.mxu0 %v698
    %874 = vmatpush1.msra.mxu0 %v697
    %875 = vmatprep.subr.mxu0 %v700
    %876 = vmatpush1.msra.mxu0 %v699
    %877 = vmatprep.subr.mxu0 %v702
    %878 = vmatpush1.msra.mxu0 %v701
    %879 = vmatprep.subr.mxu0 %v704
    %880 = vmatpush1.msra.mxu0 %v703
    %881 = vmatprep.subr.mxu0 %v706
    %882 = vmatpush1.msra.mxu0 %v705
    %883 = vmatprep.subr.mxu0 %v708
    %884 = vmatpush1.msra.mxu0 %v707
    %885 = vmatprep.subr.mxu0 %v710
    %886 = vmatpush1.msra.mxu0 %v709
    %887 = vmatprep.subr.mxu0 %v712
    %888 = vmatpush1.msra.mxu0 %v711
    %889 = vmatprep.subr.mxu0 %v714
    %890 = vmatpush1.msra.mxu0 %v713
    %891 = vmatprep.subr.mxu0 %v716
    %892 = vmatpush1.msra.mxu0 %v715
    %893 = vmatprep.subr.mxu0 %v718
    %894 = vmatpush1.msra.mxu0 %v717
    %895 = vmatprep.subr.mxu0 %v720
    %896 = vmatpush1.msra.mxu0 %v719
    %897 = vmatprep.subr.mxu0 %v722
    %898 = vmatpush1.msra.mxu0 %v721
    %899 = vmatprep.subr.mxu0 %v724
    %900 = vmatpush1.msra.mxu0 %v723
    %901 = vmatprep.subr.mxu0 0.0
    %902 = vmatpush1.msra.mxu0 0.0
    %903 = vmatprep.subr.mxu0 0.0
    %904 = vmatpush1.msra.mxu0 0.0
    %905 = vmatprep.subr.mxu0 0.0
    %906 = vmatpush1.msra.mxu0 0.0
    %907 = vmatprep.subr.mxu0 0.0
    %908 = vmatpush1.msra.mxu0 0.0
    %909 = vmatprep.subr.mxu0 0.0
    %910 = vmatpush1.msra.mxu0 0.0
    %911 = vmatprep.subr.mxu0 0.0
    %912 = vmatpush1.msra.mxu0 0.0
    %913 = vmatprep.subr.mxu0 0.0
    %914 = vmatpush1.msra.mxu0 0.0
    %915 = vmatprep.subr.mxu0 0.0
    %916 = vmatpush1.msra.mxu0 0.0
    %917 = vmatprep.subr.mxu0 0.0
    %918 = vmatpush1.msra.mxu0 0.0
    %919 = vmatprep.subr.mxu0 0.0
    %920 = vmatpush1.msra.mxu0 0.0
    %921 = vmatprep.subr.mxu0 0.0
    %922 = vmatpush1.msra.mxu0 0.0
    %923 = vmatprep.subr.mxu0 0.0
    %924 = vmatpush1.msra.mxu0 0.0
    %925 = vmatprep.subr.mxu0 0.0
    %926 = vmatpush1.msra.mxu0 0.0
    %927 = vmatprep.subr.mxu0 0.0
    %928 = vmatpush1.msra.mxu0 0.0
    %929 = vmatprep.subr.mxu0 0.0
    %930 = vmatpush1.msra.mxu0 0.0
    %931 = vmatprep.subr.mxu0 0.0
    %932 = vmatpush1.msra.mxu0 0.0
    %933 = vmatprep.mubr.f32.mxu0 0.0
    %934 = vmatmul.mubr.f32.gmra.mrb[0].mxu0 %v66
    %v935 = vpop.f32.mrb[0].mxu0
    %v936 = vadd.f32 %v825, %v935
    %v937 = vpop.f32.mrb[0].mxu0
    %v938 = vadd.f32 %v827, %v937
    %939 = vmatprep.mubr.f32.mxu0 0.0
    %940 = vmatmul.mubr.f32.gmra.mrb[0].mxu0 %v67
    %v941 = vpop.f32.mrb[0].mxu0
    %v942 = vadd.f32 %v831, %v941
    %v943 = vpop.f32.mrb[0].mxu0
    %v944 = vadd.f32 %v833, %v943
    %945 = vmatprep.mubr.f32.mxu0 0.0
    %946 = vmatmul.mubr.f32.gmra.mrb[0].mxu0 %v68
    %v947 = vpop.f32.mrb[0].mxu0
    %v948 = vadd.f32 %v837, %v947
    %v949 = vpop.f32.mrb[0].mxu0
    %v950 = vadd.f32 %v839, %v949
    %951 = vmatprep.mubr.f32.mxu0 0.0
    %952 = vmatmul.mubr.f32.gmra.mrb[0].mxu0 %v69
    %v953 = vpop.f32.mrb[0].mxu0
    %v954 = vadd.f32 %v843, %v953
    %v955 = vpop.f32.mrb[0].mxu0
    %v956 = vadd.f32 %v845, %v955
    %957 = vmatprep.mubr.f32.mxu0 0.0
    %958 = vmatmul.mubr.f32.gmra.mrb[0].mxu0 %v70
    %v959 = vpop.f32.mrb[0].mxu0
    %v960 = vadd.f32 %v849, %v959
    %v961 = vpop.f32.mrb[0].mxu0
    %v962 = vadd.f32 %v851, %v961
    %963 = vmatprep.mubr.f32.mxu0 0.0
    %964 = vmatmul.mubr.f32.gmra.mrb[0].mxu0 %v71
    %v965 = vpop.f32.mrb[0].mxu0
    %v966 = vadd.f32 %v855, %v965
    %v967 = vpop.f32.mrb[0].mxu0
    %v968 = vadd.f32 %v857, %v967
    %969 = vmatprep.mubr.f32.mxu0 0.0
    %970 = vmatmul.mubr.f32.gmra.mrb[0].mxu0 %v72
    %v971 = vpop.f32.mrb[0].mxu0
    %v972 = vadd.f32 %v861, %v971
    %v973 = vpop.f32.mrb[0].mxu0
    %v974 = vadd.f32 %v863, %v973
    %975 = vmatprep.mubr.f32.mxu0 0.0
    %976 = vmatmul.mubr.f32.gmra.mrb[0].mxu0 %v73
    %v977 = vpop.f32.mrb[0].mxu0
    %v978 = vpop.f32.mrb[0].mxu0
    %979 = vdwg.mxu0
    %v980 = vmax.f32 %v936, %v938
    %v981 = vmax.f32 %v942, %v944
    %v982 = vmax.f32 %v948, %v950
    %v983 = vmax.f32 %v954, %v956
    %v984 = vmax.f32 %v960, %v962
    %v985 = vmax.f32 %v966, %v968
    %v986 = vmax.f32 %v972, %v974
    %s987 = scalar_lea.vmem [#allocation2], 1536
    %v988 = vld [vmem:[%s987] sm:$0xff]
    %v989 = vld [vmem:[%s987 + $0x8] sm:$0xff]
    %v990 = vld [vmem:[%s987 + $0x10] sm:$0xff]
    %v991 = vld [vmem:[%s987 + $0x18] sm:$0xff]
    %v992 = vld [vmem:[%s987 + $0x20] sm:$0xff]
    %v993 = vld [vmem:[%s987 + $0x28] sm:$0xff]
    %v994 = vld [vmem:[%s987 + $0x30] sm:$0xff]
    %v995 = vld [vmem:[%s987 + $0x38] sm:$0xff]
    %v996 = vld [vmem:[%s987 + $0x40] sm:$0xff]
    %v997 = vld [vmem:[%s987 + $0x48] sm:$0xff]
    %v998 = vld [vmem:[%s987 + $0x50] sm:$0xff]
    %v999 = vld [vmem:[%s987 + $0x58] sm:$0xff]
    %v1000 = vld [vmem:[%s987 + $0x60] sm:$0xff]
    %v1001 = vld [vmem:[%s987 + $0x68] sm:$0xff]
    %v1002 = vld [vmem:[%s987 + $0x70] sm:$0xff]
    %v1003 = vld [vmem:[%s987 + $0x78] sm:$0xff]
    %v1004 = vld [vmem:[%s987 + $0x80] sm:$0xff]
    %v1005 = vld [vmem:[%s987 + $0x88] sm:$0xff]
    %v1006 = vld [vmem:[%s987 + $0x90] sm:$0xff]
    %v1007 = vld [vmem:[%s987 + $0x98] sm:$0xff]
    %v1008 = vld [vmem:[%s987 + $0xa0] sm:$0xff]
    %v1009 = vld [vmem:[%s987 + $0xa8] sm:$0xff]
    %v1010 = vld [vmem:[%s987 + $0xb0] sm:$0xff]
    %v1011 = vld [vmem:[%s987 + $0xb8] sm:$0xff]
    %v1012 = vld [vmem:[%s987 + $0xc0] sm:$0xff]
    %v1013 = vld [vmem:[%s987 + $0xc8] sm:$0xff]
    %v1014 = vld [vmem:[%s987 + $0xd0] sm:$0xff]
    %v1015 = vld [vmem:[%s987 + $0xd8] sm:$0xff]
    %v1016 = vld [vmem:[%s987 + $0xe0] sm:$0xff]
    %v1017 = vld [vmem:[%s987 + $0xe8] sm:$0xff]
    %v1018 = vld [vmem:[%s987 + $0xf0] sm:$0xff]
    %v1019 = vld [vmem:[%s987 + $0xf8] sm:$0xff]
    %s1020 = scalar_lea.vmem [#allocation2], 1792
    %v1021 = vld [vmem:[%s1020] sm:$0xff]
    %v1022 = vld [vmem:[%s1020 + $0x8] sm:$0xff]
    %v1023 = vld [vmem:[%s1020 + $0x10] sm:$0xff]
    %v1024 = vld [vmem:[%s1020 + $0x18] sm:$0xff]
    %v1025 = vld [vmem:[%s1020 + $0x20] sm:$0xff]
    %v1026 = vld [vmem:[%s1020 + $0x28] sm:$0xff]
    %v1027 = vld [vmem:[%s1020 + $0x30] sm:$0xff]
    %v1028 = vld [vmem:[%s1020 + $0x38] sm:$0xff]
    %v1029 = vld [vmem:[%s1020 + $0x40] sm:$0xff]
    %v1030 = vld [vmem:[%s1020 + $0x48] sm:$0xff]
    %v1031 = vld [vmem:[%s1020 + $0x50] sm:$0xff]
    %v1032 = vld [vmem:[%s1020 + $0x58] sm:$0xff]
    %v1033 = vld [vmem:[%s1020 + $0x60] sm:$0xff]
    %v1034 = vld [vmem:[%s1020 + $0x68] sm:$0xff]
    %v1035 = vld [vmem:[%s1020 + $0x70] sm:$0xff]
    %v1036 = vld [vmem:[%s1020 + $0x78] sm:$0xff]
    %v1037 = vld [vmem:[%s1020 + $0x80] sm:$0xff]
    %v1038 = vld [vmem:[%s1020 + $0x88] sm:$0xff]
    %v1039 = vld [vmem:[%s1020 + $0x90] sm:$0xff]
    %v1040 = vld [vmem:[%s1020 + $0x98] sm:$0xff]
    %v1041 = vld [vmem:[%s1020 + $0xa0] sm:$0xff]
    %v1042 = vld [vmem:[%s1020 + $0xa8] sm:$0xff]
    %v1043 = vld [vmem:[%s1020 + $0xb0] sm:$0xff]
    %v1044 = vld [vmem:[%s1020 + $0xb8] sm:$0xff]
    %v1045 = vld [vmem:[%s1020 + $0xc0] sm:$0xff]
    %v1046 = vld [vmem:[%s1020 + $0xc8] sm:$0xff]
    %v1047 = vld [vmem:[%s1020 + $0xd0] sm:$0xff]
    %v1048 = vld [vmem:[%s1020 + $0xd8] sm:$0xff]
    %v1049 = vld [vmem:[%s1020 + $0xe0] sm:$0xff]
    %v1050 = vld [vmem:[%s1020 + $0xe8] sm:$0xff]
    %v1051 = vld [vmem:[%s1020 + $0xf0] sm:$0xff]
    %v1052 = vld [vmem:[%s1020 + $0xf8] sm:$0xff]
    %1053 = vmatprep.subr.mxu0 %v1022
    %1054 = vmatpush1.msra.mxu0 %v1021
    %1055 = vmatprep.subr.mxu0 %v1024
    %1056 = vmatpush1.msra.mxu0 %v1023
    %1057 = vmatprep.subr.mxu0 %v1026
    %1058 = vmatpush1.msra.mxu0 %v1025
    %1059 = vmatprep.subr.mxu0 %v1028
    %1060 = vmatpush1.msra.mxu0 %v1027
    %1061 = vmatprep.subr.mxu0 %v1030
    %1062 = vmatpush1.msra.mxu0 %v1029
    %1063 = vmatprep.subr.mxu0 %v1032
    %1064 = vmatpush1.msra.mxu0 %v1031
    %1065 = vmatprep.subr.mxu0 %v1034
    %1066 = vmatpush1.msra.mxu0 %v1033
    %1067 = vmatprep.subr.mxu0 %v1036
    %1068 = vmatpush1.msra.mxu0 %v1035
    %1069 = vmatprep.subr.mxu0 %v1038
    %1070 = vmatpush1.msra.mxu0 %v1037
    %1071 = vmatprep.subr.mxu0 %v1040
    %1072 = vmatpush1.msra.mxu0 %v1039
    %1073 = vmatprep.subr.mxu0 %v1042
    %1074 = vmatpush1.msra.mxu0 %v1041
    %1075 = vmatprep.subr.mxu0 %v1044
    %1076 = vmatpush1.msra.mxu0 %v1043
    %1077 = vmatprep.subr.mxu0 %v1046
    %1078 = vmatpush1.msra.mxu0 %v1045
    %1079 = vmatprep.subr.mxu0 %v1048
    %1080 = vmatpush1.msra.mxu0 %v1047
    %1081 = vmatprep.subr.mxu0 %v1050
    %1082 = vmatpush1.msra.mxu0 %v1049
    %1083 = vmatprep.subr.mxu0 %v1052
    %1084 = vmatpush1.msra.mxu0 %v1051
    %1085 = vmatprep.subr.mxu0 0.0
    %1086 = vmatpush1.msra.mxu0 0.0
    %1087 = vmatprep.subr.mxu0 0.0
    %1088 = vmatpush1.msra.mxu0 0.0
    %1089 = vmatprep.subr.mxu0 0.0
    %1090 = vmatpush1.msra.mxu0 0.0
    %1091 = vmatprep.subr.mxu0 0.0
    %1092 = vmatpush1.msra.mxu0 0.0
    %1093 = vmatprep.subr.mxu0 0.0
    %1094 = vmatpush1.msra.mxu0 0.0
    %1095 = vmatprep.subr.mxu0 0.0
    %1096 = vmatpush1.msra.mxu0 0.0
    %1097 = vmatprep.subr.mxu0 0.0
    %1098 = vmatpush1.msra.mxu0 0.0
    %1099 = vmatprep.subr.mxu0 0.0
    %1100 = vmatpush1.msra.mxu0 0.0
    %1101 = vmatprep.subr.mxu0 0.0
    %1102 = vmatpush1.msra.mxu0 0.0
    %1103 = vmatprep.subr.mxu0 0.0
    %1104 = vmatpush1.msra.mxu0 0.0
    %1105 = vmatprep.subr.mxu0 0.0
    %1106 = vmatpush1.msra.mxu0 0.0
    %1107 = vmatprep.subr.mxu0 0.0
    %1108 = vmatpush1.msra.mxu0 0.0
    %1109 = vmatprep.subr.mxu0 0.0
    %1110 = vmatpush1.msra.mxu0 0.0
    %1111 = vmatprep.subr.mxu0 0.0
    %1112 = vmatpush1.msra.mxu0 0.0
    %1113 = vmatprep.subr.mxu0 0.0
    %1114 = vmatpush1.msra.mxu0 0.0
    %1115 = vmatprep.subr.mxu0 0.0
    %1116 = vmatpush1.msra.mxu0 0.0
    %1117 = vmatprep.mubr.f32.mxu0 0.0
    %1118 = vmatmul.mubr.f32.gmra.mrb[0].mxu0 %v67
    %v1119 = vpop.f32.mrb[0].mxu0
    %v1120 = vadd.f32 0.0, %v1119
    %v1121 = vpop.f32.mrb[0].mxu0
    %v1122 = vadd.f32 0.0, %v1121
    %1123 = vmatprep.mubr.f32.mxu0 0.0
    %1124 = vmatmul.mubr.f32.gmra.mrb[0].mxu0 %v68
    %v1125 = vpop.f32.mrb[0].mxu0
    %v1126 = vadd.f32 0.0, %v1125
    %v1127 = vpop.f32.mrb[0].mxu0
    %v1128 = vadd.f32 0.0, %v1127
    %1129 = vmatprep.mubr.f32.mxu0 0.0
    %1130 = vmatmul.mubr.f32.gmra.mrb[0].mxu0 %v69
    %v1131 = vpop.f32.mrb[0].mxu0
    %v1132 = vadd.f32 0.0, %v1131
    %v1133 = vpop.f32.mrb[0].mxu0
    %v1134 = vadd.f32 0.0, %v1133
    %1135 = vmatprep.mubr.f32.mxu0 0.0
    %1136 = vmatmul.mubr.f32.gmra.mrb[0].mxu0 %v70
    %v1137 = vpop.f32.mrb[0].mxu0
    %v1138 = vadd.f32 0.0, %v1137
    %v1139 = vpop.f32.mrb[0].mxu0
    %v1140 = vadd.f32 0.0, %v1139
    %1141 = vmatprep.mubr.f32.mxu0 0.0
    %1142 = vmatmul.mubr.f32.gmra.mrb[0].mxu0 %v71
    %v1143 = vpop.f32.mrb[0].mxu0
    %v1144 = vadd.f32 0.0, %v1143
    %v1145 = vpop.f32.mrb[0].mxu0
    %v1146 = vadd.f32 0.0, %v1145
    %1147 = vmatprep.mubr.f32.mxu0 0.0
    %1148 = vmatmul.mubr.f32.gmra.mrb[0].mxu0 %v72
    %v1149 = vpop.f32.mrb[0].mxu0
    %v1150 = vadd.f32 0.0, %v1149
    %v1151 = vpop.f32.mrb[0].mxu0
    %v1152 = vadd.f32 0.0, %v1151
    %1153 = vmatprep.mubr.f32.mxu0 0.0
    %1154 = vmatmul.mubr.f32.gmra.mrb[0].mxu0 %v73
    %v1155 = vpop.f32.mrb[0].mxu0
    %v1156 = vadd.f32 0.0, %v1155
    %v1157 = vpop.f32.mrb[0].mxu0
    %v1158 = vadd.f32 0.0, %v1157
    %1159 = vmatprep.mubr.f32.mxu0 0.0
    %1160 = vmatmul.mubr.f32.gmra.mrb[0].mxu0 %v74
    %v1161 = vpop.f32.mrb[0].mxu0
    %v1162 = vpop.f32.mrb[0].mxu0
    %1163 = vdwg.mxu0
    %1164 = vmatprep.subr.mxu0 %v989
    %1165 = vmatpush1.msra.mxu0 %v988
    %1166 = vmatprep.subr.mxu0 %v991
    %1167 = vmatpush1.msra.mxu0 %v990
    %1168 = vmatprep.subr.mxu0 %v993
    %1169 = vmatpush1.msra.mxu0 %v992
    %1170 = vmatprep.subr.mxu0 %v995
    %1171 = vmatpush1.msra.mxu0 %v994
    %1172 = vmatprep.subr.mxu0 %v997
    %1173 = vmatpush1.msra.mxu0 %v996
    %1174 = vmatprep.subr.mxu0 %v999
    %1175 = vmatpush1.msra.mxu0 %v998
    %1176 = vmatprep.subr.mxu0 %v1001
    %1177 = vmatpush1.msra.mxu0 %v1000
    %1178 = vmatprep.subr.mxu0 %v1003
    %1179 = vmatpush1.msra.mxu0 %v1002
    %1180 = vmatprep.subr.mxu0 %v1005
    %1181 = vmatpush1.msra.mxu0 %v1004
    %1182 = vmatprep.subr.mxu0 %v1007
    %1183 = vmatpush1.msra.mxu0 %v1006
    %1184 = vmatprep.subr.mxu0 %v1009
    %1185 = vmatpush1.msra.mxu0 %v1008
    %1186 = vmatprep.subr.mxu0 %v1011
    %1187 = vmatpush1.msra.mxu0 %v1010
    %1188 = vmatprep.subr.mxu0 %v1013
    %1189 = vmatpush1.msra.mxu0 %v1012
    %1190 = vmatprep.subr.mxu0 %v1015
    %1191 = vmatpush1.msra.mxu0 %v1014
    %1192 = vmatprep.subr.mxu0 %v1017
    %1193 = vmatpush1.msra.mxu0 %v1016
    %1194 = vmatprep.subr.mxu0 %v1019
    %1195 = vmatpush1.msra.mxu0 %v1018
    %1196 = vmatprep.subr.mxu0 0.0
    %1197 = vmatpush1.msra.mxu0 0.0
    %1198 = vmatprep.subr.mxu0 0.0
    %1199 = vmatpush1.msra.mxu0 0.0
    %1200 = vmatprep.subr.mxu0 0.0
    %1201 = vmatpush1.msra.mxu0 0.0
    %1202 = vmatprep.subr.mxu0 0.0
    %1203 = vmatpush1.msra.mxu0 0.0
    %1204 = vmatprep.subr.mxu0 0.0
    %1205 = vmatpush1.msra.mxu0 0.0
    %1206 = vmatprep.subr.mxu0 0.0
    %1207 = vmatpush1.msra.mxu0 0.0
    %1208 = vmatprep.subr.mxu0 0.0
    %1209 = vmatpush1.msra.mxu0 0.0
    %1210 = vmatprep.subr.mxu0 0.0
    %1211 = vmatpush1.msra.mxu0 0.0
    %1212 = vmatprep.subr.mxu0 0.0
    %1213 = vmatpush1.msra.mxu0 0.0
    %1214 = vmatprep.subr.mxu0 0.0
    %1215 = vmatpush1.msra.mxu0 0.0
    %1216 = vmatprep.subr.mxu0 0.0
    %1217 = vmatpush1.msra.mxu0 0.0
    %1218 = vmatprep.subr.mxu0 0.0
    %1219 = vmatpush1.msra.mxu0 0.0
    %1220 = vmatprep.subr.mxu0 0.0
    %1221 = vmatpush1.msra.mxu0 0.0
    %1222 = vmatprep.subr.mxu0 0.0
    %1223 = vmatpush1.msra.mxu0 0.0
    %1224 = vmatprep.subr.mxu0 0.0
    %1225 = vmatpush1.msra.mxu0 0.0
    %1226 = vmatprep.subr.mxu0 0.0
    %1227 = vmatpush1.msra.mxu0 0.0
    %1228 = vmatprep.mubr.f32.mxu0 0.0
    %1229 = vmatmul.mubr.f32.gmra.mrb[0].mxu0 %v66
    %v1230 = vpop.f32.mrb[0].mxu0
    %v1231 = vadd.f32 %v1120, %v1230
    %v1232 = vpop.f32.mrb[0].mxu0
    %v1233 = vadd.f32 %v1122, %v1232
    %1234 = vmatprep.mubr.f32.mxu0 0.0
    %1235 = vmatmul.mubr.f32.gmra.mrb[0].mxu0 %v67
    %v1236 = vpop.f32.mrb[0].mxu0
    %v1237 = vadd.f32 %v1126, %v1236
    %v1238 = vpop.f32.mrb[0].mxu0
    %v1239 = vadd.f32 %v1128, %v1238
    %1240 = vmatprep.mubr.f32.mxu0 0.0
    %1241 = vmatmul.mubr.f32.gmra.mrb[0].mxu0 %v68
    %v1242 = vpop.f32.mrb[0].mxu0
    %v1243 = vadd.f32 %v1132, %v1242
    %v1244 = vpop.f32.mrb[0].mxu0
    %v1245 = vadd.f32 %v1134, %v1244
    %1246 = vmatprep.mubr.f32.mxu0 0.0
    %1247 = vmatmul.mubr.f32.gmra.mrb[0].mxu0 %v69
    %v1248 = vpop.f32.mrb[0].mxu0
    %v1249 = vadd.f32 %v1138, %v1248
    %v1250 = vpop.f32.mrb[0].mxu0
    %v1251 = vadd.f32 %v1140, %v1250
    %1252 = vmatprep.mubr.f32.mxu0 0.0
    %1253 = vmatmul.mubr.f32.gmra.mrb[0].mxu0 %v70
    %v1254 = vpop.f32.mrb[0].mxu0
    %v1255 = vadd.f32 %v1144, %v1254
    %v1256 = vpop.f32.mrb[0].mxu0
    %v1257 = vadd.f32 %v1146, %v1256
    %1258 = vmatprep.mubr.f32.mxu0 0.0
    %1259 = vmatmul.mubr.f32.gmra.mrb[0].mxu0 %v71
    %v1260 = vpop.f32.mrb[0].mxu0
    %v1261 = vadd.f32 %v1150, %v1260
    %v1262 = vpop.f32.mrb[0].mxu0
    %v1263 = vadd.f32 %v1152, %v1262
    %1264 = vmatprep.mubr.f32.mxu0 0.0
    %1265 = vmatmul.mubr.f32.gmra.mrb[0].mxu0 %v72
    %v1266 = vpop.f32.mrb[0].mxu0
    %v1267 = vadd.f32 %v1156, %v1266
    %v1268 = vpop.f32.mrb[0].mxu0
    %v1269 = vadd.f32 %v1158, %v1268
    %1270 = vmatprep.mubr.f32.mxu0 0.0
    %1271 = vmatmul.mubr.f32.gmra.mrb[0].mxu0 %v73
    %v1272 = vpop.f32.mrb[0].mxu0
    %v1273 = vpop.f32.mrb[0].mxu0
    %1274 = vdwg.mxu0
    %v1275 = vmax.f32 %v1231, %v1233
    %v1276 = vmax.f32 %v1237, %v1239
    %v1277 = vmax.f32 %v1243, %v1245
    %v1278 = vmax.f32 %v1249, %v1251
    %v1279 = vmax.f32 %v1255, %v1257
    %v1280 = vmax.f32 %v1261, %v1263
    %v1281 = vmax.f32 %v1267, %v1269
    %v1282 = vmax.f32 %v980, %v1275
    %v1283 = vmax.f32 %v981, %v1276
    %v1284 = vmax.f32 %v982, %v1277
    %v1285 = vmax.f32 %v983, %v1278
    %v1286 = vmax.f32 %v984, %v1279
    %v1287 = vmax.f32 %v985, %v1280
    %v1288 = vmax.f32 %v986, %v1281
    %v1289 = vadd.f32 %v1282, %v676
    %v1290 = vadd.f32 %v1283, %v676
    %v1291 = vadd.f32 %v1284, %v676
    %v1292 = vadd.f32 %v1285, %v676
    %v1293 = vadd.f32 %v1286, %v676
    %v1294 = vadd.f32 %v1287, %v676
    %v1295 = vadd.f32 %v1288, %v676
    %v1296 = vmax.f32 %v1289, 0.0
    %v1297 = vmax.f32 %v1290, 0.0
    %v1298 = vmax.f32 %v1291, 0.0
    %v1299 = vmax.f32 %v1292, 0.0
    %v1300 = vmax.f32 %v1293, 0.0
    %v1301 = vmax.f32 %v1294, 0.0
    %v1302 = vmax.f32 %v1295, 0.0
    %v1303 = vld [vmem:[%s4] sm:$0x1]
    %v1304 = vld [vmem:[#allocation4] sm:$0xff]
    %v1305 = vld [vmem:[#allocation4 + $0x8] sm:$0xff]
    %v1306 = vld [vmem:[#allocation4 + $0x10] sm:$0xff]
    %v1307 = vld [vmem:[#allocation4 + $0x18] sm:$0xff]
    %v1308 = vld [vmem:[#allocation4 + $0x20] sm:$0xff]
    %v1309 = vld [vmem:[#allocation4 + $0x28] sm:$0xff]
    %v1310 = vld [vmem:[#allocation4 + $0x30] sm:$0xff]
    %v1311 = vld [vmem:[#allocation4 + $0x38] sm:$0xff]
    %v1312 = vld [vmem:[#allocation4 + $0x40] sm:$0xff]
    %v1313 = vld [vmem:[#allocation4 + $0x48] sm:$0xff]
    %v1314 = vld [vmem:[#allocation4 + $0x50] sm:$0xff]
    %v1315 = vld [vmem:[#allocation4 + $0x58] sm:$0xff]
    %v1316 = vld [vmem:[#allocation4 + $0x60] sm:$0xff]
    %v1317 = vld [vmem:[#allocation4 + $0x68] sm:$0xff]
    %v1318 = vld [vmem:[#allocation4 + $0x70] sm:$0xff]
    %v1319 = vld [vmem:[#allocation4 + $0x78] sm:$0xff]
    %v1320 = vld [vmem:[#allocation4 + $0x80] sm:$0xff]
    %v1321 = vld [vmem:[#allocation4 + $0x88] sm:$0xff]
    %v1322 = vld [vmem:[#allocation4 + $0x90] sm:$0xff]
    %v1323 = vld [vmem:[#allocation4 + $0x98] sm:$0xff]
    %v1324 = vld [vmem:[#allocation4 + $0xa0] sm:$0xff]
    %v1325 = vld [vmem:[#allocation4 + $0xa8] sm:$0xff]
    %v1326 = vld [vmem:[#allocation4 + $0xb0] sm:$0xff]
    %v1327 = vld [vmem:[#allocation4 + $0xb8] sm:$0xff]
    %v1328 = vld [vmem:[#allocation4 + $0xc0] sm:$0xff]
    %v1329 = vld [vmem:[#allocation4 + $0xc8] sm:$0xff]
    %v1330 = vld [vmem:[#allocation4 + $0xd0] sm:$0xff]
    %v1331 = vld [vmem:[#allocation4 + $0xd8] sm:$0xff]
    %v1332 = vld [vmem:[#allocation4 + $0xe0] sm:$0xff]
    %v1333 = vld [vmem:[#allocation4 + $0xe8] sm:$0xff]
    %v1334 = vld [vmem:[#allocation4 + $0xf0] sm:$0xff]
    %v1335 = vld [vmem:[#allocation4 + $0xf8] sm:$0xff]
    %s1336 = scalar_lea.vmem [#allocation4], 256
    %v1337 = vld [vmem:[%s1336] sm:$0xff]
    %v1338 = vld [vmem:[%s1336 + $0x8] sm:$0xff]
    %v1339 = vld [vmem:[%s1336 + $0x10] sm:$0xff]
    %v1340 = vld [vmem:[%s1336 + $0x18] sm:$0xff]
    %v1341 = vld [vmem:[%s1336 + $0x20] sm:$0xff]
    %v1342 = vld [vmem:[%s1336 + $0x28] sm:$0xff]
    %v1343 = vld [vmem:[%s1336 + $0x30] sm:$0xff]
    %v1344 = vld [vmem:[%s1336 + $0x38] sm:$0xff]
    %v1345 = vld [vmem:[%s1336 + $0x40] sm:$0xff]
    %v1346 = vld [vmem:[%s1336 + $0x48] sm:$0xff]
    %v1347 = vld [vmem:[%s1336 + $0x50] sm:$0xff]
    %v1348 = vld [vmem:[%s1336 + $0x58] sm:$0xff]
    %v1349 = vld [vmem:[%s1336 + $0x60] sm:$0xff]
    %v1350 = vld [vmem:[%s1336 + $0x68] sm:$0xff]
    %v1351 = vld [vmem:[%s1336 + $0x70] sm:$0xff]
    %v1352 = vld [vmem:[%s1336 + $0x78] sm:$0xff]
    %v1353 = vld [vmem:[%s1336 + $0x80] sm:$0xff]
    %v1354 = vld [vmem:[%s1336 + $0x88] sm:$0xff]
    %v1355 = vld [vmem:[%s1336 + $0x90] sm:$0xff]
    %v1356 = vld [vmem:[%s1336 + $0x98] sm:$0xff]
    %v1357 = vld [vmem:[%s1336 + $0xa0] sm:$0xff]
    %v1358 = vld [vmem:[%s1336 + $0xa8] sm:$0xff]
    %v1359 = vld [vmem:[%s1336 + $0xb0] sm:$0xff]
    %v1360 = vld [vmem:[%s1336 + $0xb8] sm:$0xff]
    %v1361 = vld [vmem:[%s1336 + $0xc0] sm:$0xff]
    %v1362 = vld [vmem:[%s1336 + $0xc8] sm:$0xff]
    %v1363 = vld [vmem:[%s1336 + $0xd0] sm:$0xff]
    %v1364 = vld [vmem:[%s1336 + $0xd8] sm:$0xff]
    %v1365 = vld [vmem:[%s1336 + $0xe0] sm:$0xff]
    %v1366 = vld [vmem:[%s1336 + $0xe8] sm:$0xff]
    %v1367 = vld [vmem:[%s1336 + $0xf0] sm:$0xff]
    %v1368 = vld [vmem:[%s1336 + $0xf8] sm:$0xff]
    %1369 = vmatprep.subr.mxu0 %v1338
    %1370 = vmatpush1.msra.mxu0 %v1337
    %1371 = vmatprep.subr.mxu0 %v1340
    %1372 = vmatpush1.msra.mxu0 %v1339
    %1373 = vmatprep.subr.mxu0 %v1342
    %1374 = vmatpush1.msra.mxu0 %v1341
    %1375 = vmatprep.subr.mxu0 %v1344
    %1376 = vmatpush1.msra.mxu0 %v1343
    %1377 = vmatprep.subr.mxu0 %v1346
    %1378 = vmatpush1.msra.mxu0 %v1345
    %1379 = vmatprep.subr.mxu0 %v1348
    %1380 = vmatpush1.msra.mxu0 %v1347
    %1381 = vmatprep.subr.mxu0 %v1350
    %1382 = vmatpush1.msra.mxu0 %v1349
    %1383 = vmatprep.subr.mxu0 %v1352
    %1384 = vmatpush1.msra.mxu0 %v1351
    %1385 = vmatprep.subr.mxu0 %v1354
    %1386 = vmatpush1.msra.mxu0 %v1353
    %1387 = vmatprep.subr.mxu0 %v1356
    %1388 = vmatpush1.msra.mxu0 %v1355
    %1389 = vmatprep.subr.mxu0 %v1358
    %1390 = vmatpush1.msra.mxu0 %v1357
    %1391 = vmatprep.subr.mxu0 %v1360
    %1392 = vmatpush1.msra.mxu0 %v1359
    %1393 = vmatprep.subr.mxu0 %v1362
    %1394 = vmatpush1.msra.mxu0 %v1361
    %1395 = vmatprep.subr.mxu0 %v1364
    %1396 = vmatpush1.msra.mxu0 %v1363
    %1397 = vmatprep.subr.mxu0 %v1366
    %1398 = vmatpush1.msra.mxu0 %v1365
    %1399 = vmatprep.subr.mxu0 %v1368
    %1400 = vmatpush1.msra.mxu0 %v1367
    %1401 = vmatprep.subr.mxu0 0.0
    %1402 = vmatpush1.msra.mxu0 0.0
    %1403 = vmatprep.subr.mxu0 0.0
    %1404 = vmatpush1.msra.mxu0 0.0
    %1405 = vmatprep.subr.mxu0 0.0
    %1406 = vmatpush1.msra.mxu0 0.0
    %1407 = vmatprep.subr.mxu0 0.0
    %1408 = vmatpush1.msra.mxu0 0.0
    %1409 = vmatprep.subr.mxu0 0.0
    %1410 = vmatpush1.msra.mxu0 0.0
    %1411 = vmatprep.subr.mxu0 0.0
    %1412 = vmatpush1.msra.mxu0 0.0
    %1413 = vmatprep.subr.mxu0 0.0
    %1414 = vmatpush1.msra.mxu0 0.0
    %1415 = vmatprep.subr.mxu0 0.0
    %1416 = vmatpush1.msra.mxu0 0.0
    %1417 = vmatprep.subr.mxu0 0.0
    %1418 = vmatpush1.msra.mxu0 0.0
    %1419 = vmatprep.subr.mxu0 0.0
    %1420 = vmatpush1.msra.mxu0 0.0
    %1421 = vmatprep.subr.mxu0 0.0
    %1422 = vmatpush1.msra.mxu0 0.0
    %1423 = vmatprep.subr.mxu0 0.0
    %1424 = vmatpush1.msra.mxu0 0.0
    %1425 = vmatprep.subr.mxu0 0.0
    %1426 = vmatpush1.msra.mxu0 0.0
    %1427 = vmatprep.subr.mxu0 0.0
    %1428 = vmatpush1.msra.mxu0 0.0
    %1429 = vmatprep.subr.mxu0 0.0
    %1430 = vmatpush1.msra.mxu0 0.0
    %1431 = vmatprep.subr.mxu0 0.0
    %1432 = vmatpush1.msra.mxu0 0.0
    %1433 = vmatprep.mubr.f32.mxu0 0.0
    %1434 = vmatmul.mubr.f32.gmra.mrb[0].mxu0 %v1296
    %v1435 = vpop.f32.mrb[0].mxu0
    %v1436 = vadd.f32 0.0, %v1435
    %v1437 = vpop.f32.mrb[0].mxu0
    %v1438 = vadd.f32 0.0, %v1437
    %1439 = vmatprep.mubr.f32.mxu0 0.0
    %1440 = vmatmul.mubr.f32.gmra.mrb[0].mxu0 %v1297
    %v1441 = vpop.f32.mrb[0].mxu0
    %v1442 = vadd.f32 0.0, %v1441
    %v1443 = vpop.f32.mrb[0].mxu0
    %v1444 = vadd.f32 0.0, %v1443
    %1445 = vmatprep.mubr.f32.mxu0 0.0
    %1446 = vmatmul.mubr.f32.gmra.mrb[0].mxu0 %v1298
    %v1447 = vpop.f32.mrb[0].mxu0
    %v1448 = vadd.f32 0.0, %v1447
    %v1449 = vpop.f32.mrb[0].mxu0
    %v1450 = vadd.f32 0.0, %v1449
    %1451 = vmatprep.mubr.f32.mxu0 0.0
    %1452 = vmatmul.mubr.f32.gmra.mrb[0].mxu0 %v1299
    %v1453 = vpop.f32.mrb[0].mxu0
    %v1454 = vadd.f32 0.0, %v1453
    %v1455 = vpop.f32.mrb[0].mxu0
    %v1456 = vadd.f32 0.0, %v1455
    %1457 = vmatprep.mubr.f32.mxu0 0.0
    %1458 = vmatmul.mubr.f32.gmra.mrb[0].mxu0 %v1300
    %v1459 = vpop.f32.mrb[0].mxu0
    %v1460 = vadd.f32 0.0, %v1459
    %v1461 = vpop.f32.mrb[0].mxu0
    %v1462 = vadd.f32 0.0, %v1461
    %1463 = vdwg.mxu0
    %1464 = vmatprep.subr.mxu0 %v1305
    %1465 = vmatpush1.msra.mxu0 %v1304
    %1466 = vmatprep.subr.mxu0 %v1307
    %1467 = vmatpush1.msra.mxu0 %v1306
    %1468 = vmatprep.subr.mxu0 %v1309
    %1469 = vmatpush1.msra.mxu0 %v1308
    %1470 = vmatprep.subr.mxu0 %v1311
    %1471 = vmatpush1.msra.mxu0 %v1310
    %1472 = vmatprep.subr.mxu0 %v1313
    %1473 = vmatpush1.msra.mxu0 %v1312
    %1474 = vmatprep.subr.mxu0 %v1315
    %1475 = vmatpush1.msra.mxu0 %v1314
    %1476 = vmatprep.subr.mxu0 %v1317
    %1477 = vmatpush1.msra.mxu0 %v1316
    %1478 = vmatprep.subr.mxu0 %v1319
    %1479 = vmatpush1.msra.mxu0 %v1318
    %1480 = vmatprep.subr.mxu0 %v1321
    %1481 = vmatpush1.msra.mxu0 %v1320
    %1482 = vmatprep.subr.mxu0 %v1323
    %1483 = vmatpush1.msra.mxu0 %v1322
    %1484 = vmatprep.subr.mxu0 %v1325
    %1485 = vmatpush1.msra.mxu0 %v1324
    %1486 = vmatprep.subr.mxu0 %v1327
    %1487 = vmatpush1.msra.mxu0 %v1326
    %1488 = vmatprep.subr.mxu0 %v1329
    %1489 = vmatpush1.msra.mxu0 %v1328
    %1490 = vmatprep.subr.mxu0 %v1331
    %1491 = vmatpush1.msra.mxu0 %v1330
    %1492 = vmatprep.subr.mxu0 %v1333
    %1493 = vmatpush1.msra.mxu0 %v1332
    %1494 = vmatprep.subr.mxu0 %v1335
    %1495 = vmatpush1.msra.mxu0 %v1334
    %1496 = vmatprep.subr.mxu0 0.0
    %1497 = vmatpush1.msra.mxu0 0.0
    %1498 = vmatprep.subr.mxu0 0.0
    %1499 = vmatpush1.msra.mxu0 0.0
    %1500 = vmatprep.subr.mxu0 0.0
    %1501 = vmatpush1.msra.mxu0 0.0
    %1502 = vmatprep.subr.mxu0 0.0
    %1503 = vmatpush1.msra.mxu0 0.0
    %1504 = vmatprep.subr.mxu0 0.0
    %1505 = vmatpush1.msra.mxu0 0.0
    %1506 = vmatprep.subr.mxu0 0.0
    %1507 = vmatpush1.msra.mxu0 0.0
    %1508 = vmatprep.subr.mxu0 0.0
    %1509 = vmatpush1.msra.mxu0 0.0
    %1510 = vmatprep.subr.mxu0 0.0
    %1511 = vmatpush1.msra.mxu0 0.0
    %1512 = vmatprep.subr.mxu0 0.0
    %1513 = vmatpush1.msra.mxu0 0.0
    %1514 = vmatprep.subr.mxu0 0.0
    %1515 = vmatpush1.msra.mxu0 0.0
    %1516 = vmatprep.subr.mxu0 0.0
    %1517 = vmatpush1.msra.mxu0 0.0
    %1518 = vmatprep.subr.mxu0 0.0
    %1519 = vmatpush1.msra.mxu0 0.0
    %1520 = vmatprep.subr.mxu0 0.0
    %1521 = vmatpush1.msra.mxu0 0.0
    %1522 = vmatprep.subr.mxu0 0.0
    %1523 = vmatpush1.msra.mxu0 0.0
    %1524 = vmatprep.subr.mxu0 0.0
    %1525 = vmatpush1.msra.mxu0 0.0
    %1526 = vmatprep.subr.mxu0 0.0
    %1527 = vmatpush1.msra.mxu0 0.0
    %1528 = vmatprep.mubr.f32.mxu0 0.0
    %1529 = vmatmul.mubr.f32.gmra.mrb[0].mxu0 %v685
    %v1530 = vpop.f32.mrb[0].mxu0
    %v1531 = vadd.f32 %v1436, %v1530
    %v1532 = vpop.f32.mrb[0].mxu0
    %v1533 = vadd.f32 %v1438, %v1532
    %1534 = vmatprep.mubr.f32.mxu0 0.0
    %1535 = vmatmul.mubr.f32.gmra.mrb[0].mxu0 %v686
    %v1536 = vpop.f32.mrb[0].mxu0
    %v1537 = vadd.f32 %v1442, %v1536
    %v1538 = vpop.f32.mrb[0].mxu0
    %v1539 = vadd.f32 %v1444, %v1538
    %1540 = vmatprep.mubr.f32.mxu0 0.0
    %1541 = vmatmul.mubr.f32.gmra.mrb[0].mxu0 %v687
    %v1542 = vpop.f32.mrb[0].mxu0
    %v1543 = vadd.f32 %v1448, %v1542
    %v1544 = vpop.f32.mrb[0].mxu0
    %v1545 = vadd.f32 %v1450, %v1544
    %1546 = vmatprep.mubr.f32.mxu0 0.0
    %1547 = vmatmul.mubr.f32.gmra.mrb[0].mxu0 %v688
    %v1548 = vpop.f32.mrb[0].mxu0
    %v1549 = vadd.f32 %v1454, %v1548
    %v1550 = vpop.f32.mrb[0].mxu0
    %v1551 = vadd.f32 %v1456, %v1550
    %1552 = vmatprep.mubr.f32.mxu0 0.0
    %1553 = vmatmul.mubr.f32.gmra.mrb[0].mxu0 %v689
    %v1554 = vpop.f32.mrb[0].mxu0
    %v1555 = vadd.f32 %v1460, %v1554
    %v1556 = vpop.f32.mrb[0].mxu0
    %v1557 = vadd.f32 %v1462, %v1556
    %1558 = vdwg.mxu0
    %s1559 = scalar_lea.vmem [#allocation4], 512
    %v1560 = vld [vmem:[%s1559] sm:$0xff]
    %v1561 = vld [vmem:[%s1559 + $0x8] sm:$0xff]
    %v1562 = vld [vmem:[%s1559 + $0x10] sm:$0xff]
    %v1563 = vld [vmem:[%s1559 + $0x18] sm:$0xff]
    %v1564 = vld [vmem:[%s1559 + $0x20] sm:$0xff]
    %v1565 = vld [vmem:[%s1559 + $0x28] sm:$0xff]
    %v1566 = vld [vmem:[%s1559 + $0x30] sm:$0xff]
    %v1567 = vld [vmem:[%s1559 + $0x38] sm:$0xff]
    %v1568 = vld [vmem:[%s1559 + $0x40] sm:$0xff]
    %v1569 = vld [vmem:[%s1559 + $0x48] sm:$0xff]
    %v1570 = vld [vmem:[%s1559 + $0x50] sm:$0xff]
    %v1571 = vld [vmem:[%s1559 + $0x58] sm:$0xff]
    %v1572 = vld [vmem:[%s1559 + $0x60] sm:$0xff]
    %v1573 = vld [vmem:[%s1559 + $0x68] sm:$0xff]
    %v1574 = vld [vmem:[%s1559 + $0x70] sm:$0xff]
    %v1575 = vld [vmem:[%s1559 + $0x78] sm:$0xff]
    %v1576 = vld [vmem:[%s1559 + $0x80] sm:$0xff]
    %v1577 = vld [vmem:[%s1559 + $0x88] sm:$0xff]
    %v1578 = vld [vmem:[%s1559 + $0x90] sm:$0xff]
    %v1579 = vld [vmem:[%s1559 + $0x98] sm:$0xff]
    %v1580 = vld [vmem:[%s1559 + $0xa0] sm:$0xff]
    %v1581 = vld [vmem:[%s1559 + $0xa8] sm:$0xff]
    %v1582 = vld [vmem:[%s1559 + $0xb0] sm:$0xff]
    %v1583 = vld [vmem:[%s1559 + $0xb8] sm:$0xff]
    %v1584 = vld [vmem:[%s1559 + $0xc0] sm:$0xff]
    %v1585 = vld [vmem:[%s1559 + $0xc8] sm:$0xff]
    %v1586 = vld [vmem:[%s1559 + $0xd0] sm:$0xff]
    %v1587 = vld [vmem:[%s1559 + $0xd8] sm:$0xff]
    %v1588 = vld [vmem:[%s1559 + $0xe0] sm:$0xff]
    %v1589 = vld [vmem:[%s1559 + $0xe8] sm:$0xff]
    %v1590 = vld [vmem:[%s1559 + $0xf0] sm:$0xff]
    %v1591 = vld [vmem:[%s1559 + $0xf8] sm:$0xff]
    %1592 = vmatprep.subr.mxu0 %v1561
    %1593 = vmatpush1.msra.mxu0 %v1560
    %1594 = vmatprep.subr.mxu0 %v1563
    %1595 = vmatpush1.msra.mxu0 %v1562
    %1596 = vmatprep.subr.mxu0 %v1565
    %1597 = vmatpush1.msra.mxu0 %v1564
    %1598 = vmatprep.subr.mxu0 %v1567
    %1599 = vmatpush1.msra.mxu0 %v1566
    %1600 = vmatprep.subr.mxu0 %v1569
    %1601 = vmatpush1.msra.mxu0 %v1568
    %1602 = vmatprep.subr.mxu0 %v1571
    %1603 = vmatpush1.msra.mxu0 %v1570
    %1604 = vmatprep.subr.mxu0 %v1573
    %1605 = vmatpush1.msra.mxu0 %v1572
    %1606 = vmatprep.subr.mxu0 %v1575
    %1607 = vmatpush1.msra.mxu0 %v1574
    %1608 = vmatprep.subr.mxu0 %v1577
    %1609 = vmatpush1.msra.mxu0 %v1576
    %1610 = vmatprep.subr.mxu0 %v1579
    %1611 = vmatpush1.msra.mxu0 %v1578
    %1612 = vmatprep.subr.mxu0 %v1581
    %1613 = vmatpush1.msra.mxu0 %v1580
    %1614 = vmatprep.subr.mxu0 %v1583
    %1615 = vmatpush1.msra.mxu0 %v1582
    %1616 = vmatprep.subr.mxu0 %v1585
    %1617 = vmatpush1.msra.mxu0 %v1584
    %1618 = vmatprep.subr.mxu0 %v1587
    %1619 = vmatpush1.msra.mxu0 %v1586
    %1620 = vmatprep.subr.mxu0 %v1589
    %1621 = vmatpush1.msra.mxu0 %v1588
    %1622 = vmatprep.subr.mxu0 %v1591
    %1623 = vmatpush1.msra.mxu0 %v1590
    %1624 = vmatprep.subr.mxu0 0.0
    %1625 = vmatpush1.msra.mxu0 0.0
    %1626 = vmatprep.subr.mxu0 0.0
    %1627 = vmatpush1.msra.mxu0 0.0
    %1628 = vmatprep.subr.mxu0 0.0
    %1629 = vmatpush1.msra.mxu0 0.0
    %1630 = vmatprep.subr.mxu0 0.0
    %1631 = vmatpush1.msra.mxu0 0.0
    %1632 = vmatprep.subr.mxu0 0.0
    %1633 = vmatpush1.msra.mxu0 0.0
    %1634 = vmatprep.subr.mxu0 0.0
    %1635 = vmatpush1.msra.mxu0 0.0
    %1636 = vmatprep.subr.mxu0 0.0
    %1637 = vmatpush1.msra.mxu0 0.0
    %1638 = vmatprep.subr.mxu0 0.0
    %1639 = vmatpush1.msra.mxu0 0.0
    %1640 = vmatprep.subr.mxu0 0.0
    %1641 = vmatpush1.msra.mxu0 0.0
    %1642 = vmatprep.subr.mxu0 0.0
    %1643 = vmatpush1.msra.mxu0 0.0
    %1644 = vmatprep.subr.mxu0 0.0
    %1645 = vmatpush1.msra.mxu0 0.0
    %1646 = vmatprep.subr.mxu0 0.0
    %1647 = vmatpush1.msra.mxu0 0.0
    %1648 = vmatprep.subr.mxu0 0.0
    %1649 = vmatpush1.msra.mxu0 0.0
    %1650 = vmatprep.subr.mxu0 0.0
    %1651 = vmatpush1.msra.mxu0 0.0
    %1652 = vmatprep.subr.mxu0 0.0
    %1653 = vmatpush1.msra.mxu0 0.0
    %1654 = vmatprep.subr.mxu0 0.0
    %1655 = vmatpush1.msra.mxu0 0.0
    %1656 = vmatprep.mubr.f32.mxu0 0.0
    %1657 = vmatmul.mubr.f32.gmra.mrb[0].mxu0 %v686
    %v1658 = vpop.f32.mrb[0].mxu0
    %v1659 = vadd.f32 0.0, %v1658
    %v1660 = vpop.f32.mrb[0].mxu0
    %v1661 = vadd.f32 0.0, %v1660
    %1662 = vmatprep.mubr.f32.mxu0 0.0
    %1663 = vmatmul.mubr.f32.gmra.mrb[0].mxu0 %v687
    %v1664 = vpop.f32.mrb[0].mxu0
    %v1665 = vadd.f32 0.0, %v1664
    %v1666 = vpop.f32.mrb[0].mxu0
    %v1667 = vadd.f32 0.0, %v1666
    %1668 = vmatprep.mubr.f32.mxu0 0.0
    %1669 = vmatmul.mubr.f32.gmra.mrb[0].mxu0 %v688
    %v1670 = vpop.f32.mrb[0].mxu0
    %v1671 = vadd.f32 0.0, %v1670
    %v1672 = vpop.f32.mrb[0].mxu0
    %v1673 = vadd.f32 0.0, %v1672
    %1674 = vmatprep.mubr.f32.mxu0 0.0
    %1675 = vmatmul.mubr.f32.gmra.mrb[0].mxu0 %v689
    %v1676 = vpop.f32.mrb[0].mxu0
    %v1677 = vadd.f32 0.0, %v1676
    %v1678 = vpop.f32.mrb[0].mxu0
    %v1679 = vadd.f32 0.0, %v1678
    %1680 = vmatprep.mubr.f32.mxu0 0.0
    %1681 = vmatmul.mubr.f32.gmra.mrb[0].mxu0 %v690
    %v1682 = vpop.f32.mrb[0].mxu0
    %v1683 = vadd.f32 0.0, %v1682
    %v1684 = vpop.f32.mrb[0].mxu0
    %v1685 = vadd.f32 0.0, %v1684
    %1686 = vdwg.mxu0
    %v1687 = vadd.f32 %v1531, %v1659
    %v1688 = vadd.f32 %v1533, %v1661
    %v1689 = vadd.f32 %v1537, %v1665
    %v1690 = vadd.f32 %v1539, %v1667
    %v1691 = vadd.f32 %v1543, %v1671
    %v1692 = vadd.f32 %v1545, %v1673
    %v1693 = vadd.f32 %v1549, %v1677
    %v1694 = vadd.f32 %v1551, %v1679
    %v1695 = vadd.f32 %v1555, %v1683
    %v1696 = vadd.f32 %v1557, %v1685
    %s1697 = scalar_lea.vmem [#allocation4], 768
    %v1698 = vld [vmem:[%s1697] sm:$0xff]
    %v1699 = vld [vmem:[%s1697 + $0x8] sm:$0xff]
    %v1700 = vld [vmem:[%s1697 + $0x10] sm:$0xff]
    %v1701 = vld [vmem:[%s1697 + $0x18] sm:$0xff]
    %v1702 = vld [vmem:[%s1697 + $0x20] sm:$0xff]
    %v1703 = vld [vmem:[%s1697 + $0x28] sm:$0xff]
    %v1704 = vld [vmem:[%s1697 + $0x30] sm:$0xff]
    %v1705 = vld [vmem:[%s1697 + $0x38] sm:$0xff]
    %v1706 = vld [vmem:[%s1697 + $0x40] sm:$0xff]
    %v1707 = vld [vmem:[%s1697 + $0x48] sm:$0xff]
    %v1708 = vld [vmem:[%s1697 + $0x50] sm:$0xff]
    %v1709 = vld [vmem:[%s1697 + $0x58] sm:$0xff]
    %v1710 = vld [vmem:[%s1697 + $0x60] sm:$0xff]
    %v1711 = vld [vmem:[%s1697 + $0x68] sm:$0xff]
    %v1712 = vld [vmem:[%s1697 + $0x70] sm:$0xff]
    %v1713 = vld [vmem:[%s1697 + $0x78] sm:$0xff]
    %v1714 = vld [vmem:[%s1697 + $0x80] sm:$0xff]
    %v1715 = vld [vmem:[%s1697 + $0x88] sm:$0xff]
    %v1716 = vld [vmem:[%s1697 + $0x90] sm:$0xff]
    %v1717 = vld [vmem:[%s1697 + $0x98] sm:$0xff]
    %v1718 = vld [vmem:[%s1697 + $0xa0] sm:$0xff]
    %v1719 = vld [vmem:[%s1697 + $0xa8] sm:$0xff]
    %v1720 = vld [vmem:[%s1697 + $0xb0] sm:$0xff]
    %v1721 = vld [vmem:[%s1697 + $0xb8] sm:$0xff]
    %v1722 = vld [vmem:[%s1697 + $0xc0] sm:$0xff]
    %v1723 = vld [vmem:[%s1697 + $0xc8] sm:$0xff]
    %v1724 = vld [vmem:[%s1697 + $0xd0] sm:$0xff]
    %v1725 = vld [vmem:[%s1697 + $0xd8] sm:$0xff]
    %v1726 = vld [vmem:[%s1697 + $0xe0] sm:$0xff]
    %v1727 = vld [vmem:[%s1697 + $0xe8] sm:$0xff]
    %v1728 = vld [vmem:[%s1697 + $0xf0] sm:$0xff]
    %v1729 = vld [vmem:[%s1697 + $0xf8] sm:$0xff]
    %1730 = vmatprep.subr.mxu0 %v1699
    %1731 = vmatpush1.msra.mxu0 %v1698
    %1732 = vmatprep.subr.mxu0 %v1701
    %1733 = vmatpush1.msra.mxu0 %v1700
    %1734 = vmatprep.subr.mxu0 %v1703
    %1735 = vmatpush1.msra.mxu0 %v1702
    %1736 = vmatprep.subr.mxu0 %v1705
    %1737 = vmatpush1.msra.mxu0 %v1704
    %1738 = vmatprep.subr.mxu0 %v1707
    %1739 = vmatpush1.msra.mxu0 %v1706
    %1740 = vmatprep.subr.mxu0 %v1709
    %1741 = vmatpush1.msra.mxu0 %v1708
    %1742 = vmatprep.subr.mxu0 %v1711
    %1743 = vmatpush1.msra.mxu0 %v1710
    %1744 = vmatprep.subr.mxu0 %v1713
    %1745 = vmatpush1.msra.mxu0 %v1712
    %1746 = vmatprep.subr.mxu0 %v1715
    %1747 = vmatpush1.msra.mxu0 %v1714
    %1748 = vmatprep.subr.mxu0 %v1717
    %1749 = vmatpush1.msra.mxu0 %v1716
    %1750 = vmatprep.subr.mxu0 %v1719
    %1751 = vmatpush1.msra.mxu0 %v1718
    %1752 = vmatprep.subr.mxu0 %v1721
    %1753 = vmatpush1.msra.mxu0 %v1720
    %1754 = vmatprep.subr.mxu0 %v1723
    %1755 = vmatpush1.msra.mxu0 %v1722
    %1756 = vmatprep.subr.mxu0 %v1725
    %1757 = vmatpush1.msra.mxu0 %v1724
    %1758 = vmatprep.subr.mxu0 %v1727
    %1759 = vmatpush1.msra.mxu0 %v1726
    %1760 = vmatprep.subr.mxu0 %v1729
    %1761 = vmatpush1.msra.mxu0 %v1728
    %1762 = vmatprep.subr.mxu0 0.0
    %1763 = vmatpush1.msra.mxu0 0.0
    %1764 = vmatprep.subr.mxu0 0.0
    %1765 = vmatpush1.msra.mxu0 0.0
    %1766 = vmatprep.subr.mxu0 0.0
    %1767 = vmatpush1.msra.mxu0 0.0
    %1768 = vmatprep.subr.mxu0 0.0
    %1769 = vmatpush1.msra.mxu0 0.0
    %1770 = vmatprep.subr.mxu0 0.0
    %1771 = vmatpush1.msra.mxu0 0.0
    %1772 = vmatprep.subr.mxu0 0.0
    %1773 = vmatpush1.msra.mxu0 0.0
    %1774 = vmatprep.subr.mxu0 0.0
    %1775 = vmatpush1.msra.mxu0 0.0
    %1776 = vmatprep.subr.mxu0 0.0
    %1777 = vmatpush1.msra.mxu0 0.0
    %1778 = vmatprep.subr.mxu0 0.0
    %1779 = vmatpush1.msra.mxu0 0.0
    %1780 = vmatprep.subr.mxu0 0.0
    %1781 = vmatpush1.msra.mxu0 0.0
    %1782 = vmatprep.subr.mxu0 0.0
    %1783 = vmatpush1.msra.mxu0 0.0
    %1784 = vmatprep.subr.mxu0 0.0
    %1785 = vmatpush1.msra.mxu0 0.0
    %1786 = vmatprep.subr.mxu0 0.0
    %1787 = vmatpush1.msra.mxu0 0.0
    %1788 = vmatprep.subr.mxu0 0.0
    %1789 = vmatpush1.msra.mxu0 0.0
    %1790 = vmatprep.subr.mxu0 0.0
    %1791 = vmatpush1.msra.mxu0 0.0
    %1792 = vmatprep.subr.mxu0 0.0
    %1793 = vmatpush1.msra.mxu0 0.0
    %1794 = vmatprep.mubr.f32.mxu0 0.0
    %1795 = vmatmul.mubr.f32.gmra.mrb[0].mxu0 %v1297
    %v1796 = vpop.f32.mrb[0].mxu0
    %v1797 = vadd.f32 0.0, %v1796
    %v1798 = vpop.f32.mrb[0].mxu0
    %v1799 = vadd.f32 0.0, %v1798
    %1800 = vmatprep.mubr.f32.mxu0 0.0
    %1801 = vmatmul.mubr.f32.gmra.mrb[0].mxu0 %v1298
    %v1802 = vpop.f32.mrb[0].mxu0
    %v1803 = vadd.f32 0.0, %v1802
    %v1804 = vpop.f32.mrb[0].mxu0
    %v1805 = vadd.f32 0.0, %v1804
    %1806 = vmatprep.mubr.f32.mxu0 0.0
    %1807 = vmatmul.mubr.f32.gmra.mrb[0].mxu0 %v1299
    %v1808 = vpop.f32.mrb[0].mxu0
    %v1809 = vadd.f32 0.0, %v1808
    %v1810 = vpop.f32.mrb[0].mxu0
    %v1811 = vadd.f32 0.0, %v1810
    %1812 = vmatprep.mubr.f32.mxu0 0.0
    %1813 = vmatmul.mubr.f32.gmra.mrb[0].mxu0 %v1300
    %v1814 = vpop.f32.mrb[0].mxu0
    %v1815 = vadd.f32 0.0, %v1814
    %v1816 = vpop.f32.mrb[0].mxu0
    %v1817 = vadd.f32 0.0, %v1816
    %1818 = vmatprep.mubr.f32.mxu0 0.0
    %1819 = vmatmul.mubr.f32.gmra.mrb[0].mxu0 %v1301
    %v1820 = vpop.f32.mrb[0].mxu0
    %v1821 = vadd.f32 0.0, %v1820
    %v1822 = vpop.f32.mrb[0].mxu0
    %v1823 = vadd.f32 0.0, %v1822
    %1824 = vdwg.mxu0
    %v1825 = vadd.f32 %v1687, %v1797
    %v1826 = vadd.f32 %v1688, %v1799
    %v1827 = vadd.f32 %v1689, %v1803
    %v1828 = vadd.f32 %v1690, %v1805
    %v1829 = vadd.f32 %v1691, %v1809
    %v1830 = vadd.f32 %v1692, %v1811
    %v1831 = vadd.f32 %v1693, %v1815
    %v1832 = vadd.f32 %v1694, %v1817
    %v1833 = vadd.f32 %v1695, %v1821
    %v1834 = vadd.f32 %v1696, %v1823
    %s1835 = scalar_lea.vmem [#allocation4], 1024
    %v1836 = vld [vmem:[%s1835] sm:$0xff]
    %v1837 = vld [vmem:[%s1835 + $0x8] sm:$0xff]
    %v1838 = vld [vmem:[%s1835 + $0x10] sm:$0xff]
    %v1839 = vld [vmem:[%s1835 + $0x18] sm:$0xff]
    %v1840 = vld [vmem:[%s1835 + $0x20] sm:$0xff]
    %v1841 = vld [vmem:[%s1835 + $0x28] sm:$0xff]
    %v1842 = vld [vmem:[%s1835 + $0x30] sm:$0xff]
    %v1843 = vld [vmem:[%s1835 + $0x38] sm:$0xff]
    %v1844 = vld [vmem:[%s1835 + $0x40] sm:$0xff]
    %v1845 = vld [vmem:[%s1835 + $0x48] sm:$0xff]
    %v1846 = vld [vmem:[%s1835 + $0x50] sm:$0xff]
    %v1847 = vld [vmem:[%s1835 + $0x58] sm:$0xff]
    %v1848 = vld [vmem:[%s1835 + $0x60] sm:$0xff]
    %v1849 = vld [vmem:[%s1835 + $0x68] sm:$0xff]
    %v1850 = vld [vmem:[%s1835 + $0x70] sm:$0xff]
    %v1851 = vld [vmem:[%s1835 + $0x78] sm:$0xff]
    %v1852 = vld [vmem:[%s1835 + $0x80] sm:$0xff]
    %v1853 = vld [vmem:[%s1835 + $0x88] sm:$0xff]
    %v1854 = vld [vmem:[%s1835 + $0x90] sm:$0xff]
    %v1855 = vld [vmem:[%s1835 + $0x98] sm:$0xff]
    %v1856 = vld [vmem:[%s1835 + $0xa0] sm:$0xff]
    %v1857 = vld [vmem:[%s1835 + $0xa8] sm:$0xff]
    %v1858 = vld [vmem:[%s1835 + $0xb0] sm:$0xff]
    %v1859 = vld [vmem:[%s1835 + $0xb8] sm:$0xff]
    %v1860 = vld [vmem:[%s1835 + $0xc0] sm:$0xff]
    %v1861 = vld [vmem:[%s1835 + $0xc8] sm:$0xff]
    %v1862 = vld [vmem:[%s1835 + $0xd0] sm:$0xff]
    %v1863 = vld [vmem:[%s1835 + $0xd8] sm:$0xff]
    %v1864 = vld [vmem:[%s1835 + $0xe0] sm:$0xff]
    %v1865 = vld [vmem:[%s1835 + $0xe8] sm:$0xff]
    %v1866 = vld [vmem:[%s1835 + $0xf0] sm:$0xff]
    %v1867 = vld [vmem:[%s1835 + $0xf8] sm:$0xff]
    %1868 = vmatprep.subr.mxu0 %v1837
    %1869 = vmatpush1.msra.mxu0 %v1836
    %1870 = vmatprep.subr.mxu0 %v1839
    %1871 = vmatpush1.msra.mxu0 %v1838
    %1872 = vmatprep.subr.mxu0 %v1841
    %1873 = vmatpush1.msra.mxu0 %v1840
    %1874 = vmatprep.subr.mxu0 %v1843
    %1875 = vmatpush1.msra.mxu0 %v1842
    %1876 = vmatprep.subr.mxu0 %v1845
    %1877 = vmatpush1.msra.mxu0 %v1844
    %1878 = vmatprep.subr.mxu0 %v1847
    %1879 = vmatpush1.msra.mxu0 %v1846
    %1880 = vmatprep.subr.mxu0 %v1849
    %1881 = vmatpush1.msra.mxu0 %v1848
    %1882 = vmatprep.subr.mxu0 %v1851
    %1883 = vmatpush1.msra.mxu0 %v1850
    %1884 = vmatprep.subr.mxu0 %v1853
    %1885 = vmatpush1.msra.mxu0 %v1852
    %1886 = vmatprep.subr.mxu0 %v1855
    %1887 = vmatpush1.msra.mxu0 %v1854
    %1888 = vmatprep.subr.mxu0 %v1857
    %1889 = vmatpush1.msra.mxu0 %v1856
    %1890 = vmatprep.subr.mxu0 %v1859
    %1891 = vmatpush1.msra.mxu0 %v1858
    %1892 = vmatprep.subr.mxu0 %v1861
    %1893 = vmatpush1.msra.mxu0 %v1860
    %1894 = vmatprep.subr.mxu0 %v1863
    %1895 = vmatpush1.msra.mxu0 %v1862
    %1896 = vmatprep.subr.mxu0 %v1865
    %1897 = vmatpush1.msra.mxu0 %v1864
    %1898 = vmatprep.subr.mxu0 %v1867
    %1899 = vmatpush1.msra.mxu0 %v1866
    %1900 = vmatprep.subr.mxu0 0.0
    %1901 = vmatpush1.msra.mxu0 0.0
    %1902 = vmatprep.subr.mxu0 0.0
    %1903 = vmatpush1.msra.mxu0 0.0
    %1904 = vmatprep.subr.mxu0 0.0
    %1905 = vmatpush1.msra.mxu0 0.0
    %1906 = vmatprep.subr.mxu0 0.0
    %1907 = vmatpush1.msra.mxu0 0.0
    %1908 = vmatprep.subr.mxu0 0.0
    %1909 = vmatpush1.msra.mxu0 0.0
    %1910 = vmatprep.subr.mxu0 0.0
    %1911 = vmatpush1.msra.mxu0 0.0
    %1912 = vmatprep.subr.mxu0 0.0
    %1913 = vmatpush1.msra.mxu0 0.0
    %1914 = vmatprep.subr.mxu0 0.0
    %1915 = vmatpush1.msra.mxu0 0.0
    %1916 = vmatprep.subr.mxu0 0.0
    %1917 = vmatpush1.msra.mxu0 0.0
    %1918 = vmatprep.subr.mxu0 0.0
    %1919 = vmatpush1.msra.mxu0 0.0
    %1920 = vmatprep.subr.mxu0 0.0
    %1921 = vmatpush1.msra.mxu0 0.0
    %1922 = vmatprep.subr.mxu0 0.0
    %1923 = vmatpush1.msra.mxu0 0.0
    %1924 = vmatprep.subr.mxu0 0.0
    %1925 = vmatpush1.msra.mxu0 0.0
    %1926 = vmatprep.subr.mxu0 0.0
    %1927 = vmatpush1.msra.mxu0 0.0
    %1928 = vmatprep.subr.mxu0 0.0
    %1929 = vmatpush1.msra.mxu0 0.0
    %1930 = vmatprep.subr.mxu0 0.0
    %1931 = vmatpush1.msra.mxu0 0.0
    %1932 = vmatprep.mubr.f32.mxu0 0.0
    %1933 = vmatmul.mubr.f32.gmra.mrb[0].mxu0 %v687
    %v1934 = vpop.f32.mrb[0].mxu0
    %v1935 = vadd.f32 0.0, %v1934
    %v1936 = vpop.f32.mrb[0].mxu0
    %v1937 = vadd.f32 0.0, %v1936
    %1938 = vmatprep.mubr.f32.mxu0 0.0
    %1939 = vmatmul.mubr.f32.gmra.mrb[0].mxu0 %v688
    %v1940 = vpop.f32.mrb[0].mxu0
    %v1941 = vadd.f32 0.0, %v1940
    %v1942 = vpop.f32.mrb[0].mxu0
    %v1943 = vadd.f32 0.0, %v1942
    %1944 = vmatprep.mubr.f32.mxu0 0.0
    %1945 = vmatmul.mubr.f32.gmra.mrb[0].mxu0 %v689
    %v1946 = vpop.f32.mrb[0].mxu0
    %v1947 = vadd.f32 0.0, %v1946
    %v1948 = vpop.f32.mrb[0].mxu0
    %v1949 = vadd.f32 0.0, %v1948
    %1950 = vmatprep.mubr.f32.mxu0 0.0
    %1951 = vmatmul.mubr.f32.gmra.mrb[0].mxu0 %v690
    %v1952 = vpop.f32.mrb[0].mxu0
    %v1953 = vadd.f32 0.0, %v1952
    %v1954 = vpop.f32.mrb[0].mxu0
    %v1955 = vadd.f32 0.0, %v1954
    %1956 = vmatprep.mubr.f32.mxu0 0.0
    %1957 = vmatmul.mubr.f32.gmra.mrb[0].mxu0 %v691
    %v1958 = vpop.f32.mrb[0].mxu0
    %v1959 = vadd.f32 0.0, %v1958
    %v1960 = vpop.f32.mrb[0].mxu0
    %v1961 = vadd.f32 0.0, %v1960
    %1962 = vdwg.mxu0
    %v1963 = vadd.f32 %v1825, %v1935
    %v1964 = vadd.f32 %v1826, %v1937
    %v1965 = vadd.f32 %v1827, %v1941
    %v1966 = vadd.f32 %v1828, %v1943
    %v1967 = vadd.f32 %v1829, %v1947
    %v1968 = vadd.f32 %v1830, %v1949
    %v1969 = vadd.f32 %v1831, %v1953
    %v1970 = vadd.f32 %v1832, %v1955
    %v1971 = vadd.f32 %v1833, %v1959
    %v1972 = vadd.f32 %v1834, %v1961
    %v1973 = vmax.f32 %v1963, %v1964
    %v1974 = vmax.f32 %v1965, %v1966
    %v1975 = vmax.f32 %v1967, %v1968
    %v1976 = vmax.f32 %v1969, %v1970
    %v1977 = vmax.f32 %v1971, %v1972
    %1978 = vmatprep.subr.mxu0 %v1338
    %1979 = vmatpush1.msra.mxu0 %v1337
    %1980 = vmatprep.subr.mxu0 %v1340
    %1981 = vmatpush1.msra.mxu0 %v1339
    %1982 = vmatprep.subr.mxu0 %v1342
    %1983 = vmatpush1.msra.mxu0 %v1341
    %1984 = vmatprep.subr.mxu0 %v1344
    %1985 = vmatpush1.msra.mxu0 %v1343
    %1986 = vmatprep.subr.mxu0 %v1346
    %1987 = vmatpush1.msra.mxu0 %v1345
    %1988 = vmatprep.subr.mxu0 %v1348
    %1989 = vmatpush1.msra.mxu0 %v1347
    %1990 = vmatprep.subr.mxu0 %v1350
    %1991 = vmatpush1.msra.mxu0 %v1349
    %1992 = vmatprep.subr.mxu0 %v1352
    %1993 = vmatpush1.msra.mxu0 %v1351
    %1994 = vmatprep.subr.mxu0 %v1354
    %1995 = vmatpush1.msra.mxu0 %v1353
    %1996 = vmatprep.subr.mxu0 %v1356
    %1997 = vmatpush1.msra.mxu0 %v1355
    %1998 = vmatprep.subr.mxu0 %v1358
    %1999 = vmatpush1.msra.mxu0 %v1357
    %2000 = vmatprep.subr.mxu0 %v1360
    %2001 = vmatpush1.msra.mxu0 %v1359
    %2002 = vmatprep.subr.mxu0 %v1362
    %2003 = vmatpush1.msra.mxu0 %v1361
    %2004 = vmatprep.subr.mxu0 %v1364
    %2005 = vmatpush1.msra.mxu0 %v1363
    %2006 = vmatprep.subr.mxu0 %v1366
    %2007 = vmatpush1.msra.mxu0 %v1365
    %2008 = vmatprep.subr.mxu0 %v1368
    %2009 = vmatpush1.msra.mxu0 %v1367
    %2010 = vmatprep.subr.mxu0 0.0
    %2011 = vmatpush1.msra.mxu0 0.0
    %2012 = vmatprep.subr.mxu0 0.0
    %2013 = vmatpush1.msra.mxu0 0.0
    %2014 = vmatprep.subr.mxu0 0.0
    %2015 = vmatpush1.msra.mxu0 0.0
    %2016 = vmatprep.subr.mxu0 0.0
    %2017 = vmatpush1.msra.mxu0 0.0
    %2018 = vmatprep.subr.mxu0 0.0
    %2019 = vmatpush1.msra.mxu0 0.0
    %2020 = vmatprep.subr.mxu0 0.0
    %2021 = vmatpush1.msra.mxu0 0.0
    %2022 = vmatprep.subr.mxu0 0.0
    %2023 = vmatpush1.msra.mxu0 0.0
    %2024 = vmatprep.subr.mxu0 0.0
    %2025 = vmatpush1.msra.mxu0 0.0
    %2026 = vmatprep.subr.mxu0 0.0
    %2027 = vmatpush1.msra.mxu0 0.0
    %2028 = vmatprep.subr.mxu0 0.0
    %2029 = vmatpush1.msra.mxu0 0.0
    %2030 = vmatprep.subr.mxu0 0.0
    %2031 = vmatpush1.msra.mxu0 0.0
    %2032 = vmatprep.subr.mxu0 0.0
    %2033 = vmatpush1.msra.mxu0 0.0
    %2034 = vmatprep.subr.mxu0 0.0
    %2035 = vmatpush1.msra.mxu0 0.0
    %2036 = vmatprep.subr.mxu0 0.0
    %2037 = vmatpush1.msra.mxu0 0.0
    %2038 = vmatprep.subr.mxu0 0.0
    %2039 = vmatpush1.msra.mxu0 0.0
    %2040 = vmatprep.subr.mxu0 0.0
    %2041 = vmatpush1.msra.mxu0 0.0
    %2042 = vmatprep.mubr.f32.mxu0 0.0
    %2043 = vmatmul.mubr.f32.gmra.mrb[0].mxu0 %v686
    %v2044 = vpop.f32.mrb[0].mxu0
    %v2045 = vadd.f32 0.0, %v2044
    %v2046 = vpop.f32.mrb[0].mxu0
    %v2047 = vadd.f32 0.0, %v2046
    %2048 = vmatprep.mubr.f32.mxu0 0.0
    %2049 = vmatmul.mubr.f32.gmra.mrb[0].mxu0 %v687
    %v2050 = vpop.f32.mrb[0].mxu0
    %v2051 = vadd.f32 0.0, %v2050
    %v2052 = vpop.f32.mrb[0].mxu0
    %v2053 = vadd.f32 0.0, %v2052
    %2054 = vmatprep.mubr.f32.mxu0 0.0
    %2055 = vmatmul.mubr.f32.gmra.mrb[0].mxu0 %v688
    %v2056 = vpop.f32.mrb[0].mxu0
    %v2057 = vadd.f32 0.0, %v2056
    %v2058 = vpop.f32.mrb[0].mxu0
    %v2059 = vadd.f32 0.0, %v2058
    %2060 = vmatprep.mubr.f32.mxu0 0.0
    %2061 = vmatmul.mubr.f32.gmra.mrb[0].mxu0 %v689
    %v2062 = vpop.f32.mrb[0].mxu0
    %v2063 = vadd.f32 0.0, %v2062
    %v2064 = vpop.f32.mrb[0].mxu0
    %v2065 = vadd.f32 0.0, %v2064
    %2066 = vmatprep.mubr.f32.mxu0 0.0
    %2067 = vmatmul.mubr.f32.gmra.mrb[0].mxu0 %v690
    %v2068 = vpop.f32.mrb[0].mxu0
    %v2069 = vadd.f32 0.0, %v2068
    %v2070 = vpop.f32.mrb[0].mxu0
    %v2071 = vadd.f32 0.0, %v2070
    %2072 = vdwg.mxu0
    %2073 = vmatprep.subr.mxu0 %v1305
    %2074 = vmatpush1.msra.mxu0 %v1304
    %2075 = vmatprep.subr.mxu0 %v1307
    %2076 = vmatpush1.msra.mxu0 %v1306
    %2077 = vmatprep.subr.mxu0 %v1309
    %2078 = vmatpush1.msra.mxu0 %v1308
    %2079 = vmatprep.subr.mxu0 %v1311
    %2080 = vmatpush1.msra.mxu0 %v1310
    %2081 = vmatprep.subr.mxu0 %v1313
    %2082 = vmatpush1.msra.mxu0 %v1312
    %2083 = vmatprep.subr.mxu0 %v1315
    %2084 = vmatpush1.msra.mxu0 %v1314
    %2085 = vmatprep.subr.mxu0 %v1317
    %2086 = vmatpush1.msra.mxu0 %v1316
    %2087 = vmatprep.subr.mxu0 %v1319
    %2088 = vmatpush1.msra.mxu0 %v1318
    %2089 = vmatprep.subr.mxu0 %v1321
    %2090 = vmatpush1.msra.mxu0 %v1320
    %2091 = vmatprep.subr.mxu0 %v1323
    %2092 = vmatpush1.msra.mxu0 %v1322
    %2093 = vmatprep.subr.mxu0 %v1325
    %2094 = vmatpush1.msra.mxu0 %v1324
    %2095 = vmatprep.subr.mxu0 %v1327
    %2096 = vmatpush1.msra.mxu0 %v1326
    %2097 = vmatprep.subr.mxu0 %v1329
    %2098 = vmatpush1.msra.mxu0 %v1328
    %2099 = vmatprep.subr.mxu0 %v1331
    %2100 = vmatpush1.msra.mxu0 %v1330
    %2101 = vmatprep.subr.mxu0 %v1333
    %2102 = vmatpush1.msra.mxu0 %v1332
    %2103 = vmatprep.subr.mxu0 %v1335
    %2104 = vmatpush1.msra.mxu0 %v1334
    %2105 = vmatprep.subr.mxu0 0.0
    %2106 = vmatpush1.msra.mxu0 0.0
    %2107 = vmatprep.subr.mxu0 0.0
    %2108 = vmatpush1.msra.mxu0 0.0
    %2109 = vmatprep.subr.mxu0 0.0
    %2110 = vmatpush1.msra.mxu0 0.0
    %2111 = vmatprep.subr.mxu0 0.0
    %2112 = vmatpush1.msra.mxu0 0.0
    %2113 = vmatprep.subr.mxu0 0.0
    %2114 = vmatpush1.msra.mxu0 0.0
    %2115 = vmatprep.subr.mxu0 0.0
    %2116 = vmatpush1.msra.mxu0 0.0
    %2117 = vmatprep.subr.mxu0 0.0
    %2118 = vmatpush1.msra.mxu0 0.0
    %2119 = vmatprep.subr.mxu0 0.0
    %2120 = vmatpush1.msra.mxu0 0.0
    %2121 = vmatprep.subr.mxu0 0.0
    %2122 = vmatpush1.msra.mxu0 0.0
    %2123 = vmatprep.subr.mxu0 0.0
    %2124 = vmatpush1.msra.mxu0 0.0
    %2125 = vmatprep.subr.mxu0 0.0
    %2126 = vmatpush1.msra.mxu0 0.0
    %2127 = vmatprep.subr.mxu0 0.0
    %2128 = vmatpush1.msra.mxu0 0.0
    %2129 = vmatprep.subr.mxu0 0.0
    %2130 = vmatpush1.msra.mxu0 0.0
    %2131 = vmatprep.subr.mxu0 0.0
    %2132 = vmatpush1.msra.mxu0 0.0
    %2133 = vmatprep.subr.mxu0 0.0
    %2134 = vmatpush1.msra.mxu0 0.0
    %2135 = vmatprep.subr.mxu0 0.0
    %2136 = vmatpush1.msra.mxu0 0.0
    %2137 = vmatprep.mubr.f32.mxu0 0.0
    %2138 = vmatmul.mubr.f32.gmra.mrb[0].mxu0 %v1296
    %v2139 = vpop.f32.mrb[0].mxu0
    %v2140 = vadd.f32 %v2045, %v2139
    %v2141 = vpop.f32.mrb[0].mxu0
    %v2142 = vadd.f32 %v2047, %v2141
    %2143 = vmatprep.mubr.f32.mxu0 0.0
    %2144 = vmatmul.mubr.f32.gmra.mrb[0].mxu0 %v1297
    %v2145 = vpop.f32.mrb[0].mxu0
    %v2146 = vadd.f32 %v2051, %v2145
    %v2147 = vpop.f32.mrb[0].mxu0
    %v2148 = vadd.f32 %v2053, %v2147
    %2149 = vmatprep.mubr.f32.mxu0 0.0
    %2150 = vmatmul.mubr.f32.gmra.mrb[0].mxu0 %v1298
    %v2151 = vpop.f32.mrb[0].mxu0
    %v2152 = vadd.f32 %v2057, %v2151
    %v2153 = vpop.f32.mrb[0].mxu0
    %v2154 = vadd.f32 %v2059, %v2153
    %2155 = vmatprep.mubr.f32.mxu0 0.0
    %2156 = vmatmul.mubr.f32.gmra.mrb[0].mxu0 %v1299
    %v2157 = vpop.f32.mrb[0].mxu0
    %v2158 = vadd.f32 %v2063, %v2157
    %v2159 = vpop.f32.mrb[0].mxu0
    %v2160 = vadd.f32 %v2065, %v2159
    %2161 = vmatprep.mubr.f32.mxu0 0.0
    %2162 = vmatmul.mubr.f32.gmra.mrb[0].mxu0 %v1300
    %v2163 = vpop.f32.mrb[0].mxu0
    %v2164 = vadd.f32 %v2069, %v2163
    %v2165 = vpop.f32.mrb[0].mxu0
    %v2166 = vadd.f32 %v2071, %v2165
    %2167 = vdwg.mxu0
    %2168 = vmatprep.subr.mxu0 %v1561
    %2169 = vmatpush1.msra.mxu0 %v1560
    %2170 = vmatprep.subr.mxu0 %v1563
    %2171 = vmatpush1.msra.mxu0 %v1562
    %2172 = vmatprep.subr.mxu0 %v1565
    %2173 = vmatpush1.msra.mxu0 %v1564
    %2174 = vmatprep.subr.mxu0 %v1567
    %2175 = vmatpush1.msra.mxu0 %v1566
    %2176 = vmatprep.subr.mxu0 %v1569
    %2177 = vmatpush1.msra.mxu0 %v1568
    %2178 = vmatprep.subr.mxu0 %v1571
    %2179 = vmatpush1.msra.mxu0 %v1570
    %2180 = vmatprep.subr.mxu0 %v1573
    %2181 = vmatpush1.msra.mxu0 %v1572
    %2182 = vmatprep.subr.mxu0 %v1575
    %2183 = vmatpush1.msra.mxu0 %v1574
    %2184 = vmatprep.subr.mxu0 %v1577
    %2185 = vmatpush1.msra.mxu0 %v1576
    %2186 = vmatprep.subr.mxu0 %v1579
    %2187 = vmatpush1.msra.mxu0 %v1578
    %2188 = vmatprep.subr.mxu0 %v1581
    %2189 = vmatpush1.msra.mxu0 %v1580
    %2190 = vmatprep.subr.mxu0 %v1583
    %2191 = vmatpush1.msra.mxu0 %v1582
    %2192 = vmatprep.subr.mxu0 %v1585
    %2193 = vmatpush1.msra.mxu0 %v1584
    %2194 = vmatprep.subr.mxu0 %v1587
    %2195 = vmatpush1.msra.mxu0 %v1586
    %2196 = vmatprep.subr.mxu0 %v1589
    %2197 = vmatpush1.msra.mxu0 %v1588
    %2198 = vmatprep.subr.mxu0 %v1591
    %2199 = vmatpush1.msra.mxu0 %v1590
    %2200 = vmatprep.subr.mxu0 0.0
    %2201 = vmatpush1.msra.mxu0 0.0
    %2202 = vmatprep.subr.mxu0 0.0
    %2203 = vmatpush1.msra.mxu0 0.0
    %2204 = vmatprep.subr.mxu0 0.0
    %2205 = vmatpush1.msra.mxu0 0.0
    %2206 = vmatprep.subr.mxu0 0.0
    %2207 = vmatpush1.msra.mxu0 0.0
    %2208 = vmatprep.subr.mxu0 0.0
    %2209 = vmatpush1.msra.mxu0 0.0
    %2210 = vmatprep.subr.mxu0 0.0
    %2211 = vmatpush1.msra.mxu0 0.0
    %2212 = vmatprep.subr.mxu0 0.0
    %2213 = vmatpush1.msra.mxu0 0.0
    %2214 = vmatprep.subr.mxu0 0.0
    %2215 = vmatpush1.msra.mxu0 0.0
    %2216 = vmatprep.subr.mxu0 0.0
    %2217 = vmatpush1.msra.mxu0 0.0
    %2218 = vmatprep.subr.mxu0 0.0
    %2219 = vmatpush1.msra.mxu0 0.0
    %2220 = vmatprep.subr.mxu0 0.0
    %2221 = vmatpush1.msra.mxu0 0.0
    %2222 = vmatprep.subr.mxu0 0.0
    %2223 = vmatpush1.msra.mxu0 0.0
    %2224 = vmatprep.subr.mxu0 0.0
    %2225 = vmatpush1.msra.mxu0 0.0
    %2226 = vmatprep.subr.mxu0 0.0
    %2227 = vmatpush1.msra.mxu0 0.0
    %2228 = vmatprep.subr.mxu0 0.0
    %2229 = vmatpush1.msra.mxu0 0.0
    %2230 = vmatprep.subr.mxu0 0.0
    %2231 = vmatpush1.msra.mxu0 0.0
    %2232 = vmatprep.mubr.f32.mxu0 0.0
    %2233 = vmatmul.mubr.f32.gmra.mrb[0].mxu0 %v1297
    %v2234 = vpop.f32.mrb[0].mxu0
    %v2235 = vadd.f32 0.0, %v2234
    %v2236 = vpop.f32.mrb[0].mxu0
    %v2237 = vadd.f32 0.0, %v2236
    %2238 = vmatprep.mubr.f32.mxu0 0.0
    %2239 = vmatmul.mubr.f32.gmra.mrb[0].mxu0 %v1298
    %v2240 = vpop.f32.mrb[0].mxu0
    %v2241 = vadd.f32 0.0, %v2240
    %v2242 = vpop.f32.mrb[0].mxu0
    %v2243 = vadd.f32 0.0, %v2242
    %2244 = vmatprep.mubr.f32.mxu0 0.0
    %2245 = vmatmul.mubr.f32.gmra.mrb[0].mxu0 %v1299
    %v2246 = vpop.f32.mrb[0].mxu0
    %v2247 = vadd.f32 0.0, %v2246
    %v2248 = vpop.f32.mrb[0].mxu0
    %v2249 = vadd.f32 0.0, %v2248
    %2250 = vmatprep.mubr.f32.mxu0 0.0
    %2251 = vmatmul.mubr.f32.gmra.mrb[0].mxu0 %v1300
    %v2252 = vpop.f32.mrb[0].mxu0
    %v2253 = vadd.f32 0.0, %v2252
    %v2254 = vpop.f32.mrb[0].mxu0
    %v2255 = vadd.f32 0.0, %v2254
    %2256 = vmatprep.mubr.f32.mxu0 0.0
    %2257 = vmatmul.mubr.f32.gmra.mrb[0].mxu0 %v1301
    %v2258 = vpop.f32.mrb[0].mxu0
    %v2259 = vadd.f32 0.0, %v2258
    %v2260 = vpop.f32.mrb[0].mxu0
    %v2261 = vadd.f32 0.0, %v2260
    %2262 = vdwg.mxu0
    %v2263 = vadd.f32 %v2140, %v2235
    %v2264 = vadd.f32 %v2142, %v2237
    %v2265 = vadd.f32 %v2146, %v2241
    %v2266 = vadd.f32 %v2148, %v2243
    %v2267 = vadd.f32 %v2152, %v2247
    %v2268 = vadd.f32 %v2154, %v2249
    %v2269 = vadd.f32 %v2158, %v2253
    %v2270 = vadd.f32 %v2160, %v2255
    %v2271 = vadd.f32 %v2164, %v2259
    %v2272 = vadd.f32 %v2166, %v2261
    %2273 = vmatprep.subr.mxu0 %v1699
    %2274 = vmatpush1.msra.mxu0 %v1698
    %2275 = vmatprep.subr.mxu0 %v1701
    %2276 = vmatpush1.msra.mxu0 %v1700
    %2277 = vmatprep.subr.mxu0 %v1703
    %2278 = vmatpush1.msra.mxu0 %v1702
    %2279 = vmatprep.subr.mxu0 %v1705
    %2280 = vmatpush1.msra.mxu0 %v1704
    %2281 = vmatprep.subr.mxu0 %v1707
    %2282 = vmatpush1.msra.mxu0 %v1706
    %2283 = vmatprep.subr.mxu0 %v1709
    %2284 = vmatpush1.msra.mxu0 %v1708
    %2285 = vmatprep.subr.mxu0 %v1711
    %2286 = vmatpush1.msra.mxu0 %v1710
    %2287 = vmatprep.subr.mxu0 %v1713
    %2288 = vmatpush1.msra.mxu0 %v1712
    %2289 = vmatprep.subr.mxu0 %v1715
    %2290 = vmatpush1.msra.mxu0 %v1714
    %2291 = vmatprep.subr.mxu0 %v1717
    %2292 = vmatpush1.msra.mxu0 %v1716
    %2293 = vmatprep.subr.mxu0 %v1719
    %2294 = vmatpush1.msra.mxu0 %v1718
    %2295 = vmatprep.subr.mxu0 %v1721
    %2296 = vmatpush1.msra.mxu0 %v1720
    %2297 = vmatprep.subr.mxu0 %v1723
    %2298 = vmatpush1.msra.mxu0 %v1722
    %2299 = vmatprep.subr.mxu0 %v1725
    %2300 = vmatpush1.msra.mxu0 %v1724
    %2301 = vmatprep.subr.mxu0 %v1727
    %2302 = vmatpush1.msra.mxu0 %v1726
    %2303 = vmatprep.subr.mxu0 %v1729
    %2304 = vmatpush1.msra.mxu0 %v1728
    %2305 = vmatprep.subr.mxu0 0.0
    %2306 = vmatpush1.msra.mxu0 0.0
    %2307 = vmatprep.subr.mxu0 0.0
    %2308 = vmatpush1.msra.mxu0 0.0
    %2309 = vmatprep.subr.mxu0 0.0
    %2310 = vmatpush1.msra.mxu0 0.0
    %2311 = vmatprep.subr.mxu0 0.0
    %2312 = vmatpush1.msra.mxu0 0.0
    %2313 = vmatprep.subr.mxu0 0.0
    %2314 = vmatpush1.msra.mxu0 0.0
    %2315 = vmatprep.subr.mxu0 0.0
    %2316 = vmatpush1.msra.mxu0 0.0
    %2317 = vmatprep.subr.mxu0 0.0
    %2318 = vmatpush1.msra.mxu0 0.0
    %2319 = vmatprep.subr.mxu0 0.0
    %2320 = vmatpush1.msra.mxu0 0.0
    %2321 = vmatprep.subr.mxu0 0.0
    %2322 = vmatpush1.msra.mxu0 0.0
    %2323 = vmatprep.subr.mxu0 0.0
    %2324 = vmatpush1.msra.mxu0 0.0
    %2325 = vmatprep.subr.mxu0 0.0
    %2326 = vmatpush1.msra.mxu0 0.0
    %2327 = vmatprep.subr.mxu0 0.0
    %2328 = vmatpush1.msra.mxu0 0.0
    %2329 = vmatprep.subr.mxu0 0.0
    %2330 = vmatpush1.msra.mxu0 0.0
    %2331 = vmatprep.subr.mxu0 0.0
    %2332 = vmatpush1.msra.mxu0 0.0
    %2333 = vmatprep.subr.mxu0 0.0
    %2334 = vmatpush1.msra.mxu0 0.0
    %2335 = vmatprep.subr.mxu0 0.0
    %2336 = vmatpush1.msra.mxu0 0.0
    %2337 = vmatprep.mubr.f32.mxu0 0.0
    %2338 = vmatmul.mubr.f32.gmra.mrb[0].mxu0 %v687
    %v2339 = vpop.f32.mrb[0].mxu0
    %v2340 = vadd.f32 0.0, %v2339
    %v2341 = vpop.f32.mrb[0].mxu0
    %v2342 = vadd.f32 0.0, %v2341
    %2343 = vmatprep.mubr.f32.mxu0 0.0
    %2344 = vmatmul.mubr.f32.gmra.mrb[0].mxu0 %v688
    %v2345 = vpop.f32.mrb[0].mxu0
    %v2346 = vadd.f32 0.0, %v2345
    %v2347 = vpop.f32.mrb[0].mxu0
    %v2348 = vadd.f32 0.0, %v2347
    %2349 = vmatprep.mubr.f32.mxu0 0.0
    %2350 = vmatmul.mubr.f32.gmra.mrb[0].mxu0 %v689
    %v2351 = vpop.f32.mrb[0].mxu0
    %v2352 = vadd.f32 0.0, %v2351
    %v2353 = vpop.f32.mrb[0].mxu0
    %v2354 = vadd.f32 0.0, %v2353
    %2355 = vmatprep.mubr.f32.mxu0 0.0
    %2356 = vmatmul.mubr.f32.gmra.mrb[0].mxu0 %v690
    %v2357 = vpop.f32.mrb[0].mxu0
    %v2358 = vadd.f32 0.0, %v2357
    %v2359 = vpop.f32.mrb[0].mxu0
    %v2360 = vadd.f32 0.0, %v2359
    %2361 = vmatprep.mubr.f32.mxu0 0.0
    %2362 = vmatmul.mubr.f32.gmra.mrb[0].mxu0 %v691
    %v2363 = vpop.f32.mrb[0].mxu0
    %v2364 = vadd.f32 0.0, %v2363
    %v2365 = vpop.f32.mrb[0].mxu0
    %v2366 = vadd.f32 0.0, %v2365
    %2367 = vdwg.mxu0
    %v2368 = vadd.f32 %v2263, %v2340
    %v2369 = vadd.f32 %v2264, %v2342
    %v2370 = vadd.f32 %v2265, %v2346
    %v2371 = vadd.f32 %v2266, %v2348
    %v2372 = vadd.f32 %v2267, %v2352
    %v2373 = vadd.f32 %v2268, %v2354
    %v2374 = vadd.f32 %v2269, %v2358
    %v2375 = vadd.f32 %v2270, %v2360
    %v2376 = vadd.f32 %v2271, %v2364
    %v2377 = vadd.f32 %v2272, %v2366
    %2378 = vmatprep.subr.mxu0 %v1837
    %2379 = vmatpush1.msra.mxu0 %v1836
    %2380 = vmatprep.subr.mxu0 %v1839
    %2381 = vmatpush1.msra.mxu0 %v1838
    %2382 = vmatprep.subr.mxu0 %v1841
    %2383 = vmatpush1.msra.mxu0 %v1840
    %2384 = vmatprep.subr.mxu0 %v1843
    %2385 = vmatpush1.msra.mxu0 %v1842
    %2386 = vmatprep.subr.mxu0 %v1845
    %2387 = vmatpush1.msra.mxu0 %v1844
    %2388 = vmatprep.subr.mxu0 %v1847
    %2389 = vmatpush1.msra.mxu0 %v1846
    %2390 = vmatprep.subr.mxu0 %v1849
    %2391 = vmatpush1.msra.mxu0 %v1848
    %2392 = vmatprep.subr.mxu0 %v1851
    %2393 = vmatpush1.msra.mxu0 %v1850
    %2394 = vmatprep.subr.mxu0 %v1853
    %2395 = vmatpush1.msra.mxu0 %v1852
    %2396 = vmatprep.subr.mxu0 %v1855
    %2397 = vmatpush1.msra.mxu0 %v1854
    %2398 = vmatprep.subr.mxu0 %v1857
    %2399 = vmatpush1.msra.mxu0 %v1856
    %2400 = vmatprep.subr.mxu0 %v1859
    %2401 = vmatpush1.msra.mxu0 %v1858
    %2402 = vmatprep.subr.mxu0 %v1861
    %2403 = vmatpush1.msra.mxu0 %v1860
    %2404 = vmatprep.subr.mxu0 %v1863
    %2405 = vmatpush1.msra.mxu0 %v1862
    %2406 = vmatprep.subr.mxu0 %v1865
    %2407 = vmatpush1.msra.mxu0 %v1864
    %2408 = vmatprep.subr.mxu0 %v1867
    %2409 = vmatpush1.msra.mxu0 %v1866
    %2410 = vmatprep.subr.mxu0 0.0
    %2411 = vmatpush1.msra.mxu0 0.0
    %2412 = vmatprep.subr.mxu0 0.0
    %2413 = vmatpush1.msra.mxu0 0.0
    %2414 = vmatprep.subr.mxu0 0.0
    %2415 = vmatpush1.msra.mxu0 0.0
    %2416 = vmatprep.subr.mxu0 0.0
    %2417 = vmatpush1.msra.mxu0 0.0
    %2418 = vmatprep.subr.mxu0 0.0
    %2419 = vmatpush1.msra.mxu0 0.0
    %2420 = vmatprep.subr.mxu0 0.0
    %2421 = vmatpush1.msra.mxu0 0.0
    %2422 = vmatprep.subr.mxu0 0.0
    %2423 = vmatpush1.msra.mxu0 0.0
    %2424 = vmatprep.subr.mxu0 0.0
    %2425 = vmatpush1.msra.mxu0 0.0
    %2426 = vmatprep.subr.mxu0 0.0
    %2427 = vmatpush1.msra.mxu0 0.0
    %2428 = vmatprep.subr.mxu0 0.0
    %2429 = vmatpush1.msra.mxu0 0.0
    %2430 = vmatprep.subr.mxu0 0.0
    %2431 = vmatpush1.msra.mxu0 0.0
    %2432 = vmatprep.subr.mxu0 0.0
    %2433 = vmatpush1.msra.mxu0 0.0
    %2434 = vmatprep.subr.mxu0 0.0
    %2435 = vmatpush1.msra.mxu0 0.0
    %2436 = vmatprep.subr.mxu0 0.0
    %2437 = vmatpush1.msra.mxu0 0.0
    %2438 = vmatprep.subr.mxu0 0.0
    %2439 = vmatpush1.msra.mxu0 0.0
    %2440 = vmatprep.subr.mxu0 0.0
    %2441 = vmatpush1.msra.mxu0 0.0
    %2442 = vmatprep.mubr.f32.mxu0 0.0
    %2443 = vmatmul.mubr.f32.gmra.mrb[0].mxu0 %v1298
    %v2444 = vpop.f32.mrb[0].mxu0
    %v2445 = vadd.f32 0.0, %v2444
    %v2446 = vpop.f32.mrb[0].mxu0
    %v2447 = vadd.f32 0.0, %v2446
    %2448 = vmatprep.mubr.f32.mxu0 0.0
    %2449 = vmatmul.mubr.f32.gmra.mrb[0].mxu0 %v1299
    %v2450 = vpop.f32.mrb[0].mxu0
    %v2451 = vadd.f32 0.0, %v2450
    %v2452 = vpop.f32.mrb[0].mxu0
    %v2453 = vadd.f32 0.0, %v2452
    %2454 = vmatprep.mubr.f32.mxu0 0.0
    %2455 = vmatmul.mubr.f32.gmra.mrb[0].mxu0 %v1300
    %v2456 = vpop.f32.mrb[0].mxu0
    %v2457 = vadd.f32 0.0, %v2456
    %v2458 = vpop.f32.mrb[0].mxu0
    %v2459 = vadd.f32 0.0, %v2458
    %2460 = vmatprep.mubr.f32.mxu0 0.0
    %2461 = vmatmul.mubr.f32.gmra.mrb[0].mxu0 %v1301
    %v2462 = vpop.f32.mrb[0].mxu0
    %v2463 = vadd.f32 0.0, %v2462
    %v2464 = vpop.f32.mrb[0].mxu0
    %v2465 = vadd.f32 0.0, %v2464
    %2466 = vmatprep.mubr.f32.mxu0 0.0
    %2467 = vmatmul.mubr.f32.gmra.mrb[0].mxu0 %v1302
    %v2468 = vpop.f32.mrb[0].mxu0
    %v2469 = vadd.f32 0.0, %v2468
    %v2470 = vpop.f32.mrb[0].mxu0
    %v2471 = vadd.f32 0.0, %v2470
    %2472 = vdwg.mxu0
    %v2473 = vadd.f32 %v2368, %v2445
    %v2474 = vadd.f32 %v2369, %v2447
    %v2475 = vadd.f32 %v2370, %v2451
    %v2476 = vadd.f32 %v2371, %v2453
    %v2477 = vadd.f32 %v2372, %v2457
    %v2478 = vadd.f32 %v2373, %v2459
    %v2479 = vadd.f32 %v2374, %v2463
    %v2480 = vadd.f32 %v2375, %v2465
    %v2481 = vadd.f32 %v2376, %v2469
    %v2482 = vadd.f32 %v2377, %v2471
    %v2483 = vmax.f32 %v2473, %v2474
    %v2484 = vmax.f32 %v2475, %v2476
    %v2485 = vmax.f32 %v2477, %v2478
    %v2486 = vmax.f32 %v2479, %v2480
    %v2487 = vmax.f32 %v2481, %v2482
    %v2488 = vmax.f32 %v1973, %v2483
    %v2489 = vmax.f32 %v1974, %v2484
    %v2490 = vmax.f32 %v1975, %v2485
    %v2491 = vmax.f32 %v1976, %v2486
    %v2492 = vmax.f32 %v1977, %v2487
    %v2494 = vlaneseq
    %v2495 = vshrl.u32 %v2494, 7
    %v2496 = vsub.s32 0, %v2495
    %v2497 = vrot.slane %v1303, %v2496
    %v2499 = vadd.f32 %v2488, %v2497
    %v2500 = vadd.f32 %v2489, %v2497
    %v2501 = vadd.f32 %v2490, %v2497
    %v2502 = vadd.f32 %v2491, %v2497
    %v2503 = vadd.f32 %v2492, %v2497
    %v2504 = vmax.f32 %v2499, 0.0
    %v2505 = vmax.f32 %v2500, 0.0
    %v2506 = vmax.f32 %v2501, 0.0
    %v2507 = vmax.f32 %v2502, 0.0
    %v2508 = vmax.f32 %v2503, 0.0
    %v2509 = vld [vmem:[%s5] sm:$0xff]
    %v2510 = vld [vmem:[%s5 + $0x8] sm:$0xff]
    %v2511 = vld [vmem:[%s5 + $0x10] sm:$0xff]
    %v2512 = vld [vmem:[%s5 + $0x18] sm:$0xff]
    %v2513 = vld [vmem:[%s5 + $0x20] sm:$0xff]
    %v2514 = vld [vmem:[%s5 + $0x28] sm:$0xff]
    %v2515 = vld [vmem:[%s5 + $0x30] sm:$0xff]
    %v2516 = vld [vmem:[%s5 + $0x38] sm:$0xff]
    %v2517 = vld [vmem:[%s5 + $0x40] sm:$0xff]
    %v2518 = vld [vmem:[%s5 + $0x48] sm:$0xff]
    %v2519 = vld [vmem:[%s5 + $0x50] sm:$0xff]
    %v2520 = vld [vmem:[%s5 + $0x58] sm:$0xff]
    %v2521 = vld [vmem:[%s5 + $0x60] sm:$0xff]
    %v2522 = vld [vmem:[%s5 + $0x68] sm:$0xff]
    %v2523 = vld [vmem:[%s5 + $0x70] sm:$0xff]
    %v2524 = vld [vmem:[%s5 + $0x78] sm:$0xff]
    %s2525 = scalar_lea.vmem %s5, 128
    %v2526 = vld [vmem:[%s2525] sm:$0xff]
    %v2527 = vld [vmem:[%s2525 + $0x8] sm:$0xff]
    %v2528 = vld [vmem:[%s2525 + $0x10] sm:$0xff]
    %v2529 = vld [vmem:[%s2525 + $0x18] sm:$0xff]
    %v2530 = vld [vmem:[%s2525 + $0x20] sm:$0xff]
    %v2531 = vld [vmem:[%s2525 + $0x28] sm:$0xff]
    %v2532 = vld [vmem:[%s2525 + $0x30] sm:$0xff]
    %v2533 = vld [vmem:[%s2525 + $0x38] sm:$0xff]
    %v2534 = vld [vmem:[%s2525 + $0x40] sm:$0xff]
    %v2535 = vld [vmem:[%s2525 + $0x48] sm:$0xff]
    %v2536 = vld [vmem:[%s2525 + $0x50] sm:$0xff]
    %v2537 = vld [vmem:[%s2525 + $0x58] sm:$0xff]
    %v2538 = vld [vmem:[%s2525 + $0x60] sm:$0xff]
    %v2539 = vld [vmem:[%s2525 + $0x68] sm:$0xff]
    %v2540 = vld [vmem:[%s2525 + $0x70] sm:$0xff]
    %v2541 = vld [vmem:[%s2525 + $0x78] sm:$0xff]
    %2542 = vmatprep.subr.mxu0 0.0
    %2543 = vmatpush1.msra.mxu0 %v2526
    %2544 = vmatprep.subr.mxu0 0.0
    %2545 = vmatpush1.msra.mxu0 %v2527
    %2546 = vmatprep.subr.mxu0 0.0
    %2547 = vmatpush1.msra.mxu0 %v2528
    %2548 = vmatprep.subr.mxu0 0.0
    %2549 = vmatpush1.msra.mxu0 %v2529
    %2550 = vmatprep.subr.mxu0 0.0
    %2551 = vmatpush1.msra.mxu0 %v2530
    %2552 = vmatprep.subr.mxu0 0.0
    %2553 = vmatpush1.msra.mxu0 %v2531
    %2554 = vmatprep.subr.mxu0 0.0
    %2555 = vmatpush1.msra.mxu0 %v2532
    %2556 = vmatprep.subr.mxu0 0.0
    %2557 = vmatpush1.msra.mxu0 %v2533
    %2558 = vmatprep.subr.mxu0 0.0
    %2559 = vmatpush1.msra.mxu0 %v2534
    %2560 = vmatprep.subr.mxu0 0.0
    %2561 = vmatpush1.msra.mxu0 %v2535
    %2562 = vmatprep.subr.mxu0 0.0
    %2563 = vmatpush1.msra.mxu0 %v2536
    %2564 = vmatprep.subr.mxu0 0.0
    %2565 = vmatpush1.msra.mxu0 %v2537
    %2566 = vmatprep.subr.mxu0 0.0
    %2567 = vmatpush1.msra.mxu0 %v2538
    %2568 = vmatprep.subr.mxu0 0.0
    %2569 = vmatpush1.msra.mxu0 %v2539
    %2570 = vmatprep.subr.mxu0 0.0
    %2571 = vmatpush1.msra.mxu0 %v2540
    %2572 = vmatprep.subr.mxu0 0.0
    %2573 = vmatpush1.msra.mxu0 %v2541
    %2574 = vmatprep.subr.mxu0 0.0
    %2575 = vmatpush1.msra.mxu0 0.0
    %2576 = vmatprep.subr.mxu0 0.0
    %2577 = vmatpush1.msra.mxu0 0.0
    %2578 = vmatprep.subr.mxu0 0.0
    %2579 = vmatpush1.msra.mxu0 0.0
    %2580 = vmatprep.subr.mxu0 0.0
    %2581 = vmatpush1.msra.mxu0 0.0
    %2582 = vmatprep.subr.mxu0 0.0
    %2583 = vmatpush1.msra.mxu0 0.0
    %2584 = vmatprep.subr.mxu0 0.0
    %2585 = vmatpush1.msra.mxu0 0.0
    %2586 = vmatprep.subr.mxu0 0.0
    %2587 = vmatpush1.msra.mxu0 0.0
    %2588 = vmatprep.subr.mxu0 0.0
    %2589 = vmatpush1.msra.mxu0 0.0
    %2590 = vmatprep.subr.mxu0 0.0
    %2591 = vmatpush1.msra.mxu0 0.0
    %2592 = vmatprep.subr.mxu0 0.0
    %2593 = vmatpush1.msra.mxu0 0.0
    %2594 = vmatprep.subr.mxu0 0.0
    %2595 = vmatpush1.msra.mxu0 0.0
    %2596 = vmatprep.subr.mxu0 0.0
    %2597 = vmatpush1.msra.mxu0 0.0
    %2598 = vmatprep.subr.mxu0 0.0
    %2599 = vmatpush1.msra.mxu0 0.0
    %2600 = vmatprep.subr.mxu0 0.0
    %2601 = vmatpush1.msra.mxu0 0.0
    %2602 = vmatprep.subr.mxu0 0.0
    %2603 = vmatpush1.msra.mxu0 0.0
    %2604 = vmatprep.subr.mxu0 0.0
    %2605 = vmatpush1.msra.mxu0 0.0
    %2606 = vmatprep.mubr.f32.mxu0 0.0
    %2607 = vmatmul.mubr.f32.gmra.mrb[0].mxu0 %v2505
    %v2608 = vpop.f32.mrb[0].mxu0
    %v2609 = vadd.f32 0.0, %v2608
    %v2610 = vpop.f32.mrb[0].mxu0
    %2611 = vdwg.mxu0
    %2612 = vmatprep.subr.mxu0 0.0
    %2613 = vmatpush1.msra.mxu0 %v2509
    %2614 = vmatprep.subr.mxu0 0.0
    %2615 = vmatpush1.msra.mxu0 %v2510
    %2616 = vmatprep.subr.mxu0 0.0
    %2617 = vmatpush1.msra.mxu0 %v2511
    %2618 = vmatprep.subr.mxu0 0.0
    %2619 = vmatpush1.msra.mxu0 %v2512
    %2620 = vmatprep.subr.mxu0 0.0
    %2621 = vmatpush1.msra.mxu0 %v2513
    %2622 = vmatprep.subr.mxu0 0.0
    %2623 = vmatpush1.msra.mxu0 %v2514
    %2624 = vmatprep.subr.mxu0 0.0
    %2625 = vmatpush1.msra.mxu0 %v2515
    %2626 = vmatprep.subr.mxu0 0.0
    %2627 = vmatpush1.msra.mxu0 %v2516
    %2628 = vmatprep.subr.mxu0 0.0
    %2629 = vmatpush1.msra.mxu0 %v2517
    %2630 = vmatprep.subr.mxu0 0.0
    %2631 = vmatpush1.msra.mxu0 %v2518
    %2632 = vmatprep.subr.mxu0 0.0
    %2633 = vmatpush1.msra.mxu0 %v2519
    %2634 = vmatprep.subr.mxu0 0.0
    %2635 = vmatpush1.msra.mxu0 %v2520
    %2636 = vmatprep.subr.mxu0 0.0
    %2637 = vmatpush1.msra.mxu0 %v2521
    %2638 = vmatprep.subr.mxu0 0.0
    %2639 = vmatpush1.msra.mxu0 %v2522
    %2640 = vmatprep.subr.mxu0 0.0
    %2641 = vmatpush1.msra.mxu0 %v2523
    %2642 = vmatprep.subr.mxu0 0.0
    %2643 = vmatpush1.msra.mxu0 %v2524
    %2644 = vmatprep.subr.mxu0 0.0
    %2645 = vmatpush1.msra.mxu0 0.0
    %2646 = vmatprep.subr.mxu0 0.0
    %2647 = vmatpush1.msra.mxu0 0.0
    %2648 = vmatprep.subr.mxu0 0.0
    %2649 = vmatpush1.msra.mxu0 0.0
    %2650 = vmatprep.subr.mxu0 0.0
    %2651 = vmatpush1.msra.mxu0 0.0
    %2652 = vmatprep.subr.mxu0 0.0
    %2653 = vmatpush1.msra.mxu0 0.0
    %2654 = vmatprep.subr.mxu0 0.0
    %2655 = vmatpush1.msra.mxu0 0.0
    %2656 = vmatprep.subr.mxu0 0.0
    %2657 = vmatpush1.msra.mxu0 0.0
    %2658 = vmatprep.subr.mxu0 0.0
    %2659 = vmatpush1.msra.mxu0 0.0
    %2660 = vmatprep.subr.mxu0 0.0
    %2661 = vmatpush1.msra.mxu0 0.0
    %2662 = vmatprep.subr.mxu0 0.0
    %2663 = vmatpush1.msra.mxu0 0.0
    %2664 = vmatprep.subr.mxu0 0.0
    %2665 = vmatpush1.msra.mxu0 0.0
    %2666 = vmatprep.subr.mxu0 0.0
    %2667 = vmatpush1.msra.mxu0 0.0
    %2668 = vmatprep.subr.mxu0 0.0
    %2669 = vmatpush1.msra.mxu0 0.0
    %2670 = vmatprep.subr.mxu0 0.0
    %2671 = vmatpush1.msra.mxu0 0.0
    %2672 = vmatprep.subr.mxu0 0.0
    %2673 = vmatpush1.msra.mxu0 0.0
    %2674 = vmatprep.subr.mxu0 0.0
    %2675 = vmatpush1.msra.mxu0 0.0
    %2676 = vmatprep.mubr.f32.mxu0 0.0
    %2677 = vmatmul.mubr.f32.gmra.mrb[0].mxu0 %v2504
    %v2678 = vpop.f32.mrb[0].mxu0
    %v2679 = vadd.f32 %v2609, %v2678
    %v2680 = vpop.f32.mrb[0].mxu0
    %2681 = vdwg.mxu0
    %s2682 = scalar_lea.vmem %s5, 256
    %v2683 = vld [vmem:[%s2682] sm:$0xff]
    %v2684 = vld [vmem:[%s2682 + $0x8] sm:$0xff]
    %v2685 = vld [vmem:[%s2682 + $0x10] sm:$0xff]
    %v2686 = vld [vmem:[%s2682 + $0x18] sm:$0xff]
    %v2687 = vld [vmem:[%s2682 + $0x20] sm:$0xff]
    %v2688 = vld [vmem:[%s2682 + $0x28] sm:$0xff]
    %v2689 = vld [vmem:[%s2682 + $0x30] sm:$0xff]
    %v2690 = vld [vmem:[%s2682 + $0x38] sm:$0xff]
    %v2691 = vld [vmem:[%s2682 + $0x40] sm:$0xff]
    %v2692 = vld [vmem:[%s2682 + $0x48] sm:$0xff]
    %v2693 = vld [vmem:[%s2682 + $0x50] sm:$0xff]
    %v2694 = vld [vmem:[%s2682 + $0x58] sm:$0xff]
    %v2695 = vld [vmem:[%s2682 + $0x60] sm:$0xff]
    %v2696 = vld [vmem:[%s2682 + $0x68] sm:$0xff]
    %v2697 = vld [vmem:[%s2682 + $0x70] sm:$0xff]
    %v2698 = vld [vmem:[%s2682 + $0x78] sm:$0xff]
    %2699 = vmatprep.subr.mxu0 0.0
    %2700 = vmatpush1.msra.mxu0 %v2683
    %2701 = vmatprep.subr.mxu0 0.0
    %2702 = vmatpush1.msra.mxu0 %v2684
    %2703 = vmatprep.subr.mxu0 0.0
    %2704 = vmatpush1.msra.mxu0 %v2685
    %2705 = vmatprep.subr.mxu0 0.0
    %2706 = vmatpush1.msra.mxu0 %v2686
    %2707 = vmatprep.subr.mxu0 0.0
    %2708 = vmatpush1.msra.mxu0 %v2687
    %2709 = vmatprep.subr.mxu0 0.0
    %2710 = vmatpush1.msra.mxu0 %v2688
    %2711 = vmatprep.subr.mxu0 0.0
    %2712 = vmatpush1.msra.mxu0 %v2689
    %2713 = vmatprep.subr.mxu0 0.0
    %2714 = vmatpush1.msra.mxu0 %v2690
    %2715 = vmatprep.subr.mxu0 0.0
    %2716 = vmatpush1.msra.mxu0 %v2691
    %2717 = vmatprep.subr.mxu0 0.0
    %2718 = vmatpush1.msra.mxu0 %v2692
    %2719 = vmatprep.subr.mxu0 0.0
    %2720 = vmatpush1.msra.mxu0 %v2693
    %2721 = vmatprep.subr.mxu0 0.0
    %2722 = vmatpush1.msra.mxu0 %v2694
    %2723 = vmatprep.subr.mxu0 0.0
    %2724 = vmatpush1.msra.mxu0 %v2695
    %2725 = vmatprep.subr.mxu0 0.0
    %2726 = vmatpush1.msra.mxu0 %v2696
    %2727 = vmatprep.subr.mxu0 0.0
    %2728 = vmatpush1.msra.mxu0 %v2697
    %2729 = vmatprep.subr.mxu0 0.0
    %2730 = vmatpush1.msra.mxu0 %v2698
    %2731 = vmatprep.subr.mxu0 0.0
    %2732 = vmatpush1.msra.mxu0 0.0
    %2733 = vmatprep.subr.mxu0 0.0
    %2734 = vmatpush1.msra.mxu0 0.0
    %2735 = vmatprep.subr.mxu0 0.0
    %2736 = vmatpush1.msra.mxu0 0.0
    %2737 = vmatprep.subr.mxu0 0.0
    %2738 = vmatpush1.msra.mxu0 0.0
    %2739 = vmatprep.subr.mxu0 0.0
    %2740 = vmatpush1.msra.mxu0 0.0
    %2741 = vmatprep.subr.mxu0 0.0
    %2742 = vmatpush1.msra.mxu0 0.0
    %2743 = vmatprep.subr.mxu0 0.0
    %2744 = vmatpush1.msra.mxu0 0.0
    %2745 = vmatprep.subr.mxu0 0.0
    %2746 = vmatpush1.msra.mxu0 0.0
    %2747 = vmatprep.subr.mxu0 0.0
    %2748 = vmatpush1.msra.mxu0 0.0
    %2749 = vmatprep.subr.mxu0 0.0
    %2750 = vmatpush1.msra.mxu0 0.0
    %2751 = vmatprep.subr.mxu0 0.0
    %2752 = vmatpush1.msra.mxu0 0.0
    %2753 = vmatprep.subr.mxu0 0.0
    %2754 = vmatpush1.msra.mxu0 0.0
    %2755 = vmatprep.subr.mxu0 0.0
    %2756 = vmatpush1.msra.mxu0 0.0
    %2757 = vmatprep.subr.mxu0 0.0
    %2758 = vmatpush1.msra.mxu0 0.0
    %2759 = vmatprep.subr.mxu0 0.0
    %2760 = vmatpush1.msra.mxu0 0.0
    %2761 = vmatprep.subr.mxu0 0.0
    %2762 = vmatpush1.msra.mxu0 0.0
    %2763 = vmatprep.mubr.f32.mxu0 0.0
    %2764 = vmatmul.mubr.f32.gmra.mrb[0].mxu0 %v2506
    %v2765 = vpop.f32.mrb[0].mxu0
    %v2766 = vadd.f32 0.0, %v2765
    %v2767 = vpop.f32.mrb[0].mxu0
    %2768 = vdwg.mxu0
    %v2769 = vadd.f32 %v2679, %v2766
    %s2770 = scalar_lea.vmem %s5, 384
    %v2771 = vld [vmem:[%s2770] sm:$0xff]
    %v2772 = vld [vmem:[%s2770 + $0x8] sm:$0xff]
    %v2773 = vld [vmem:[%s2770 + $0x10] sm:$0xff]
    %v2774 = vld [vmem:[%s2770 + $0x18] sm:$0xff]
    %v2775 = vld [vmem:[%s2770 + $0x20] sm:$0xff]
    %v2776 = vld [vmem:[%s2770 + $0x28] sm:$0xff]
    %v2777 = vld [vmem:[%s2770 + $0x30] sm:$0xff]
    %v2778 = vld [vmem:[%s2770 + $0x38] sm:$0xff]
    %v2779 = vld [vmem:[%s2770 + $0x40] sm:$0xff]
    %v2780 = vld [vmem:[%s2770 + $0x48] sm:$0xff]
    %v2781 = vld [vmem:[%s2770 + $0x50] sm:$0xff]
    %v2782 = vld [vmem:[%s2770 + $0x58] sm:$0xff]
    %v2783 = vld [vmem:[%s2770 + $0x60] sm:$0xff]
    %v2784 = vld [vmem:[%s2770 + $0x68] sm:$0xff]
    %v2785 = vld [vmem:[%s2770 + $0x70] sm:$0xff]
    %v2786 = vld [vmem:[%s2770 + $0x78] sm:$0xff]
    %2787 = vmatprep.subr.mxu0 0.0
    %2788 = vmatpush1.msra.mxu0 %v2771
    %2789 = vmatprep.subr.mxu0 0.0
    %2790 = vmatpush1.msra.mxu0 %v2772
    %2791 = vmatprep.subr.mxu0 0.0
    %2792 = vmatpush1.msra.mxu0 %v2773
    %2793 = vmatprep.subr.mxu0 0.0
    %2794 = vmatpush1.msra.mxu0 %v2774
    %2795 = vmatprep.subr.mxu0 0.0
    %2796 = vmatpush1.msra.mxu0 %v2775
    %2797 = vmatprep.subr.mxu0 0.0
    %2798 = vmatpush1.msra.mxu0 %v2776
    %2799 = vmatprep.subr.mxu0 0.0
    %2800 = vmatpush1.msra.mxu0 %v2777
    %2801 = vmatprep.subr.mxu0 0.0
    %2802 = vmatpush1.msra.mxu0 %v2778
    %2803 = vmatprep.subr.mxu0 0.0
    %2804 = vmatpush1.msra.mxu0 %v2779
    %2805 = vmatprep.subr.mxu0 0.0
    %2806 = vmatpush1.msra.mxu0 %v2780
    %2807 = vmatprep.subr.mxu0 0.0
    %2808 = vmatpush1.msra.mxu0 %v2781
    %2809 = vmatprep.subr.mxu0 0.0
    %2810 = vmatpush1.msra.mxu0 %v2782
    %2811 = vmatprep.subr.mxu0 0.0
    %2812 = vmatpush1.msra.mxu0 %v2783
    %2813 = vmatprep.subr.mxu0 0.0
    %2814 = vmatpush1.msra.mxu0 %v2784
    %2815 = vmatprep.subr.mxu0 0.0
    %2816 = vmatpush1.msra.mxu0 %v2785
    %2817 = vmatprep.subr.mxu0 0.0
    %2818 = vmatpush1.msra.mxu0 %v2786
    %2819 = vmatprep.subr.mxu0 0.0
    %2820 = vmatpush1.msra.mxu0 0.0
    %2821 = vmatprep.subr.mxu0 0.0
    %2822 = vmatpush1.msra.mxu0 0.0
    %2823 = vmatprep.subr.mxu0 0.0
    %2824 = vmatpush1.msra.mxu0 0.0
    %2825 = vmatprep.subr.mxu0 0.0
    %2826 = vmatpush1.msra.mxu0 0.0
    %2827 = vmatprep.subr.mxu0 0.0
    %2828 = vmatpush1.msra.mxu0 0.0
    %2829 = vmatprep.subr.mxu0 0.0
    %2830 = vmatpush1.msra.mxu0 0.0
    %2831 = vmatprep.subr.mxu0 0.0
    %2832 = vmatpush1.msra.mxu0 0.0
    %2833 = vmatprep.subr.mxu0 0.0
    %2834 = vmatpush1.msra.mxu0 0.0
    %2835 = vmatprep.subr.mxu0 0.0
    %2836 = vmatpush1.msra.mxu0 0.0
    %2837 = vmatprep.subr.mxu0 0.0
    %2838 = vmatpush1.msra.mxu0 0.0
    %2839 = vmatprep.subr.mxu0 0.0
    %2840 = vmatpush1.msra.mxu0 0.0
    %2841 = vmatprep.subr.mxu0 0.0
    %2842 = vmatpush1.msra.mxu0 0.0
    %2843 = vmatprep.subr.mxu0 0.0
    %2844 = vmatpush1.msra.mxu0 0.0
    %2845 = vmatprep.subr.mxu0 0.0
    %2846 = vmatpush1.msra.mxu0 0.0
    %2847 = vmatprep.subr.mxu0 0.0
    %2848 = vmatpush1.msra.mxu0 0.0
    %2849 = vmatprep.subr.mxu0 0.0
    %2850 = vmatpush1.msra.mxu0 0.0
    %2851 = vmatprep.mubr.f32.mxu0 0.0
    %2852 = vmatmul.mubr.f32.gmra.mrb[0].mxu0 %v2507
    %v2853 = vpop.f32.mrb[0].mxu0
    %v2854 = vadd.f32 0.0, %v2853
    %v2855 = vpop.f32.mrb[0].mxu0
    %2856 = vdwg.mxu0
    %v2857 = vadd.f32 %v2769, %v2854
    %s2858 = scalar_lea.vmem %s5, 512
    %v2859 = vld [vmem:[%s2858] sm:$0xff]
    %v2860 = vld [vmem:[%s2858 + $0x8] sm:$0xff]
    %v2861 = vld [vmem:[%s2858 + $0x10] sm:$0xff]
    %v2862 = vld [vmem:[%s2858 + $0x18] sm:$0xff]
    %v2863 = vld [vmem:[%s2858 + $0x20] sm:$0xff]
    %v2864 = vld [vmem:[%s2858 + $0x28] sm:$0xff]
    %v2865 = vld [vmem:[%s2858 + $0x30] sm:$0xff]
    %v2866 = vld [vmem:[%s2858 + $0x38] sm:$0xff]
    %v2867 = vld [vmem:[%s2858 + $0x40] sm:$0xff]
    %v2868 = vld [vmem:[%s2858 + $0x48] sm:$0xff]
    %v2869 = vld [vmem:[%s2858 + $0x50] sm:$0xff]
    %v2870 = vld [vmem:[%s2858 + $0x58] sm:$0xff]
    %v2871 = vld [vmem:[%s2858 + $0x60] sm:$0xff]
    %v2872 = vld [vmem:[%s2858 + $0x68] sm:$0xff]
    %v2873 = vld [vmem:[%s2858 + $0x70] sm:$0xff]
    %v2874 = vld [vmem:[%s2858 + $0x78] sm:$0xff]
    %2875 = vmatprep.subr.mxu0 0.0
    %2876 = vmatpush1.msra.mxu0 %v2859
    %2877 = vmatprep.subr.mxu0 0.0
    %2878 = vmatpush1.msra.mxu0 %v2860
    %2879 = vmatprep.subr.mxu0 0.0
    %2880 = vmatpush1.msra.mxu0 %v2861
    %2881 = vmatprep.subr.mxu0 0.0
    %2882 = vmatpush1.msra.mxu0 %v2862
    %2883 = vmatprep.subr.mxu0 0.0
    %2884 = vmatpush1.msra.mxu0 %v2863
    %2885 = vmatprep.subr.mxu0 0.0
    %2886 = vmatpush1.msra.mxu0 %v2864
    %2887 = vmatprep.subr.mxu0 0.0
    %2888 = vmatpush1.msra.mxu0 %v2865
    %2889 = vmatprep.subr.mxu0 0.0
    %2890 = vmatpush1.msra.mxu0 %v2866
    %2891 = vmatprep.subr.mxu0 0.0
    %2892 = vmatpush1.msra.mxu0 %v2867
    %2893 = vmatprep.subr.mxu0 0.0
    %2894 = vmatpush1.msra.mxu0 %v2868
    %2895 = vmatprep.subr.mxu0 0.0
    %2896 = vmatpush1.msra.mxu0 %v2869
    %2897 = vmatprep.subr.mxu0 0.0
    %2898 = vmatpush1.msra.mxu0 %v2870
    %2899 = vmatprep.subr.mxu0 0.0
    %2900 = vmatpush1.msra.mxu0 %v2871
    %2901 = vmatprep.subr.mxu0 0.0
    %2902 = vmatpush1.msra.mxu0 %v2872
    %2903 = vmatprep.subr.mxu0 0.0
    %2904 = vmatpush1.msra.mxu0 %v2873
    %2905 = vmatprep.subr.mxu0 0.0
    %2906 = vmatpush1.msra.mxu0 %v2874
    %2907 = vmatprep.subr.mxu0 0.0
    %2908 = vmatpush1.msra.mxu0 0.0
    %2909 = vmatprep.subr.mxu0 0.0
    %2910 = vmatpush1.msra.mxu0 0.0
    %2911 = vmatprep.subr.mxu0 0.0
    %2912 = vmatpush1.msra.mxu0 0.0
    %2913 = vmatprep.subr.mxu0 0.0
    %2914 = vmatpush1.msra.mxu0 0.0
    %2915 = vmatprep.subr.mxu0 0.0
    %2916 = vmatpush1.msra.mxu0 0.0
    %2917 = vmatprep.subr.mxu0 0.0
    %2918 = vmatpush1.msra.mxu0 0.0
    %2919 = vmatprep.subr.mxu0 0.0
    %2920 = vmatpush1.msra.mxu0 0.0
    %2921 = vmatprep.subr.mxu0 0.0
    %2922 = vmatpush1.msra.mxu0 0.0
    %2923 = vmatprep.subr.mxu0 0.0
    %2924 = vmatpush1.msra.mxu0 0.0
    %2925 = vmatprep.subr.mxu0 0.0
    %2926 = vmatpush1.msra.mxu0 0.0
    %2927 = vmatprep.subr.mxu0 0.0
    %2928 = vmatpush1.msra.mxu0 0.0
    %2929 = vmatprep.subr.mxu0 0.0
    %2930 = vmatpush1.msra.mxu0 0.0
    %2931 = vmatprep.subr.mxu0 0.0
    %2932 = vmatpush1.msra.mxu0 0.0
    %2933 = vmatprep.subr.mxu0 0.0
    %2934 = vmatpush1.msra.mxu0 0.0
    %2935 = vmatprep.subr.mxu0 0.0
    %2936 = vmatpush1.msra.mxu0 0.0
    %2937 = vmatprep.subr.mxu0 0.0
    %2938 = vmatpush1.msra.mxu0 0.0
    %2939 = vmatprep.mubr.f32.mxu0 0.0
    %2940 = vmatmul.mubr.f32.gmra.mrb[0].mxu0 %v2508
    %v2941 = vpop.f32.mrb[0].mxu0
    %v2942 = vadd.f32 0.0, %v2941
    %v2943 = vpop.f32.mrb[0].mxu0
    %2944 = vdwg.mxu0
    %v2945 = vadd.f32 %v2857, %v2942
    %v2946 = vld [vmem:[%s6] sm:$0x1]
    %v2948 = vlaneseq
    %v2949 = vshrl.u32 %v2948, 7
    %v2950 = vsub.s32 0, %v2949
    %v2951 = vrot.slane %v2946, %v2950
    %v2953 = vadd.f32 %v2945, %v2951
    %v2954 = vmax.f32 %v2953, 0.0
    %v2955 = vld [vmem:[%s7] sm:$0xff]
    %v2956 = vld [vmem:[%s7 + $0x8] sm:$0xff]
    %v2957 = vld [vmem:[%s7 + $0x10] sm:$0xff]
    %v2958 = vld [vmem:[%s7 + $0x18] sm:$0xff]
    %v2959 = vld [vmem:[%s7 + $0x20] sm:$0xff]
    %v2960 = vld [vmem:[%s7 + $0x28] sm:$0xff]
    %v2961 = vld [vmem:[%s7 + $0x30] sm:$0xff]
    %v2962 = vld [vmem:[%s7 + $0x38] sm:$0xff]
    %v2963 = vld [vmem:[%s7 + $0x40] sm:$0xff]
    %v2964 = vld [vmem:[%s7 + $0x48] sm:$0xff]
    %v2965 = vld [vmem:[%s7 + $0x50] sm:$0xff]
    %v2966 = vld [vmem:[%s7 + $0x58] sm:$0xff]
    %v2967 = vld [vmem:[%s7 + $0x60] sm:$0xff]
    %v2968 = vld [vmem:[%s7 + $0x68] sm:$0xff]
    %v2969 = vld [vmem:[%s7 + $0x70] sm:$0xff]
    %v2970 = vld [vmem:[%s7 + $0x78] sm:$0xff]
    %v2971 = vld [vmem:[%s8] sm:$0x1]
    %v2973 = vlaneseq
    %v2974 = vshrl.u32 %v2973, 7
    %v2975 = vsub.s32 0, %v2974
    %v2976 = vrot.slane %v2971, %v2975
    %2978 = vmatprep.subr.mxu0 0.0
    %2979 = vmatpush1.msra.mxu0 %v2955
    %2980 = vmatprep.subr.mxu0 0.0
    %2981 = vmatpush1.msra.mxu0 %v2956
    %2982 = vmatprep.subr.mxu0 0.0
    %2983 = vmatpush1.msra.mxu0 %v2957
    %2984 = vmatprep.subr.mxu0 0.0
    %2985 = vmatpush1.msra.mxu0 %v2958
    %2986 = vmatprep.subr.mxu0 0.0
    %2987 = vmatpush1.msra.mxu0 %v2959
    %2988 = vmatprep.subr.mxu0 0.0
    %2989 = vmatpush1.msra.mxu0 %v2960
    %2990 = vmatprep.subr.mxu0 0.0
    %2991 = vmatpush1.msra.mxu0 %v2961
    %2992 = vmatprep.subr.mxu0 0.0
    %2993 = vmatpush1.msra.mxu0 %v2962
    %2994 = vmatprep.subr.mxu0 0.0
    %2995 = vmatpush1.msra.mxu0 %v2963
    %2996 = vmatprep.subr.mxu0 0.0
    %2997 = vmatpush1.msra.mxu0 %v2964
    %2998 = vmatprep.subr.mxu0 0.0
    %2999 = vmatpush1.msra.mxu0 %v2965
    %3000 = vmatprep.subr.mxu0 0.0
    %3001 = vmatpush1.msra.mxu0 %v2966
    %3002 = vmatprep.subr.mxu0 0.0
    %3003 = vmatpush1.msra.mxu0 %v2967
    %3004 = vmatprep.subr.mxu0 0.0
    %3005 = vmatpush1.msra.mxu0 %v2968
    %3006 = vmatprep.subr.mxu0 0.0
    %3007 = vmatpush1.msra.mxu0 %v2969
    %3008 = vmatprep.subr.mxu0 0.0
    %3009 = vmatpush1.msra.mxu0 %v2970
    %3010 = vmatprep.subr.mxu0 0.0
    %3011 = vmatpush1.msra.mxu0 0.0
    %3012 = vmatprep.subr.mxu0 0.0
    %3013 = vmatpush1.msra.mxu0 0.0
    %3014 = vmatprep.subr.mxu0 0.0
    %3015 = vmatpush1.msra.mxu0 0.0
    %3016 = vmatprep.subr.mxu0 0.0
    %3017 = vmatpush1.msra.mxu0 0.0
    %3018 = vmatprep.subr.mxu0 0.0
    %3019 = vmatpush1.msra.mxu0 0.0
    %3020 = vmatprep.subr.mxu0 0.0
    %3021 = vmatpush1.msra.mxu0 0.0
    %3022 = vmatprep.subr.mxu0 0.0
    %3023 = vmatpush1.msra.mxu0 0.0
    %3024 = vmatprep.subr.mxu0 0.0
    %3025 = vmatpush1.msra.mxu0 0.0
    %3026 = vmatprep.subr.mxu0 0.0
    %3027 = vmatpush1.msra.mxu0 0.0
    %3028 = vmatprep.subr.mxu0 0.0
    %3029 = vmatpush1.msra.mxu0 0.0
    %3030 = vmatprep.subr.mxu0 0.0
    %3031 = vmatpush1.msra.mxu0 0.0
    %3032 = vmatprep.subr.mxu0 0.0
    %3033 = vmatpush1.msra.mxu0 0.0
    %3034 = vmatprep.subr.mxu0 0.0
    %3035 = vmatpush1.msra.mxu0 0.0
    %3036 = vmatprep.subr.mxu0 0.0
    %3037 = vmatpush1.msra.mxu0 0.0
    %3038 = vmatprep.subr.mxu0 0.0
    %3039 = vmatpush1.msra.mxu0 0.0
    %3040 = vmatprep.subr.mxu0 0.0
    %3041 = vmatpush1.msra.mxu0 0.0
    %3042 = vmatprep.mubr.f32.mxu0 0.0
    %3043 = vmatmul.mubr.f32.gmra.mrb[0].mxu0 %v2954
    %v3044 = vpop.f32.mrb[0].mxu0
    %v3045 = vadd.f32 %v2976, %v3044
    %v3046 = vpop.f32.mrb[0].mxu0
    %3047 = vdwg.mxu0
    %v3048 = vmax.f32 %v3045, 0.0
    %v3049 = vld [vmem:[%s9] sm:$0xff]
    %v3050 = vld [vmem:[%s9 + $0x8] sm:$0xff]
    %v3051 = vld [vmem:[%s9 + $0x10] sm:$0xff]
    %v3052 = vld [vmem:[%s9 + $0x18] sm:$0xff]
    %v3053 = vld [vmem:[%s9 + $0x20] sm:$0xff]
    %v3054 = vld [vmem:[%s9 + $0x28] sm:$0xff]
    %v3055 = vld [vmem:[%s9 + $0x30] sm:$0xff]
    %v3056 = vld [vmem:[%s9 + $0x38] sm:$0xff]
    %v3057 = vld [vmem:[%s9 + $0x40] sm:$0xff]
    %v3058 = vld [vmem:[%s9 + $0x48] sm:$0xff]
    %v3059 = vld [vmem:[%s9 + $0x50] sm:$0xff]
    %v3060 = vld [vmem:[%s9 + $0x58] sm:$0xff]
    %v3061 = vld [vmem:[%s9 + $0x60] sm:$0xff]
    %v3062 = vld [vmem:[%s9 + $0x68] sm:$0xff]
    %v3063 = vld [vmem:[%s9 + $0x70] sm:$0xff]
    %v3064 = vld [vmem:[%s9 + $0x78] sm:$0xff]
    %v3065 = vld [vmem:[%s10] sm:$0x1]
    %v3067 = vlaneseq
    %v3068 = vshrl.u32 %v3067, 7
    %v3069 = vsub.s32 0, %v3068
    %v3070 = vrot.slane %v3065, %v3069
    %3072 = vmatprep.subr.mxu0 0.0
    %3073 = vmatpush1.msra.mxu0 %v3049
    %3074 = vmatprep.subr.mxu0 0.0
    %3075 = vmatpush1.msra.mxu0 %v3050
    %3076 = vmatprep.subr.mxu0 0.0
    %3077 = vmatpush1.msra.mxu0 %v3051
    %3078 = vmatprep.subr.mxu0 0.0
    %3079 = vmatpush1.msra.mxu0 %v3052
    %3080 = vmatprep.subr.mxu0 0.0
    %3081 = vmatpush1.msra.mxu0 %v3053
    %3082 = vmatprep.subr.mxu0 0.0
    %3083 = vmatpush1.msra.mxu0 %v3054
    %3084 = vmatprep.subr.mxu0 0.0
    %3085 = vmatpush1.msra.mxu0 %v3055
    %3086 = vmatprep.subr.mxu0 0.0
    %3087 = vmatpush1.msra.mxu0 %v3056
    %3088 = vmatprep.subr.mxu0 0.0
    %3089 = vmatpush1.msra.mxu0 %v3057
    %3090 = vmatprep.subr.mxu0 0.0
    %3091 = vmatpush1.msra.mxu0 %v3058
    %3092 = vmatprep.subr.mxu0 0.0
    %3093 = vmatpush1.msra.mxu0 %v3059
    %3094 = vmatprep.subr.mxu0 0.0
    %3095 = vmatpush1.msra.mxu0 %v3060
    %3096 = vmatprep.subr.mxu0 0.0
    %3097 = vmatpush1.msra.mxu0 %v3061
    %3098 = vmatprep.subr.mxu0 0.0
    %3099 = vmatpush1.msra.mxu0 %v3062
    %3100 = vmatprep.subr.mxu0 0.0
    %3101 = vmatpush1.msra.mxu0 %v3063
    %3102 = vmatprep.subr.mxu0 0.0
    %3103 = vmatpush1.msra.mxu0 %v3064
    %3104 = vmatprep.subr.mxu0 0.0
    %3105 = vmatpush1.msra.mxu0 0.0
    %3106 = vmatprep.subr.mxu0 0.0
    %3107 = vmatpush1.msra.mxu0 0.0
    %3108 = vmatprep.subr.mxu0 0.0
    %3109 = vmatpush1.msra.mxu0 0.0
    %3110 = vmatprep.subr.mxu0 0.0
    %3111 = vmatpush1.msra.mxu0 0.0
    %3112 = vmatprep.subr.mxu0 0.0
    %3113 = vmatpush1.msra.mxu0 0.0
    %3114 = vmatprep.subr.mxu0 0.0
    %3115 = vmatpush1.msra.mxu0 0.0
    %3116 = vmatprep.subr.mxu0 0.0
    %3117 = vmatpush1.msra.mxu0 0.0
    %3118 = vmatprep.subr.mxu0 0.0
    %3119 = vmatpush1.msra.mxu0 0.0
    %3120 = vmatprep.subr.mxu0 0.0
    %3121 = vmatpush1.msra.mxu0 0.0
    %3122 = vmatprep.subr.mxu0 0.0
    %3123 = vmatpush1.msra.mxu0 0.0
    %3124 = vmatprep.subr.mxu0 0.0
    %3125 = vmatpush1.msra.mxu0 0.0
    %3126 = vmatprep.subr.mxu0 0.0
    %3127 = vmatpush1.msra.mxu0 0.0
    %3128 = vmatprep.subr.mxu0 0.0
    %3129 = vmatpush1.msra.mxu0 0.0
    %3130 = vmatprep.subr.mxu0 0.0
    %3131 = vmatpush1.msra.mxu0 0.0
    %3132 = vmatprep.subr.mxu0 0.0
    %3133 = vmatpush1.msra.mxu0 0.0
    %3134 = vmatprep.subr.mxu0 0.0
    %3135 = vmatpush1.msra.mxu0 0.0
    %3136 = vmatprep.mubr.f32.mxu0 0.0
    %3137 = vmatmul.mubr.f32.gmra.mrb[0].mxu0 %v3048
    %v3138 = vpop.f32.mrb[0].mxu0
    %v3139 = vadd.f32 %v3070, %v3138
    %v3140 = vpop.f32.mrb[0].mxu0
    %3141 = vdwg.mxu0
    %3142 = vmax.xlane.f32.xlu0 %v3139
    %v3143 = vpop.xlane.xlu0 %3142
    %v3144 = vsub.f32 %v3139, %v3143
    %v3145 = vmul.f32 %v3144, 1.442695
    %v3146 = vpow.pop %v3145
    %3147 = vadd.xlane.f32.xlu0 %v3146
    %v3148 = vpop.xlane.xlu0 %3147
    %v3149 = vlog2.pop %v3148
    %v3150 = vmul.f32 %v3149, 0.6931472
    %v3151 = vsub.f32 %v3144, %v3150
    %3152 = vst [vmem:[%s11] sm:$0xff] %v3151
    // Predicated region
    $region54: #{cnn_forward.1} parent=1 // pred_check
      _
    $region55: #{cnn_forward.1} parent=1 // pred_check_branch
      %3154 = sbr.rel (0) target = $region57
    $region56: #{cnn_forward.1} parent=1 // pred_region
      _
    $region57: #{cnn_forward.1} parent=1 // pred_fallthru
      _
    // Predicated region
    $region58: #{cnn_forward.1} parent=1 // pred_check
      _
    $region59: #{cnn_forward.1} parent=1 // pred_check_branch
      %3156 = sbr.rel (0) target = $region61
    $region60: #{cnn_forward.1} parent=1 // pred_region
      _
    $region61: #{cnn_forward.1} parent=1 // pred_fallthru
      _
    %3157 = vsyncpa [#allocation3], 1
    %3158 = vsyncpa [#allocation5], 1

</llo_original>
